<compile_context>
chip_gen: v6e
topology: v6e:2x2x1
jax: 0.10.0
libtpu: 0.0.40
codegen_flags: <defaults>
</compile_context>

<pallas_src>
import functools

import jax
import jax.numpy as jnp
from jax import lax
from jax.experimental import pallas as pl
from jax.experimental.pallas import tpu as pltpu

EPS = 1e-5  # CLIP LayerNorm eps
_VMEM = pltpu.MemorySpace.VMEM

LAYER_KEYS = ('ln1_w', 'ln1_b', 'wq', 'bq', 'wk', 'bk', 'wv', 'bv', 'wo', 'bo',
              'ln2_w', 'ln2_b', 'w1', 'b1', 'w2', 'b2')


def _round_up(x, m):
    return (x + m - 1) // m * m


def _ln(x, w, b):
    """LayerNorm over last axis in f32. x: (..., D); w, b: (1, D)."""
    x = x.astype(jnp.float32)
    mu = jnp.mean(x, axis=-1, keepdims=True)
    var = jnp.mean(jnp.square(x - mu), axis=-1, keepdims=True)
    return (x - mu) * lax.rsqrt(var + EPS) * w + b


# ----------------------------- Pallas kernels ------------------------------


def _patch_embed_kernel(p_ref, w_ref, o_ref):
    # p: (B*Np, C*P*P) bf16, w: (C*P*P, D) bf16 -> (B*Np, D) f32
    o_ref[...] = jnp.dot(p_ref[...], w_ref[...],
                         preferred_element_type=jnp.float32)


def _encoder_kernel(num_heads, s_real,
                    h_ref, plw, plb,
                    ln1w, ln1b, wq, bq, wk, bk, wv, bv, wo, bo,
                    ln2w, ln2b, w1, b1, w2, b2,
                    o_ref):
    """Pre-LN (at l==0) + one CLIP ViT encoder layer per grid step.

    Grid = (batch_blocks, L).  o_ref holds the residual stream (f32) resident
    across the layer axis; weights are per-layer blocks streamed each step.
    """
    l = pl.program_id(1)
    BB, S, D = o_ref.shape
    H = num_heads
    Dh = D // H
    rows = BB * S
    scale = 1.0 / (Dh ** 0.5)

    @pl.when(l == 0)
    def _():
        # CLIP pre_layrnorm fused into the first layer step.
        o_ref[...] = _ln(h_ref[...], plw[...], plb[...])

    h = o_ref[...]                                           # (BB, S, D) f32

    # ------------------------- self-attention block -------------------------
    x = _ln(h, ln1w[0], ln1b[0])
    xb = x.reshape(rows, D).astype(jnp.bfloat16)             # fold batch into M
    q = jnp.dot(xb, wq[0], preferred_element_type=jnp.float32) + bq[0]
    k = jnp.dot(xb, wk[0], preferred_element_type=jnp.float32) + bk[0]
    v = jnp.dot(xb, wv[0], preferred_element_type=jnp.float32) + bv[0]

    def split_heads(t):                                      # (rows, D) -> (BB*H, S, Dh)
        t = t.reshape(BB, S, H, Dh)
        t = jnp.transpose(t, (0, 2, 1, 3))
        return t.reshape(BB * H, S, Dh)

    qh = split_heads(q * scale).astype(jnp.bfloat16)
    kh = split_heads(k).astype(jnp.bfloat16)
    vh = split_heads(v).astype(jnp.bfloat16)

    s = jnp.einsum('bqd,bkd->bqk', qh, kh,
                   preferred_element_type=jnp.float32)       # (BB*H, S, S)
    key_idx = lax.broadcasted_iota(jnp.int32, s.shape, 2)
    s = jnp.where(key_idx < s_real, s, -1e30)                # mask padded keys
    s = s - jnp.max(s, axis=-1, keepdims=True)
    e = jnp.exp(s)
    p = e * pl.reciprocal(jnp.sum(e, axis=-1, keepdims=True), approx=True)
    ctx = jnp.einsum('bqk,bkd->bqd', p.astype(jnp.bfloat16), vh,
                     preferred_element_type=jnp.float32)     # (BB*H, S, Dh)
    ctx = jnp.transpose(ctx.reshape(BB, H, S, Dh), (0, 2, 1, 3)).reshape(rows, D)

    attn = jnp.dot(ctx.astype(jnp.bfloat16), wo[0],
                   preferred_element_type=jnp.float32) + bo[0]
    h = h + attn.reshape(BB, S, D)

    # ------------------------------ MLP block -------------------------------
    x = _ln(h, ln2w[0], ln2b[0]).reshape(rows, D).astype(jnp.bfloat16)
    m = jnp.dot(x, w1[0], preferred_element_type=jnp.float32) + b1[0]
    m = m * jax.nn.sigmoid(1.702 * m)                        # quick_gelu (CLIP)
    m = jnp.dot(m.astype(jnp.bfloat16), w2[0],
                preferred_element_type=jnp.float32) + b2[0]
    o_ref[...] = h + m.reshape(BB, S, D)


def _head_kernel(x_ref, gw, gb, wc, bc, o_ref):
    # post_layernorm on pooled CLS token, then Linear classifier (lane-padded).
    xn = _ln(x_ref[...], gw[...], gb[...])                   # (B, D)
    o_ref[...] = jnp.dot(xn.astype(jnp.bfloat16), wc[...],
                         preferred_element_type=jnp.float32) + bc[...]


# ------------------------------- wrappers ----------------------------------


def _vmem_call(kernel, out_shape, *args):
    return pl.pallas_call(
        kernel,
        out_shape=out_shape,
        in_specs=[pl.BlockSpec(memory_space=_VMEM) for _ in args],
        out_specs=pl.BlockSpec(memory_space=_VMEM),
    )(*args)


def patch_embed(patches, w):
    n = patches.shape[0]
    d = w.shape[1]
    return _vmem_call(_patch_embed_kernel,
                      jax.ShapeDtypeStruct((n, d), jnp.float32), patches, w)


def encoder(h, params, *, heads, s_real, batch_block=None):
    B, S_pad, D = h.shape
    st = params['stack']
    L = st['wq'].shape[0]
    inter = st['w1'].shape[2]
    if batch_block is None:
        batch_block = B if B <= 8 else 8
    assert B % batch_block == 0
    nbb = B // batch_block
    layer_args = [st[k] for k in LAYER_KEYS]

    act_spec = pl.BlockSpec((batch_block, S_pad, D), lambda nb, l: (nb, 0, 0))

    def layer_spec(a):
        nd = a.ndim
        return pl.BlockSpec((1,) + a.shape[1:],
                            lambda nb, l: (l,) + (0,) * (nd - 1))

    def full_spec(a):
        nd = a.ndim
        return pl.BlockSpec(a.shape, lambda nb, l: (0,) * nd)

    in_specs = ([act_spec, full_spec(params['pre_ln_w']),
                 full_spec(params['pre_ln_b'])]
                + [layer_spec(a) for a in layer_args])

    rows = batch_block * S_pad
    per_step_flops = (2 * rows * D * D * 4
                      + 4 * batch_block * heads * S_pad * S_pad * (D // heads)
                      + 4 * rows * D * inter)
    weight_bytes = sum(int(a.size) * a.dtype.itemsize for a in layer_args)
    cost = pl.CostEstimate(
        flops=int(nbb * L * per_step_flops),
        transcendentals=int(nbb * L * (batch_block * heads * S_pad * S_pad
                                       + rows * inter)),
        bytes_accessed=int(nbb * weight_bytes + 2 * h.size * 4))

    kern = functools.partial(_encoder_kernel, heads, s_real)
    return pl.pallas_call(
        kern,
        out_shape=jax.ShapeDtypeStruct((B, S_pad, D), jnp.float32),
        grid=(nbb, L),
        in_specs=in_specs,
        out_specs=act_spec,
        compiler_params=pltpu.CompilerParams(
            dimension_semantics=("parallel", "arbitrary"),
            vmem_limit_bytes=48 * 1024 * 1024),
        cost_estimate=cost,
    )(h, params['pre_ln_w'], params['pre_ln_b'], *layer_args)


def head(pooled, gw, gb, wc_pad, bc_pad):
    b = pooled.shape[0]
    ncp = wc_pad.shape[1]
    return _vmem_call(_head_kernel,
                      jax.ShapeDtypeStruct((b, ncp), jnp.float32),
                      pooled, gw, gb, wc_pad, bc_pad)


def clip_finetune_forward(x, params, *, patch, heads, num_classes):
    """x: (B, C, H, W) float32 (NCHW like PyTorch). Returns (B, num_classes)."""
    B, C, H, W = x.shape
    P = patch
    gh, gw = H // P, W // P
    np_ = gh * gw
    # unfold to patch vectors ordered (c, ph, pw) == Conv2d weight flattening order
    patches = (x.reshape(B, C, gh, P, gw, P)
                .transpose(0, 2, 4, 1, 3, 5)
                .reshape(B * np_, C * P * P))
    pe = patch_embed(patches.astype(jnp.bfloat16), params['patch_w'])   # (B*Np, D)
    D = pe.shape[-1]
    pe = pe.reshape(B, np_, D)
    cls = jnp.broadcast_to(params['class_emb'][None, None, :], (B, 1, D))
    h = jnp.concatenate([cls, pe], axis=1) + params['pos_emb'][None, :, :]
    S = np_ + 1
    S_pad = _round_up(S, 8)
    h = jnp.pad(h, ((0, 0), (0, S_pad - S), (0, 0)))         # pad token axis
    h = encoder(h, params, heads=heads, s_real=S)
    pooled = h[:, 0, :]                                      # CLS token
    logits = head(pooled, params['post_ln_w'], params['post_ln_b'],
                  params['cls_w_pad'], params['cls_b_pad'])
    return logits[:, :num_classes]


# ----------------------- deterministic parameter init ----------------------
# Linear weights stored as (in, out) in bf16; biases / LN params stay f32.


def init_params(key, *, D, heads, layers, inter, patch, channels, img, num_classes):
    S = (img // patch) ** 2 + 1
    K = channels * patch * patch
    ks = jax.random.split(key, 8 + layers)

    def nrm(k, shape, scale=0.02):
        return scale * jax.random.normal(k, shape, dtype=jnp.float32)

    params = {
        'patch_w': nrm(ks[0], (K, D)).astype(jnp.bfloat16),
        'class_emb': nrm(ks[1], (D,)),
        'pos_emb': nrm(ks[2], (S, D)),
        'pre_ln_w': 1.0 + nrm(ks[3], (1, D), 0.1),
        'pre_ln_b': nrm(ks[4], (1, D), 0.1),
        'post_ln_w': 1.0 + nrm(ks[5], (1, D), 0.1),
        'post_ln_b': nrm(ks[6], (1, D), 0.1),
        'cls_w': nrm(ks[7], (D, num_classes)).astype(jnp.bfloat16),
        'cls_b': jnp.zeros((1, num_classes), jnp.float32),
        'layers': [],
    }
    for l in range(layers):
        lk = jax.random.split(ks[8 + l], 16)
        params['layers'].append({
            'ln1_w': 1.0 + nrm(lk[0], (1, D), 0.1), 'ln1_b': nrm(lk[1], (1, D), 0.1),
            'wq': nrm(lk[2], (D, D)).astype(jnp.bfloat16), 'bq': nrm(lk[3], (1, D)),
            'wk': nrm(lk[4], (D, D)).astype(jnp.bfloat16), 'bk': nrm(lk[5], (1, D)),
            'wv': nrm(lk[6], (D, D)).astype(jnp.bfloat16), 'bv': nrm(lk[7], (1, D)),
            'wo': nrm(lk[8], (D, D)).astype(jnp.bfloat16), 'bo': nrm(lk[9], (1, D)),
            'ln2_w': 1.0 + nrm(lk[10], (1, D), 0.1), 'ln2_b': nrm(lk[11], (1, D), 0.1),
            'w1': nrm(lk[12], (D, inter)).astype(jnp.bfloat16), 'b1': nrm(lk[13], (1, inter)),
            'w2': nrm(lk[14], (inter, D)).astype(jnp.bfloat16), 'b2': nrm(lk[15], (1, D)),
        })
    # Stacked (leading L axis) copies for the fused encoder kernel.
    stack = {k: jnp.stack([lp[k] for lp in params['layers']], axis=0)
             for k in LAYER_KEYS}
    params['stack'] = stack
    # Lane-padded classifier for dense stores; sliced back outside the kernel.
    ncp = _round_up(num_classes, 128)
    params['cls_w_pad'] = (jnp.zeros((D, ncp), jnp.bfloat16)
                           .at[:, :num_classes].set(params['cls_w']))
    params['cls_b_pad'] = (jnp.zeros((1, ncp), jnp.float32)
                           .at[:, :num_classes].set(params['cls_b']))
    return params


# ------------------------- pure-JAX reference (check) ----------------------


def _ref_ln(x, w, b):
    mu = x.mean(-1, keepdims=True)
    var = ((x - mu) ** 2).mean(-1, keepdims=True)
    return (x - mu) / jnp.sqrt(var + EPS) * w + b


def reference_forward(x, params, *, patch, heads):
    B, C, H, W = x.shape
    P = patch
    gh, gw = H // P, W // P
    patches = (x.reshape(B, C, gh, P, gw, P)
                .transpose(0, 2, 4, 1, 3, 5)
                .reshape(B, gh * gw, C * P * P))
    pe = patches @ params['patch_w']
    D = pe.shape[-1]
    cls = jnp.broadcast_to(params['class_emb'][None, None, :], (B, 1, D))
    h = jnp.concatenate([cls, pe], axis=1) + params['pos_emb'][None]
    h = _ref_ln(h, params['pre_ln_w'], params['pre_ln_b'])
    head_dim = D // heads
    scale = head_dim ** -0.5
    for lp in params['layers']:
        res = h
        xl = _ref_ln(h, lp['ln1_w'], lp['ln1_b'])
        q = (xl @ lp['wq'] + lp['bq']).reshape(B, -1, heads, head_dim).transpose(0, 2, 1, 3)
        k = (xl @ lp['wk'] + lp['bk']).reshape(B, -1, heads, head_dim).transpose(0, 2, 1, 3)
        v = (xl @ lp['wv'] + lp['bv']).reshape(B, -1, heads, head_dim).transpose(0, 2, 1, 3)
        s = jnp.einsum('bhqd,bhkd->bhqk', q * scale, k)
        p = jax.nn.softmax(s, axis=-1)
        ctx = jnp.einsum('bhqk,bhkd->bhqd', p, v).transpose(0, 2, 1, 3).reshape(B, -1, D)
        h = res + ctx @ lp['wo'] + lp['bo']
        res = h
        xl = _ref_ln(h, lp['ln2_w'], lp['ln2_b'])
        m = xl @ lp['w1'] + lp['b1']
        m = m * jax.nn.sigmoid(1.702 * m)
        h = res + m @ lp['w2'] + lp['b2']
    pooled = _ref_ln(h[:, 0, :], params['post_ln_w'], params['post_ln_b'])
    return pooled @ params['cls_w'] + params['cls_b']


# ----------------------------------- main -----------------------------------

if __name__ == "__main__":
    B, C, IMG, PATCH = 2, 3, 16, 8
    D, HEADS, LAYERS, INTER, NUM_CLASSES = 32, 4, 2, 64, 5

    key = jax.random.PRNGKey(0)
    pkey, xkey = jax.random.split(key)
    params = init_params(pkey, D=D, heads=HEADS, layers=LAYERS, inter=INTER,
                         patch=PATCH, channels=C, img=IMG, num_classes=NUM_CLASSES)
    x = jax.random.normal(xkey, (B, C, IMG, IMG), dtype=jnp.float32)

    fwd = jax.jit(functools.partial(clip_finetune_forward, patch=PATCH,
                                    heads=HEADS, num_classes=NUM_CLASSES))
    logits = jax.block_until_ready(fwd(x, params))

    assert logits.shape == (B, NUM_CLASSES)
    assert bool(jnp.all(jnp.isfinite(logits)))

    ref = reference_forward(x, params, patch=PATCH, heads=HEADS)
    assert bool(jnp.allclose(logits, ref, rtol=5e-2, atol=5e-3)), (
        f"mismatch: max abs diff {float(jnp.max(jnp.abs(logits - ref)))}")

    print("KERNEL_OK")
</pallas_src>

<mosaic_0001>
module attributes {stable_mosaic.version = 11 : i64} {
  func.func @_patch_embed_kernel(%arg0: memref<8x192xbf16, #tpu.memory_space<vmem>>, %arg1: memref<192x32xbf16, #tpu.memory_space<vmem>>, %arg2: memref<8x32xf32, #tpu.memory_space<vmem>>) attributes {dimension_semantics = [], scalar_prefetch = 0 : i64, scratch_operands = 0 : i64, tpu.core_type = #tpu.core_type<tc>} {
    %c0 = arith.constant 0 : index
    %c0_0 = arith.constant 0 : index
    %0 = vector.load %arg0[%c0, %c0_0] : memref<8x192xbf16, #tpu.memory_space<vmem>>, vector<8x192xbf16>
    %c0_1 = arith.constant 0 : index
    %c0_2 = arith.constant 0 : index
    %1 = vector.load %arg1[%c0_1, %c0_2] : memref<192x32xbf16, #tpu.memory_space<vmem>>, vector<192x32xbf16>
    %cst = arith.constant dense<0.000000e+00> : vector<8x32xf32>
    %2 = tpu.matmul %0, %1, %cst {dimension_numbers = #tpu.dot_dimension_numbers<[1], [0], [0], [1], [0, 0, 1, 1], [], []>} : vector<8x192xbf16>, vector<192x32xbf16>, vector<8x32xf32> -> vector<8x32xf32>
    %c0_3 = arith.constant 0 : index
    %c0_4 = arith.constant 0 : index
    %3 = vector.load %arg2[%c0_3, %c0_4] : memref<8x32xf32, #tpu.memory_space<vmem>>, vector<8x32xf32>
    tpu.vector_store %arg2[%c0_3, %c0_4], %2 {strides = array<i32>} : memref<8x32xf32, #tpu.memory_space<vmem>>, vector<8x32xf32>,
    return
  }
}

module attributes {stable_mosaic.version = 11 : i64} {
  func.func @_head_kernel(%arg0: memref<2x32xf32, #tpu.memory_space<vmem>>, %arg1: memref<1x32xf32, #tpu.memory_space<vmem>>, %arg2: memref<1x32xf32, #tpu.memory_space<vmem>>, %arg3: memref<32x128xbf16, #tpu.memory_space<vmem>>, %arg4: memref<1x128xf32, #tpu.memory_space<vmem>>, %arg5: memref<2x128xf32, #tpu.memory_space<vmem>>) attributes {dimension_semantics = [], scalar_prefetch = 0 : i64, scratch_operands = 0 : i64, tpu.core_type = #tpu.core_type<tc>} {
    %c0 = arith.constant 0 : index
    %c0_0 = arith.constant 0 : index
    %0 = vector.load %arg0[%c0, %c0_0] : memref<2x32xf32, #tpu.memory_space<vmem>>, vector<2x32xf32>
    %c0_1 = arith.constant 0 : index
    %c0_2 = arith.constant 0 : index
    %1 = vector.load %arg1[%c0_1, %c0_2] : memref<1x32xf32, #tpu.memory_space<vmem>>, vector<1x32xf32>
    %c0_3 = arith.constant 0 : index
    %c0_4 = arith.constant 0 : index
    %2 = vector.load %arg2[%c0_3, %c0_4] : memref<1x32xf32, #tpu.memory_space<vmem>>, vector<1x32xf32>
    %cst = arith.constant dense<0.000000e+00> : vector<2xf32>
    %3 = vector.multi_reduction <add>, %0, %cst [1] : vector<2x32xf32> to vector<2xf32>
    %4 = vector.shape_cast %3 : vector<2xf32> to vector<2x1xf32>
    %cst_5 = arith.constant 3.200000e+01 : f32
    %5 = vector.broadcast %cst_5 : f32 to vector<2x1xf32>
    %6 = arith.divf %4, %5 : vector<2x1xf32>
    %7 = vector.broadcast %6 : vector<2x1xf32> to vector<2x32xf32>
    %8 = arith.subf %0, %7 : vector<2x32xf32>
    %9 = arith.mulf %8, %8 : vector<2x32xf32>
    %cst_6 = arith.constant dense<0.000000e+00> : vector<2xf32>
    %10 = vector.multi_reduction <add>, %9, %cst_6 [1] : vector<2x32xf32> to vector<2xf32>
    %11 = vector.shape_cast %10 : vector<2xf32> to vector<2x1xf32>
    %cst_7 = arith.constant 3.200000e+01 : f32
    %12 = vector.broadcast %cst_7 : f32 to vector<2x1xf32>
    %13 = arith.divf %11, %12 : vector<2x1xf32>
    %14 = vector.broadcast %6 : vector<2x1xf32> to vector<2x32xf32>
    %15 = arith.subf %0, %14 : vector<2x32xf32>
    %cst_8 = arith.constant 9.99999974E-6 : f32
    %16 = vector.broadcast %cst_8 : f32 to vector<2x1xf32>
    %17 = arith.addf %13, %16 : vector<2x1xf32>
    %18 = math.rsqrt %17 : vector<2x1xf32>
    %19 = vector.broadcast %18 : vector<2x1xf32> to vector<2x32xf32>
    %20 = arith.mulf %15, %19 : vector<2x32xf32>
    %21 = vector.broadcast %1 : vector<1x32xf32> to vector<2x32xf32>
    %22 = arith.mulf %20, %21 : vector<2x32xf32>
    %23 = vector.broadcast %2 : vector<1x32xf32> to vector<2x32xf32>
    %24 = arith.addf %22, %23 : vector<2x32xf32>
    %25 = arith.truncf %24 : vector<2x32xf32> to vector<2x32xbf16>
    %c0_9 = arith.constant 0 : index
    %c0_10 = arith.constant 0 : index
    %26 = vector.load %arg3[%c0_9, %c0_10] : memref<32x128xbf16, #tpu.memory_space<vmem>>, vector<32x128xbf16>
    %cst_11 = arith.constant dense<0.000000e+00> : vector<2x128xf32>
    %27 = tpu.matmul %25, %26, %cst_11 {dimension_numbers = #tpu.dot_dimension_numbers<[1], [0], [0], [1], [0, 0, 1, 1], [], []>} : vector<2x32xbf16>, vector<32x128xbf16>, vector<2x128xf32> -> vector<2x128xf32>
    %c0_12 = arith.constant 0 : index
    %c0_13 = arith.constant 0 : index
    %28 = vector.load %arg4[%c0_12, %c0_13] : memref<1x128xf32, #tpu.memory_space<vmem>>, vector<1x128xf32>
    %29 = vector.broadcast %28 : vector<1x128xf32> to vector<2x128xf32>
    %30 = arith.addf %27, %29 : vector<2x128xf32>
    %c0_14 = arith.constant 0 : index
    %c0_15 = arith.constant 0 : index
    %31 = vector.load %arg5[%c0_14, %c0_15] : memref<2x128xf32, #tpu.memory_space<vmem>>, vector<2x128xf32>
    tpu.vector_store %arg5[%c0_14, %c0_15], %30 {strides = array<i32>} : memref<2x128xf32, #tpu.memory_space<vmem>>, vector<2x128xf32>,
    return
  }
}

module attributes {stable_mosaic.version = 11 : i64} {
  func.func @_encoder_kernel(%arg0: i32, %arg1: i32, %arg2: memref<2x8x32xf32, #tpu.memory_space<vmem>>, %arg3: memref<1x32xf32, #tpu.memory_space<vmem>>, %arg4: memref<1x32xf32, #tpu.memory_space<vmem>>, %arg5: memref<1x1x32xf32, #tpu.memory_space<vmem>>, %arg6: memref<1x1x32xf32, #tpu.memory_space<vmem>>, %arg7: memref<1x32x32xbf16, #tpu.memory_space<vmem>>, %arg8: memref<1x1x32xf32, #tpu.memory_space<vmem>>, %arg9: memref<1x32x32xbf16, #tpu.memory_space<vmem>>, %arg10: memref<1x1x32xf32, #tpu.memory_space<vmem>>, %arg11: memref<1x32x32xbf16, #tpu.memory_space<vmem>>, %arg12: memref<1x1x32xf32, #tpu.memory_space<vmem>>, %arg13: memref<1x32x32xbf16, #tpu.memory_space<vmem>>, %arg14: memref<1x1x32xf32, #tpu.memory_space<vmem>>, %arg15: memref<1x1x32xf32, #tpu.memory_space<vmem>>, %arg16: memref<1x1x32xf32, #tpu.memory_space<vmem>>, %arg17: memref<1x32x64xbf16, #tpu.memory_space<vmem>>, %arg18: memref<1x1x64xf32, #tpu.memory_space<vmem>>, %arg19: memref<1x64x32xbf16, #tpu.memory_space<vmem>>, %arg20: memref<1x1x32xf32, #tpu.memory_space<vmem>>, %arg21: memref<2x8x32xf32, #tpu.memory_space<vmem>>) attributes {dimension_semantics = [#tpu.dimension_semantics<parallel>, #tpu.dimension_semantics<arbitrary>], iteration_bounds = array<i64: 1, 2>, scalar_prefetch = 0 : i64, scratch_operands = 0 : i64, tpu.core_type = #tpu.core_type<tc>, window_params = [{transform_indices = @transform_0, window_bounds = array<i64: 2, 8, 32>}, {pipeline_mode = #tpu.pipeline_mode<synchronous>, transform_indices = @transform_1, window_bounds = array<i64: 1, 32>}, {pipeline_mode = #tpu.pipeline_mode<synchronous>, transform_indices = @transform_2, window_bounds = array<i64: 1, 32>}, {transform_indices = @transform_3, window_bounds = array<i64: 1, 1, 32>}, {transform_indices = @transform_4, window_bounds = array<i64: 1, 1, 32>}, {transform_indices = @transform_5, window_bounds = array<i64: 1, 32, 32>}, {transform_indices = @transform_6, window_bounds = array<i64: 1, 1, 32>}, {transform_indices = @transform_7, window_bounds = array<i64: 1, 32, 32>}, {transform_indices = @transform_8, window_bounds = array<i64: 1, 1, 32>}, {transform_indices = @transform_9, window_bounds = array<i64: 1, 32, 32>}, {transform_indices = @transform_10, window_bounds = array<i64: 1, 1, 32>}, {transform_indices = @transform_11, window_bounds = array<i64: 1, 32, 32>}, {transform_indices = @transform_12, window_bounds = array<i64: 1, 1, 32>}, {transform_indices = @transform_13, window_bounds = array<i64: 1, 1, 32>}, {transform_indices = @transform_14, window_bounds = array<i64: 1, 1, 32>}, {transform_indices = @transform_15, window_bounds = array<i64: 1, 32, 64>}, {transform_indices = @transform_16, window_bounds = array<i64: 1, 1, 64>}, {transform_indices = @transform_17, window_bounds = array<i64: 1, 64, 32>}, {transform_indices = @transform_18, window_bounds = array<i64: 1, 1, 32>}, {transform_indices = @transform_19, window_bounds = array<i64: 2, 8, 32>}]} {
    %c0_i32 = arith.constant 0 : i32
    %0 = arith.cmpi eq, %arg1, %c0_i32 : i32
    %1 = arith.extui %0 : i1 to i32
    %c0_i32_0 = arith.constant 0 : i32
    %2 = arith.cmpi ne, %1, %c0_i32_0 : i32
    scf.if %2 {
      %c0_77 = arith.constant 0 : index
      %c0_78 = arith.constant 0 : index
      %c0_79 = arith.constant 0 : index
      %156 = vector.load %arg2[%c0_77, %c0_78, %c0_79] : memref<2x8x32xf32, #tpu.memory_space<vmem>>, vector<2x8x32xf32>
      %c0_80 = arith.constant 0 : index
      %c0_81 = arith.constant 0 : index
      %157 = vector.load %arg3[%c0_80, %c0_81] : memref<1x32xf32, #tpu.memory_space<vmem>>, vector<1x32xf32>
      %c0_82 = arith.constant 0 : index
      %c0_83 = arith.constant 0 : index
      %158 = vector.load %arg4[%c0_82, %c0_83] : memref<1x32xf32, #tpu.memory_space<vmem>>, vector<1x32xf32>
      %cst_84 = arith.constant dense<0.000000e+00> : vector<2x8xf32>
      %159 = vector.multi_reduction <add>, %156, %cst_84 [2] : vector<2x8x32xf32> to vector<2x8xf32>
      %160 = vector.shape_cast %159 : vector<2x8xf32> to vector<2x8x1xf32>
      %cst_85 = arith.constant 3.200000e+01 : f32
      %161 = vector.broadcast %cst_85 : f32 to vector<2x8x1xf32>
      %162 = arith.divf %160, %161 : vector<2x8x1xf32>
      %163 = vector.broadcast %162 : vector<2x8x1xf32> to vector<2x8x32xf32>
      %164 = arith.subf %156, %163 : vector<2x8x32xf32>
      %165 = arith.mulf %164, %164 : vector<2x8x32xf32>
      %cst_86 = arith.constant dense<0.000000e+00> : vector<2x8xf32>
      %166 = vector.multi_reduction <add>, %165, %cst_86 [2] : vector<2x8x32xf32> to vector<2x8xf32>
      %167 = vector.shape_cast %166 : vector<2x8xf32> to vector<2x8x1xf32>
      %cst_87 = arith.constant 3.200000e+01 : f32
      %168 = vector.broadcast %cst_87 : f32 to vector<2x8x1xf32>
      %169 = arith.divf %167, %168 : vector<2x8x1xf32>
      %170 = vector.broadcast %162 : vector<2x8x1xf32> to vector<2x8x32xf32>
      %171 = arith.subf %156, %170 : vector<2x8x32xf32>
      %cst_88 = arith.constant 9.99999974E-6 : f32
      %172 = vector.broadcast %cst_88 : f32 to vector<2x8x1xf32>
      %173 = arith.addf %169, %172 : vector<2x8x1xf32>
      %174 = math.rsqrt %173 : vector<2x8x1xf32>
      %175 = vector.broadcast %174 : vector<2x8x1xf32> to vector<2x8x32xf32>
      %176 = arith.mulf %171, %175 : vector<2x8x32xf32>
      %177 = vector.shape_cast %157 : vector<1x32xf32> to vector<1x1x32xf32>
      %178 = vector.broadcast %177 : vector<1x1x32xf32> to vector<2x8x32xf32>
      %179 = arith.mulf %176, %178 : vector<2x8x32xf32>
      %180 = vector.shape_cast %158 : vector<1x32xf32> to vector<1x1x32xf32>
      %181 = vector.broadcast %180 : vector<1x1x32xf32> to vector<2x8x32xf32>
      %182 = arith.addf %179, %181 : vector<2x8x32xf32>
      %c0_89 = arith.constant 0 : index
      %c0_90 = arith.constant 0 : index
      %c0_91 = arith.constant 0 : index
      %183 = vector.load %arg21[%c0_89, %c0_90, %c0_91] : memref<2x8x32xf32, #tpu.memory_space<vmem>>, vector<2x8x32xf32>
      tpu.vector_store %arg21[%c0_89, %c0_90, %c0_91], %182 {strides = array<i32>} : memref<2x8x32xf32, #tpu.memory_space<vmem>>, vector<2x8x32xf32>,
    } else {
    }
    %c0 = arith.constant 0 : index
    %c0_1 = arith.constant 0 : index
    %c0_2 = arith.constant 0 : index
    %3 = vector.load %arg21[%c0, %c0_1, %c0_2] : memref<2x8x32xf32, #tpu.memory_space<vmem>>, vector<2x8x32xf32>
    %c0_3 = arith.constant 0 : index
    %c0_4 = arith.constant 0 : index
    %c0_5 = arith.constant 0 : index
    %4 = vector.load %arg5[%c0_3, %c0_4, %c0_5] : memref<1x1x32xf32, #tpu.memory_space<vmem>>, vector<1x1x32xf32>
    %5 = vector.shape_cast %4 : vector<1x1x32xf32> to vector<1x32xf32>
    %c0_6 = arith.constant 0 : index
    %c0_7 = arith.constant 0 : index
    %c0_8 = arith.constant 0 : index
    %6 = vector.load %arg6[%c0_6, %c0_7, %c0_8] : memref<1x1x32xf32, #tpu.memory_space<vmem>>, vector<1x1x32xf32>
    %7 = vector.shape_cast %6 : vector<1x1x32xf32> to vector<1x32xf32>
    %cst = arith.constant dense<0.000000e+00> : vector<2x8xf32>
    %8 = vector.multi_reduction <add>, %3, %cst [2] : vector<2x8x32xf32> to vector<2x8xf32>
    %9 = vector.shape_cast %8 : vector<2x8xf32> to vector<2x8x1xf32>
    %cst_9 = arith.constant 3.200000e+01 : f32
    %10 = vector.broadcast %cst_9 : f32 to vector<2x8x1xf32>
    %11 = arith.divf %9, %10 : vector<2x8x1xf32>
    %12 = vector.broadcast %11 : vector<2x8x1xf32> to vector<2x8x32xf32>
    %13 = arith.subf %3, %12 : vector<2x8x32xf32>
    %14 = arith.mulf %13, %13 : vector<2x8x32xf32>
    %cst_10 = arith.constant dense<0.000000e+00> : vector<2x8xf32>
    %15 = vector.multi_reduction <add>, %14, %cst_10 [2] : vector<2x8x32xf32> to vector<2x8xf32>
    %16 = vector.shape_cast %15 : vector<2x8xf32> to vector<2x8x1xf32>
    %cst_11 = arith.constant 3.200000e+01 : f32
    %17 = vector.broadcast %cst_11 : f32 to vector<2x8x1xf32>
    %18 = arith.divf %16, %17 : vector<2x8x1xf32>
    %19 = vector.broadcast %11 : vector<2x8x1xf32> to vector<2x8x32xf32>
    %20 = arith.subf %3, %19 : vector<2x8x32xf32>
    %cst_12 = arith.constant 9.99999974E-6 : f32
    %21 = vector.broadcast %cst_12 : f32 to vector<2x8x1xf32>
    %22 = arith.addf %18, %21 : vector<2x8x1xf32>
    %23 = math.rsqrt %22 : vector<2x8x1xf32>
    %24 = vector.broadcast %23 : vector<2x8x1xf32> to vector<2x8x32xf32>
    %25 = arith.mulf %20, %24 : vector<2x8x32xf32>
    %26 = vector.shape_cast %5 : vector<1x32xf32> to vector<1x1x32xf32>
    %27 = vector.broadcast %26 : vector<1x1x32xf32> to vector<2x8x32xf32>
    %28 = arith.mulf %25, %27 : vector<2x8x32xf32>
    %29 = vector.shape_cast %7 : vector<1x32xf32> to vector<1x1x32xf32>
    %30 = vector.broadcast %29 : vector<1x1x32xf32> to vector<2x8x32xf32>
    %31 = arith.addf %28, %30 : vector<2x8x32xf32>
    %32 = vector.shape_cast %31 : vector<2x8x32xf32> to vector<16x32xf32>
    %33 = arith.truncf %32 : vector<16x32xf32> to vector<16x32xbf16>
    %c0_13 = arith.constant 0 : index
    %c0_14 = arith.constant 0 : index
    %c0_15 = arith.constant 0 : index
    %34 = vector.load %arg7[%c0_13, %c0_14, %c0_15] : memref<1x32x32xbf16, #tpu.memory_space<vmem>>, vector<1x32x32xbf16>
    %35 = vector.shape_cast %34 : vector<1x32x32xbf16> to vector<32x32xbf16>
    %cst_16 = arith.constant dense<0.000000e+00> : vector<16x32xf32>
    %36 = tpu.matmul %33, %35, %cst_16 {dimension_numbers = #tpu.dot_dimension_numbers<[1], [0], [0], [1], [0, 0, 1, 1], [], []>} : vector<16x32xbf16>, vector<32x32xbf16>, vector<16x32xf32> -> vector<16x32xf32>
    %c0_17 = arith.constant 0 : index
    %c0_18 = arith.constant 0 : index
    %c0_19 = arith.constant 0 : index
    %37 = vector.load %arg8[%c0_17, %c0_18, %c0_19] : memref<1x1x32xf32, #tpu.memory_space<vmem>>, vector<1x1x32xf32>
    %38 = vector.shape_cast %37 : vector<1x1x32xf32> to vector<1x32xf32>
    %39 = vector.broadcast %38 : vector<1x32xf32> to vector<16x32xf32>
    %40 = arith.addf %36, %39 : vector<16x32xf32>
    %c0_20 = arith.constant 0 : index
    %c0_21 = arith.constant 0 : index
    %c0_22 = arith.constant 0 : index
    %41 = vector.load %arg9[%c0_20, %c0_21, %c0_22] : memref<1x32x32xbf16, #tpu.memory_space<vmem>>, vector<1x32x32xbf16>
    %42 = vector.shape_cast %41 : vector<1x32x32xbf16> to vector<32x32xbf16>
    %cst_23 = arith.constant dense<0.000000e+00> : vector<16x32xf32>
    %43 = tpu.matmul %33, %42, %cst_23 {dimension_numbers = #tpu.dot_dimension_numbers<[1], [0], [0], [1], [0, 0, 1, 1], [], []>} : vector<16x32xbf16>, vector<32x32xbf16>, vector<16x32xf32> -> vector<16x32xf32>
    %c0_24 = arith.constant 0 : index
    %c0_25 = arith.constant 0 : index
    %c0_26 = arith.constant 0 : index
    %44 = vector.load %arg10[%c0_24, %c0_25, %c0_26] : memref<1x1x32xf32, #tpu.memory_space<vmem>>, vector<1x1x32xf32>
    %45 = vector.shape_cast %44 : vector<1x1x32xf32> to vector<1x32xf32>
    %46 = vector.broadcast %45 : vector<1x32xf32> to vector<16x32xf32>
    %47 = arith.addf %43, %46 : vector<16x32xf32>
    %c0_27 = arith.constant 0 : index
    %c0_28 = arith.constant 0 : index
    %c0_29 = arith.constant 0 : index
    %48 = vector.load %arg11[%c0_27, %c0_28, %c0_29] : memref<1x32x32xbf16, #tpu.memory_space<vmem>>, vector<1x32x32xbf16>
    %49 = vector.shape_cast %48 : vector<1x32x32xbf16> to vector<32x32xbf16>
    %cst_30 = arith.constant dense<0.000000e+00> : vector<16x32xf32>
    %50 = tpu.matmul %33, %49, %cst_30 {dimension_numbers = #tpu.dot_dimension_numbers<[1], [0], [0], [1], [0, 0, 1, 1], [], []>} : vector<16x32xbf16>, vector<32x32xbf16>, vector<16x32xf32> -> vector<16x32xf32>
    %c0_31 = arith.constant 0 : index
    %c0_32 = arith.constant 0 : index
    %c0_33 = arith.constant 0 : index
    %51 = vector.load %arg12[%c0_31, %c0_32, %c0_33] : memref<1x1x32xf32, #tpu.memory_space<vmem>>, vector<1x1x32xf32>
    %52 = vector.shape_cast %51 : vector<1x1x32xf32> to vector<1x32xf32>
    %53 = vector.broadcast %52 : vector<1x32xf32> to vector<16x32xf32>
    %54 = arith.addf %50, %53 : vector<16x32xf32>
    %cst_34 = arith.constant 0.353553385 : f32
    %55 = vector.broadcast %cst_34 : f32 to vector<16x32xf32>
    %56 = arith.mulf %40, %55 : vector<16x32xf32>
    %57 = vector.shape_cast %56 : vector<16x32xf32> to vector<2x8x4x8xf32>
    %58 = tpu.transpose %57, [0, 2, 1, 3] : vector<2x8x4x8xf32> -> vector<2x4x8x8xf32>
    %59 = vector.shape_cast %58 : vector<2x4x8x8xf32> to vector<8x8x8xf32>
    %60 = arith.truncf %59 : vector<8x8x8xf32> to vector<8x8x8xbf16>
    %61 = vector.shape_cast %47 : vector<16x32xf32> to vector<2x8x4x8xf32>
    %62 = tpu.transpose %61, [0, 2, 1, 3] : vector<2x8x4x8xf32> -> vector<2x4x8x8xf32>
    %63 = vector.shape_cast %62 : vector<2x4x8x8xf32> to vector<8x8x8xf32>
    %64 = arith.truncf %63 : vector<8x8x8xf32> to vector<8x8x8xbf16>
    %65 = vector.shape_cast %54 : vector<16x32xf32> to vector<2x8x4x8xf32>
    %66 = tpu.transpose %65, [0, 2, 1, 3] : vector<2x8x4x8xf32> -> vector<2x4x8x8xf32>
    %67 = vector.shape_cast %66 : vector<2x4x8x8xf32> to vector<8x8x8xf32>
    %68 = arith.truncf %67 : vector<8x8x8xf32> to vector<8x8x8xbf16>
    "tpu.trace_start"() <{level = 10 : i32, message = "bqd,bkd->bqk"}> : () -> ()
    %cst_35 = arith.constant dense<0.000000e+00> : vector<8x8x8xf32>
    %69 = tpu.matmul %60, %64, %cst_35 {dimension_numbers = #tpu.dot_dimension_numbers<[2], [2], [1], [1], [0, 0, 0, 1, 1, 1], [0], [0]>} : vector<8x8x8xbf16>, vector<8x8x8xbf16>, vector<8x8x8xf32> -> vector<8x8x8xf32>
    "tpu.trace_stop"() : () -> ()
    %70 = tpu.iota {dimensions = array<i32: 2>} : vector<8x8x8xi32>
    %c5_i32 = arith.constant 5 : i32
    %71 = vector.broadcast %c5_i32 : i32 to vector<8x8x8xi32>
    %72 = arith.cmpi slt, %70, %71 : vector<8x8x8xi32>
    %cst_36 = arith.constant -1.000000e+30 : f32
    %73 = vector.broadcast %cst_36 : f32 to vector<8x8x8xf32>
    %74 = arith.select %72, %69, %73 : vector<8x8x8xi1>, vector<8x8x8xf32>
    %cst_37 = arith.constant dense<0xFF800000> : vector<8x8xf32>
    %75 = vector.multi_reduction <maximumf>, %74, %cst_37 [2] : vector<8x8x8xf32> to vector<8x8xf32>
    %76 = vector.shape_cast %75 : vector<8x8xf32> to vector<8x8x1xf32>
    %77 = vector.broadcast %76 : vector<8x8x1xf32> to vector<8x8x8xf32>
    %78 = arith.subf %74, %77 : vector<8x8x8xf32>
    %79 = math.exp %78 : vector<8x8x8xf32>
    %cst_38 = arith.constant dense<0.000000e+00> : vector<8x8xf32>
    %80 = vector.multi_reduction <add>, %79, %cst_38 [2] : vector<8x8x8xf32> to vector<8x8xf32>
    %81 = vector.shape_cast %80 : vector<8x8xf32> to vector<8x8x1xf32>
    %82 = tpu.reciprocal %81 {approx = true} : vector<8x8x1xf32> -> vector<8x8x1xf32>
    %83 = vector.broadcast %82 : vector<8x8x1xf32> to vector<8x8x8xf32>
    %84 = arith.mulf %79, %83 : vector<8x8x8xf32>
    %85 = arith.truncf %84 : vector<8x8x8xf32> to vector<8x8x8xbf16>
    "tpu.trace_start"() <{level = 10 : i32, message = "bqk,bkd->bqd"}> : () -> ()
    %cst_39 = arith.constant dense<0.000000e+00> : vector<8x8x8xf32>
    %86 = tpu.matmul %85, %68, %cst_39 {dimension_numbers = #tpu.dot_dimension_numbers<[2], [1], [1], [2], [0, 0, 0, 1, 1, 2], [0], [0]>} : vector<8x8x8xbf16>, vector<8x8x8xbf16>, vector<8x8x8xf32> -> vector<8x8x8xf32>
    "tpu.trace_stop"() : () -> ()
    %87 = vector.shape_cast %86 : vector<8x8x8xf32> to vector<2x4x8x8xf32>
    %88 = tpu.transpose %87, [0, 2, 1, 3] : vector<2x4x8x8xf32> -> vector<2x8x4x8xf32>
    %89 = vector.shape_cast %88 : vector<2x8x4x8xf32> to vector<16x32xf32>
    %90 = arith.truncf %89 : vector<16x32xf32> to vector<16x32xbf16>
    %c0_40 = arith.constant 0 : index
    %c0_41 = arith.constant 0 : index
    %c0_42 = arith.constant 0 : index
    %91 = vector.load %arg13[%c0_40, %c0_41, %c0_42] : memref<1x32x32xbf16, #tpu.memory_space<vmem>>, vector<1x32x32xbf16>
    %92 = vector.shape_cast %91 : vector<1x32x32xbf16> to vector<32x32xbf16>
    %cst_43 = arith.constant dense<0.000000e+00> : vector<16x32xf32>
    %93 = tpu.matmul %90, %92, %cst_43 {dimension_numbers = #tpu.dot_dimension_numbers<[1], [0], [0], [1], [0, 0, 1, 1], [], []>} : vector<16x32xbf16>, vector<32x32xbf16>, vector<16x32xf32> -> vector<16x32xf32>
    %c0_44 = arith.constant 0 : index
    %c0_45 = arith.constant 0 : index
    %c0_46 = arith.constant 0 : index
    %94 = vector.load %arg14[%c0_44, %c0_45, %c0_46] : memref<1x1x32xf32, #tpu.memory_space<vmem>>, vector<1x1x32xf32>
    %95 = vector.shape_cast %94 : vector<1x1x32xf32> to vector<1x32xf32>
    %96 = vector.broadcast %95 : vector<1x32xf32> to vector<16x32xf32>
    %97 = arith.addf %93, %96 : vector<16x32xf32>
    %98 = vector.shape_cast %97 : vector<16x32xf32> to vector<2x8x32xf32>
    %99 = arith.addf %3, %98 : vector<2x8x32xf32>
    %c0_47 = arith.constant 0 : index
    %c0_48 = arith.constant 0 : index
    %c0_49 = arith.constant 0 : index
    %100 = vector.load %arg15[%c0_47, %c0_48, %c0_49] : memref<1x1x32xf32, #tpu.memory_space<vmem>>, vector<1x1x32xf32>
    %101 = vector.shape_cast %100 : vector<1x1x32xf32> to vector<1x32xf32>
    %c0_50 = arith.constant 0 : index
    %c0_51 = arith.constant 0 : index
    %c0_52 = arith.constant 0 : index
    %102 = vector.load %arg16[%c0_50, %c0_51, %c0_52] : memref<1x1x32xf32, #tpu.memory_space<vmem>>, vector<1x1x32xf32>
    %103 = vector.shape_cast %102 : vector<1x1x32xf32> to vector<1x32xf32>
    %cst_53 = arith.constant dense<0.000000e+00> : vector<2x8xf32>
    %104 = vector.multi_reduction <add>, %99, %cst_53 [2] : vector<2x8x32xf32> to vector<2x8xf32>
    %105 = vector.shape_cast %104 : vector<2x8xf32> to vector<2x8x1xf32>
    %cst_54 = arith.constant 3.200000e+01 : f32
    %106 = vector.broadcast %cst_54 : f32 to vector<2x8x1xf32>
    %107 = arith.divf %105, %106 : vector<2x8x1xf32>
    %108 = vector.broadcast %107 : vector<2x8x1xf32> to vector<2x8x32xf32>
    %109 = arith.subf %99, %108 : vector<2x8x32xf32>
    %110 = arith.mulf %109, %109 : vector<2x8x32xf32>
    %cst_55 = arith.constant dense<0.000000e+00> : vector<2x8xf32>
    %111 = vector.multi_reduction <add>, %110, %cst_55 [2] : vector<2x8x32xf32> to vector<2x8xf32>
    %112 = vector.shape_cast %111 : vector<2x8xf32> to vector<2x8x1xf32>
    %cst_56 = arith.constant 3.200000e+01 : f32
    %113 = vector.broadcast %cst_56 : f32 to vector<2x8x1xf32>
    %114 = arith.divf %112, %113 : vector<2x8x1xf32>
    %115 = vector.broadcast %107 : vector<2x8x1xf32> to vector<2x8x32xf32>
    %116 = arith.subf %99, %115 : vector<2x8x32xf32>
    %cst_57 = arith.constant 9.99999974E-6 : f32
    %117 = vector.broadcast %cst_57 : f32 to vector<2x8x1xf32>
    %118 = arith.addf %114, %117 : vector<2x8x1xf32>
    %119 = math.rsqrt %118 : vector<2x8x1xf32>
    %120 = vector.broadcast %119 : vector<2x8x1xf32> to vector<2x8x32xf32>
    %121 = arith.mulf %116, %120 : vector<2x8x32xf32>
    %122 = vector.shape_cast %101 : vector<1x32xf32> to vector<1x1x32xf32>
    %123 = vector.broadcast %122 : vector<1x1x32xf32> to vector<2x8x32xf32>
    %124 = arith.mulf %121, %123 : vector<2x8x32xf32>
    %125 = vector.shape_cast %103 : vector<1x32xf32> to vector<1x1x32xf32>
    %126 = vector.broadcast %125 : vector<1x1x32xf32> to vector<2x8x32xf32>
    %127 = arith.addf %124, %126 : vector<2x8x32xf32>
    %128 = vector.shape_cast %127 : vector<2x8x32xf32> to vector<16x32xf32>
    %129 = arith.truncf %128 : vector<16x32xf32> to vector<16x32xbf16>
    %c0_58 = arith.constant 0 : index
    %c0_59 = arith.constant 0 : index
    %c0_60 = arith.constant 0 : index
    %130 = vector.load %arg17[%c0_58, %c0_59, %c0_60] : memref<1x32x64xbf16, #tpu.memory_space<vmem>>, vector<1x32x64xbf16>
    %131 = vector.shape_cast %130 : vector<1x32x64xbf16> to vector<32x64xbf16>
    %cst_61 = arith.constant dense<0.000000e+00> : vector<16x64xf32>
    %132 = tpu.matmul %129, %131, %cst_61 {dimension_numbers = #tpu.dot_dimension_numbers<[1], [0], [0], [1], [0, 0, 1, 1], [], []>} : vector<16x32xbf16>, vector<32x64xbf16>, vector<16x64xf32> -> vector<16x64xf32>
    %c0_62 = arith.constant 0 : index
    %c0_63 = arith.constant 0 : index
    %c0_64 = arith.constant 0 : index
    %133 = vector.load %arg18[%c0_62, %c0_63, %c0_64] : memref<1x1x64xf32, #tpu.memory_space<vmem>>, vector<1x1x64xf32>
    %134 = vector.shape_cast %133 : vector<1x1x64xf32> to vector<1x64xf32>
    %135 = vector.broadcast %134 : vector<1x64xf32> to vector<16x64xf32>
    %136 = arith.addf %132, %135 : vector<16x64xf32>
    %cst_65 = arith.constant 1.702000e+00 : f32
    %137 = vector.broadcast %cst_65 : f32 to vector<16x64xf32>
    %138 = arith.mulf %137, %136 : vector<16x64xf32>
    %139 = arith.negf %138 : vector<16x64xf32>
    %140 = math.exp %139 : vector<16x64xf32>
    %cst_66 = arith.constant 1.000000e+00 : f32
    %141 = vector.broadcast %cst_66 : f32 to vector<16x64xf32>
    %142 = arith.addf %141, %140 : vector<16x64xf32>
    %143 = arith.divf %141, %142 : vector<16x64xf32>
    %144 = arith.mulf %136, %143 : vector<16x64xf32>
    %145 = arith.truncf %144 : vector<16x64xf32> to vector<16x64xbf16>
    %c0_67 = arith.constant 0 : index
    %c0_68 = arith.constant 0 : index
    %c0_69 = arith.constant 0 : index
    %146 = vector.load %arg19[%c0_67, %c0_68, %c0_69] : memref<1x64x32xbf16, #tpu.memory_space<vmem>>, vector<1x64x32xbf16>
    %147 = vector.shape_cast %146 : vector<1x64x32xbf16> to vector<64x32xbf16>
    %cst_70 = arith.constant dense<0.000000e+00> : vector<16x32xf32>
    %148 = tpu.matmul %145, %147, %cst_70 {dimension_numbers = #tpu.dot_dimension_numbers<[1], [0], [0], [1], [0, 0, 1, 1], [], []>} : vector<16x64xbf16>, vector<64x32xbf16>, vector<16x32xf32> -> vector<16x32xf32>
    %c0_71 = arith.constant 0 : index
    %c0_72 = arith.constant 0 : index
    %c0_73 = arith.constant 0 : index
    %149 = vector.load %arg20[%c0_71, %c0_72, %c0_73] : memref<1x1x32xf32, #tpu.memory_space<vmem>>, vector<1x1x32xf32>
    %150 = vector.shape_cast %149 : vector<1x1x32xf32> to vector<1x32xf32>
    %151 = vector.broadcast %150 : vector<1x32xf32> to vector<16x32xf32>
    %152 = arith.addf %148, %151 : vector<16x32xf32>
    %153 = vector.shape_cast %152 : vector<16x32xf32> to vector<2x8x32xf32>
    %154 = arith.addf %99, %153 : vector<2x8x32xf32>
    %c0_74 = arith.constant 0 : index
    %c0_75 = arith.constant 0 : index
    %c0_76 = arith.constant 0 : index
    %155 = vector.load %arg21[%c0_74, %c0_75, %c0_76] : memref<2x8x32xf32, #tpu.memory_space<vmem>>, vector<2x8x32xf32>
    tpu.vector_store %arg21[%c0_74, %c0_75, %c0_76], %154 {strides = array<i32>} : memref<2x8x32xf32, #tpu.memory_space<vmem>>, vector<2x8x32xf32>,
    return
  }
  func.func @transform_0(%arg0: i32, %arg1: i32) -> (i32, i32, i32) {
    %c0_i32 = arith.constant 0 : i32
    %c0_i32_0 = arith.constant 0 : i32
    %c0_i32_1 = arith.constant 0 : i32
    return %arg0, %c0_i32, %c0_i32_0 : i32, i32, i32
  }
  func.func @transform_1(%arg0: i32, %arg1: i32) -> (i32, i32) {
    %c0_i32 = arith.constant 0 : i32
    %c0_i32_0 = arith.constant 0 : i32
    %c0_i32_1 = arith.constant 0 : i32
    return %c0_i32, %c0_i32_0 : i32, i32
  }
  func.func @transform_2(%arg0: i32, %arg1: i32) -> (i32, i32) {
    %c0_i32 = arith.constant 0 : i32
    %c0_i32_0 = arith.constant 0 : i32
    %c0_i32_1 = arith.constant 0 : i32
    return %c0_i32, %c0_i32_0 : i32, i32
  }
  func.func @transform_3(%arg0: i32, %arg1: i32) -> (i32, i32, i32) {
    %c0_i32 = arith.constant 0 : i32
    %c0_i32_0 = arith.constant 0 : i32
    %c0_i32_1 = arith.constant 0 : i32
    return %arg1, %c0_i32, %c0_i32_0 : i32, i32, i32
  }
  func.func @transform_4(%arg0: i32, %arg1: i32) -> (i32, i32, i32) {
    %c0_i32 = arith.constant 0 : i32
    %c0_i32_0 = arith.constant 0 : i32
    %c0_i32_1 = arith.constant 0 : i32
    return %arg1, %c0_i32, %c0_i32_0 : i32, i32, i32
  }
  func.func @transform_5(%arg0: i32, %arg1: i32) -> (i32, i32, i32) {
    %c0_i32 = arith.constant 0 : i32
    %c0_i32_0 = arith.constant 0 : i32
    %c0_i32_1 = arith.constant 0 : i32
    return %arg1, %c0_i32, %c0_i32_0 : i32, i32, i32
  }
  func.func @transform_6(%arg0: i32, %arg1: i32) -> (i32, i32, i32) {
    %c0_i32 = arith.constant 0 : i32
    %c0_i32_0 = arith.constant 0 : i32
    %c0_i32_1 = arith.constant 0 : i32
    return %arg1, %c0_i32, %c0_i32_0 : i32, i32, i32
  }
  func.func @transform_7(%arg0: i32, %arg1: i32) -> (i32, i32, i32) {
    %c0_i32 = arith.constant 0 : i32
    %c0_i32_0 = arith.constant 0 : i32
    %c0_i32_1 = arith.constant 0 : i32
    return %arg1, %c0_i32, %c0_i32_0 : i32, i32, i32
  }
  func.func @transform_8(%arg0: i32, %arg1: i32) -> (i32, i32, i32) {
    %c0_i32 = arith.constant 0 : i32
    %c0_i32_0 = arith.constant 0 : i32
    %c0_i32_1 = arith.constant 0 : i32
    return %arg1, %c0_i32, %c0_i32_0 : i32, i32, i32
  }
  func.func @transform_9(%arg0: i32, %arg1: i32) -> (i32, i32, i32) {
    %c0_i32 = arith.constant 0 : i32
    %c0_i32_0 = arith.constant 0 : i32
    %c0_i32_1 = arith.constant 0 : i32
    return %arg1, %c0_i32, %c0_i32_0 : i32, i32, i32
  }
  func.func @transform_10(%arg0: i32, %arg1: i32) -> (i32, i32, i32) {
    %c0_i32 = arith.constant 0 : i32
    %c0_i32_0 = arith.constant 0 : i32
    %c0_i32_1 = arith.constant 0 : i32
    return %arg1, %c0_i32, %c0_i32_0 : i32, i32, i32
  }
  func.func @transform_11(%arg0: i32, %arg1: i32) -> (i32, i32, i32) {
    %c0_i32 = arith.constant 0 : i32
    %c0_i32_0 = arith.constant 0 : i32
    %c0_i32_1 = arith.constant 0 : i32
    return %arg1, %c0_i32, %c0_i32_0 : i32, i32, i32
  }
  func.func @transform_12(%arg0: i32, %arg1: i32) -> (i32, i32, i32) {
    %c0_i32 = arith.constant 0 : i32
    %c0_i32_0 = arith.constant 0 : i32
    %c0_i32_1 = arith.constant 0 : i32
    return %arg1, %c0_i32, %c0_i32_0 : i32, i32, i32
  }
  func.func @transform_13(%arg0: i32, %arg1: i32) -> (i32, i32, i32) {
    %c0_i32 = arith.constant 0 : i32
    %c0_i32_0 = arith.constant 0 : i32
    %c0_i32_1 = arith.constant 0 : i32
    return %arg1, %c0_i32, %c0_i32_0 : i32, i32, i32
  }
  func.func @transform_14(%arg0: i32, %arg1: i32) -> (i32, i32, i32) {
    %c0_i32 = arith.constant 0 : i32
    %c0_i32_0 = arith.constant 0 : i32
    %c0_i32_1 = arith.constant 0 : i32
    return %arg1, %c0_i32, %c0_i32_0 : i32, i32, i32
  }
  func.func @transform_15(%arg0: i32, %arg1: i32) -> (i32, i32, i32) {
    %c0_i32 = arith.constant 0 : i32
    %c0_i32_0 = arith.constant 0 : i32
    %c0_i32_1 = arith.constant 0 : i32
    return %arg1, %c0_i32, %c0_i32_0 : i32, i32, i32
  }
  func.func @transform_16(%arg0: i32, %arg1: i32) -> (i32, i32, i32) {
    %c0_i32 = arith.constant 0 : i32
    %c0_i32_0 = arith.constant 0 : i32
    %c0_i32_1 = arith.constant 0 : i32
    return %arg1, %c0_i32, %c0_i32_0 : i32, i32, i32
  }
  func.func @transform_17(%arg0: i32, %arg1: i32) -> (i32, i32, i32) {
    %c0_i32 = arith.constant 0 : i32
    %c0_i32_0 = arith.constant 0 : i32
    %c0_i32_1 = arith.constant 0 : i32
    return %arg1, %c0_i32, %c0_i32_0 : i32, i32, i32
  }
  func.func @transform_18(%arg0: i32, %arg1: i32) -> (i32, i32, i32) {
    %c0_i32 = arith.constant 0 : i32
    %c0_i32_0 = arith.constant 0 : i32
    %c0_i32_1 = arith.constant 0 : i32
    return %arg1, %c0_i32, %c0_i32_0 : i32, i32, i32
  }
  func.func @transform_19(%arg0: i32, %arg1: i32) -> (i32, i32, i32) {
    %c0_i32 = arith.constant 0 : i32
    %c0_i32_0 = arith.constant 0 : i32
    %c0_i32_1 = arith.constant 0 : i32
    return %arg0, %c0_i32, %c0_i32_0 : i32, i32, i32
  }
}

</mosaic_0001>

<llo_original>
// kernel: clip_finetune_forward.5
$region0: #{clip_finetune_forward.5}
  #allocation0 [shape = 'u32[]', space=smem, size = 0x4, offset = 0x4, fixed_abs, tag = 'smem constant byte address 0x4 - core index']
  #allocation1 [shape = 'u32[144,128]{1,0:T(1,128)}', space=vmem, size = 0x12000, scoped, tag = 'internal scratch']
  %s0 = inlined_call_operand.vmem [shape: f32[2,32], index: 0, kind: input, shape index: {}]
  %s1 = inlined_call_operand.vmem [shape: f32[1,32], index: 1, kind: input, shape index: {}]
  %s2 = inlined_call_operand.vmem [shape: f32[1,32], index: 2, kind: input, shape index: {}]
  %s3 = inlined_call_operand.vmem [shape: bf16[32,128], index: 3, kind: input, shape index: {}]
  %s4 = inlined_call_operand.vmem [shape: f32[1,128], index: 4, kind: input, shape index: {}]
  %s5 = inlined_call_operand.hbm [shape: f32[2,128], index: 5, kind: output, shape index: {}]
  %s6 = sld [smem:[#allocation0]]
  $region30: #{clip_finetune_forward.5} parent=0
    _
  %s8 = ssub.s32 1, %s6
  %s9 = scalar_select 0, %s8, %s6
  $region1: #{clip_finetune_forward.5} parent=0
    #allocation2 [shape = 'u8[1024]{0}', space=vmem, size = 0x400, scoped, tag = 'output window, operand 0, single buffered']
    #allocation3 [shape = 's32[1]{0}', space=sflag, size = 0x4, scoped, tag = 'scoped memory for clip_finetune_forward.5']
    %10 = vsyncpa [#allocation3], 0
    // Predicated region
    $region2: #{clip_finetune_forward.5} parent=1 // pred_check
      _
    $region3: #{clip_finetune_forward.5} parent=1 // pred_check_branch
      %12 = sbr.rel (0) target = $region5
    $region4: #{clip_finetune_forward.5} parent=1 // pred_region
      _
    $region5: #{clip_finetune_forward.5} parent=1 // pred_fallthru
      _
    // Predicated region
    $region6: #{clip_finetune_forward.5} parent=1 // pred_check
      _
    $region7: #{clip_finetune_forward.5} parent=1 // pred_check_branch
      %14 = sbr.rel (0) target = $region9
    $region8: #{clip_finetune_forward.5} parent=1 // pred_region
      _
    $region9: #{clip_finetune_forward.5} parent=1 // pred_fallthru
      _
    // Predicated region
    $region10: #{clip_finetune_forward.5} parent=1 // pred_check
      _
    $region11: #{clip_finetune_forward.5} parent=1 // pred_check_branch
      %16 = sbr.rel (0) target = $region13
    $region12: #{clip_finetune_forward.5} parent=1 // pred_region
      _
    $region13: #{clip_finetune_forward.5} parent=1 // pred_fallthru
      _
    // Predicated region
    $region14: #{clip_finetune_forward.5} parent=1 // pred_check
      _
    $region15: #{clip_finetune_forward.5} parent=1 // pred_check_branch
      %18 = sbr.rel (0) target = $region17
    $region16: #{clip_finetune_forward.5} parent=1 // pred_region
      _
    $region17: #{clip_finetune_forward.5} parent=1 // pred_fallthru
      _
    // Predicated region
    $region18: #{clip_finetune_forward.5} parent=1 // pred_check
      _
    $region19: #{clip_finetune_forward.5} parent=1 // pred_check_branch
      %20 = sbr.rel (0) target = $region21
    $region20: #{clip_finetune_forward.5} parent=1 // pred_region
      _
    $region21: #{clip_finetune_forward.5} parent=1 // pred_fallthru
      _
    %v22 = vld [vmem:[%s0] sm:$0x3]
    %v23 = vld [vmem:[%s1] sm:$0x1]
    %v24 = vld [vmem:[%s2] sm:$0x1]
    %vm25 = vcmask 254976
    %v26 = vsel %vm25, %v22, 0.0
    %27 = vadd.xlane.f32.xlu0 %v26
    %v28 = vpop.xlane.xlu0 %27
    %v29 = vrcp.pop 32.0
    %v30 = vmul.f32 %v28, %v29
    %v31 = vsub.f32 %v22, %v30
    %v32 = vmul.f32 %v31, %v31
    %v33 = vsel %vm25, %v32, 0.0
    %34 = vadd.xlane.f32.xlu0 %v33
    %v35 = vpop.xlane.xlu0 %34
    %v36 = vmul.f32 %v35, %v29
    %v37 = vadd.f32 %v36, 1e-05
    %v38 = vrsqrt.pop %v37
    %v39 = vmul.f32 %v31, %v38
    %v41 = vlaneseq
    %v42 = vshrl.u32 %v41, 7
    %v43 = vsub.s32 0, %v42
    %v44 = vrot.slane %v23, %v43
    %v46 = vmul.f32 %v39, %v44
    %v48 = vlaneseq
    %v49 = vshrl.u32 %v48, 7
    %v50 = vsub.s32 0, %v49
    %v51 = vrot.slane %v24, %v50
    %v53 = vadd.f32 %v46, %v51
    %v54 = vpack.c.bf16 %v53, %v53
    %v55 = vld [vmem:[%s3] sm:$0xf]
    %v56 = vld [vmem:[%s3 + $0x4] sm:$0xf]
    %v57 = vld [vmem:[%s3 + $0x8] sm:$0xf]
    %v58 = vld [vmem:[%s3 + $0xc] sm:$0xf]
    %v59 = vld [vmem:[%s4] sm:$0x1]
    %v61 = vlaneseq
    %v62 = vshrl.u32 %v61, 7
    %v63 = vsub.s32 0, %v62
    %v64 = vrot.slane %v59, %v63
    %v70 = vunpack.c.l.b16 %v55
    %v71 = vunpack.c.l.b16 %v56
    %v72 = vunpack.c.l.b16 %v57
    %v73 = vunpack.c.l.b16 %v58
    %v74 = vpack.c.b16 %v71, %v70
    %v75 = vpack.c.b16 %v73, %v72
    %vm78 = vcmask 261120
    %v80 = vsel %vm78, %v54, 0
    %82 = vmatprep.subr.bf16.mxu0 0
    %83 = vmatpush1.bf16.msra.mxu0 0
    %84 = vmatprep.subr.bf16.mxu0 0
    %85 = vmatpush1.bf16.msra.mxu0 0
    %86 = vmatprep.subr.bf16.mxu0 0
    %87 = vmatpush1.bf16.msra.mxu0 0
    %88 = vmatprep.subr.bf16.mxu0 0
    %89 = vmatpush1.bf16.msra.mxu0 0
    %90 = vmatprep.subr.bf16.mxu0 0
    %91 = vmatpush1.bf16.msra.mxu0 0
    %92 = vmatprep.subr.bf16.mxu0 0
    %93 = vmatpush1.bf16.msra.mxu0 0
    %94 = vmatprep.subr.bf16.mxu0 0
    %95 = vmatpush1.bf16.msra.mxu0 %v75
    %96 = vmatprep.subr.bf16.mxu0 0
    %97 = vmatpush1.bf16.msra.mxu0 %v74
    %98 = vmatprep.subr.bf16.mxu0 0
    %99 = vmatpush2.bf16.msra.mxu0 0
    %100 = vmatprep.subr.bf16.mxu0 0
    %101 = vmatpush2.bf16.msra.mxu0 0
    %102 = vmatprep.subr.bf16.mxu0 0
    %103 = vmatpush2.bf16.msra.mxu0 0
    %104 = vmatprep.subr.bf16.mxu0 0
    %105 = vmatpush2.bf16.msra.mxu0 0
    %106 = vmatprep.subr.bf16.mxu0 0
    %107 = vmatpush2.bf16.msra.mxu0 0
    %108 = vmatprep.subr.bf16.mxu0 0
    %109 = vmatpush2.bf16.msra.mxu0 0
    %110 = vmatprep.subr.bf16.mxu0 0
    %111 = vmatpush2.bf16.msra.mxu0 0
    %112 = vmatprep.subr.bf16.mxu0 0
    %113 = vmatpush2.bf16.msra.mxu0 0
    %114 = vmatprep.mubr.bf16.mxu0 0
    %115 = vmatmul.mubr.bf16.gmra.mxu0 %v80
    %v116 = vpop.f32.mrf.mxu0
    %v117 = vadd.f32 %v64, %v116
    %v118 = vpop.f32.mrf.mxu0
    %v119 = vpop.f32.mrf.mxu0
    %v120 = vpop.f32.mrf.mxu0
    %121 = vdwg.mxu0
    %122 = vst [vmem:[#allocation2] sm:$0x3] %v117
    // Predicated region
    $region22: #{clip_finetune_forward.5} parent=1 // pred_check
      _
    $region23: #{clip_finetune_forward.5} parent=1 // pred_check_branch
      %124 = sbr.rel (0) target = $region25
    $region24: #{clip_finetune_forward.5} parent=1 // pred_region
      %s126 = ssub.s32 32, 32
      %127 = vsyncadd [#allocation3], %s126
      %s129 = sshll.u32 [#allocation2], 4
      %s130 = int_to_ptr.vmem [resolvable:$true] %s129
      %132 = dma.vmem_to_hbm [thread:$0]  %s130, 32, %s5, [#allocation3]
    $region25: #{clip_finetune_forward.5} parent=1 // pred_fallthru
      _
    // Predicated region
    $region26: #{clip_finetune_forward.5} parent=1 // pred_check
      _
    $region27: #{clip_finetune_forward.5} parent=1 // pred_check_branch
      %134 = sbr.rel (0) target = $region29
    $region28: #{clip_finetune_forward.5} parent=1 // pred_region
      %135 = dma.done [#allocation3], 32
    $region29: #{clip_finetune_forward.5} parent=1 // pred_fallthru
      _
    %136 = vsyncpa [#allocation3], 1

// kernel: clip_finetune_forward.3
$region0: #{clip_finetune_forward.3}
  #allocation0 [shape = 'u32[]', space=smem, size = 0x4, offset = 0x4, fixed_abs, tag = 'smem constant byte address 0x4 - core index']
  #allocation1 [shape = 'u32[144,128]{1,0:T(1,128)}', space=vmem, size = 0x12000, scoped, tag = 'internal scratch']
  %s0 = inlined_call_operand.vmem [shape: bf16[8,192], index: 0, kind: input, shape index: {}]
  %s1 = inlined_call_operand.vmem [shape: bf16[192,32], index: 1, kind: input, shape index: {}]
  %s2 = inlined_call_operand.vmem [shape: f32[8,32], index: 2, kind: output, shape index: {}]
  %s3 = sld [smem:[#allocation0]]
  $region18: #{clip_finetune_forward.3} parent=0
    _
  %s5 = ssub.s32 1, %s3
  %s6 = scalar_select 0, %s5, %s3
  // Predicated region
  $region2: #{clip_finetune_forward.3} parent=0 // pred_check
    _
  $region3: #{clip_finetune_forward.3} parent=0 // pred_check_branch
    %8 = sbr.rel (0) target = $region5
  $region4: #{clip_finetune_forward.3} parent=0 // pred_region
    _
  $region5: #{clip_finetune_forward.3} parent=0 // pred_fallthru
    _
  // Predicated region
  $region6: #{clip_finetune_forward.3} parent=0 // pred_check
    _
  $region7: #{clip_finetune_forward.3} parent=0 // pred_check_branch
    %10 = sbr.rel (0) target = $region9
  $region8: #{clip_finetune_forward.3} parent=0 // pred_region
    _
  $region9: #{clip_finetune_forward.3} parent=0 // pred_fallthru
    _
  %v12 = vld [vmem:[%s0] sm:$0xff]
  %v13 = vld [vmem:[%s1] sm:$0xf]
  %v14 = vld [vmem:[%s1 + $0x4] sm:$0xf]
  %v15 = vld [vmem:[%s1 + $0x8] sm:$0xf]
  %v16 = vld [vmem:[%s1 + $0xc] sm:$0xf]
  %v17 = vld [vmem:[%s1 + $0x10] sm:$0xf]
  %v18 = vld [vmem:[%s1 + $0x14] sm:$0xf]
  %v19 = vld [vmem:[%s1 + $0x18] sm:$0xf]
  %v20 = vld [vmem:[%s1 + $0x1c] sm:$0xf]
  %v21 = vld [vmem:[%s1 + $0x20] sm:$0xf]
  %v22 = vld [vmem:[%s1 + $0x24] sm:$0xf]
  %v23 = vld [vmem:[%s1 + $0x28] sm:$0xf]
  %v24 = vld [vmem:[%s1 + $0x2c] sm:$0xf]
  %v25 = vld [vmem:[%s1 + $0x30] sm:$0xf]
  %v26 = vld [vmem:[%s1 + $0x34] sm:$0xf]
  %v27 = vld [vmem:[%s1 + $0x38] sm:$0xf]
  %v28 = vld [vmem:[%s1 + $0x3c] sm:$0xf]
  %v29 = vld [vmem:[%s1 + $0x40] sm:$0xf]
  %v30 = vld [vmem:[%s1 + $0x44] sm:$0xf]
  %v31 = vld [vmem:[%s1 + $0x48] sm:$0xf]
  %v32 = vld [vmem:[%s1 + $0x4c] sm:$0xf]
  %v33 = vld [vmem:[%s1 + $0x50] sm:$0xf]
  %v34 = vld [vmem:[%s1 + $0x54] sm:$0xf]
  %v35 = vld [vmem:[%s1 + $0x58] sm:$0xf]
  %v36 = vld [vmem:[%s1 + $0x5c] sm:$0xf]
  %v38 = vunpack.c.l.b16 %v12
  %v39 = vunpack.c.h.b16 %v12
  %v40 = vpack.c.b16 %v38, %v38
  %v41 = vpack.c.b16 %v39, %v39
  %v67 = vunpack.c.l.b16 %v13
  %v68 = vunpack.c.l.b16 %v14
  %v69 = vunpack.c.l.b16 %v15
  %v70 = vunpack.c.l.b16 %v16
  %v71 = vunpack.c.l.b16 %v17
  %v72 = vunpack.c.l.b16 %v18
  %v73 = vunpack.c.l.b16 %v19
  %v74 = vunpack.c.l.b16 %v20
  %v75 = vunpack.c.l.b16 %v21
  %v76 = vunpack.c.l.b16 %v22
  %v77 = vunpack.c.l.b16 %v23
  %v78 = vunpack.c.l.b16 %v24
  %v79 = vunpack.c.l.b16 %v25
  %v80 = vunpack.c.l.b16 %v26
  %v81 = vunpack.c.l.b16 %v27
  %v82 = vunpack.c.l.b16 %v28
  %v83 = vunpack.c.l.b16 %v29
  %v84 = vunpack.c.l.b16 %v30
  %v85 = vunpack.c.l.b16 %v31
  %v86 = vunpack.c.l.b16 %v32
  %v87 = vunpack.c.l.b16 %v33
  %v88 = vunpack.c.l.b16 %v34
  %v89 = vunpack.c.l.b16 %v35
  %v90 = vunpack.c.l.b16 %v36
  %v91 = vpack.c.b16 %v68, %v67
  %v92 = vpack.c.b16 %v70, %v69
  %v93 = vpack.c.b16 %v72, %v71
  %v94 = vpack.c.b16 %v74, %v73
  %v95 = vpack.c.b16 %v76, %v75
  %v96 = vpack.c.b16 %v78, %v77
  %v97 = vpack.c.b16 %v80, %v79
  %v98 = vpack.c.b16 %v82, %v81
  %v99 = vpack.c.b16 %v84, %v83
  %v100 = vpack.c.b16 %v86, %v85
  %v101 = vpack.c.b16 %v88, %v87
  %v102 = vpack.c.b16 %v90, %v89
  %vm115 = vcmask 523264
  %v117 = vsel %vm115, %v41, 0
  %119 = vmatprep.subr.bf16.mxu0 0
  %120 = vmatpush1.bf16.msra.mxu0 %v98
  %121 = vmatprep.subr.bf16.mxu0 0
  %122 = vmatpush1.bf16.msra.mxu0 %v97
  %123 = vmatprep.subr.bf16.mxu0 0
  %124 = vmatpush1.bf16.msra.mxu0 %v96
  %125 = vmatprep.subr.bf16.mxu0 0
  %126 = vmatpush1.bf16.msra.mxu0 %v95
  %127 = vmatprep.subr.bf16.mxu0 0
  %128 = vmatpush1.bf16.msra.mxu0 %v94
  %129 = vmatprep.subr.bf16.mxu0 0
  %130 = vmatpush1.bf16.msra.mxu0 %v93
  %131 = vmatprep.subr.bf16.mxu0 0
  %132 = vmatpush1.bf16.msra.mxu0 %v92
  %133 = vmatprep.subr.bf16.mxu0 0
  %134 = vmatpush1.bf16.msra.mxu0 %v91
  %135 = vmatprep.subr.bf16.mxu0 0
  %136 = vmatpush2.bf16.msra.mxu0 0
  %137 = vmatprep.subr.bf16.mxu0 0
  %138 = vmatpush2.bf16.msra.mxu0 0
  %139 = vmatprep.subr.bf16.mxu0 0
  %140 = vmatpush2.bf16.msra.mxu0 0
  %141 = vmatprep.subr.bf16.mxu0 0
  %142 = vmatpush2.bf16.msra.mxu0 0
  %143 = vmatprep.subr.bf16.mxu0 0
  %144 = vmatpush2.bf16.msra.mxu0 %v102
  %145 = vmatprep.subr.bf16.mxu0 0
  %146 = vmatpush2.bf16.msra.mxu0 %v101
  %147 = vmatprep.subr.bf16.mxu0 0
  %148 = vmatpush2.bf16.msra.mxu0 %v100
  %149 = vmatprep.subr.bf16.mxu0 0
  %150 = vmatpush2.bf16.msra.mxu0 %v99
  %151 = vmatprep.mubr.bf16.mxu0 %v117
  %152 = vmatmul.mubr.bf16.gmra.mxu0 %v40
  %v153 = vpop.f32.mrf.mxu0
  %v154 = vadd.f32 0.0, %v153
  %v155 = vpop.f32.mrf.mxu0
  %v156 = vpop.f32.mrf.mxu0
  %v157 = vpop.f32.mrf.mxu0
  %158 = vdwg.mxu0
  %vm159 = vcmask 261120
  %160 = vst.msk [vmem:[%s2] sm:$0xff] %vm159, %v154
  // Predicated region
  $region10: #{clip_finetune_forward.3} parent=0 // pred_check
    _
  $region11: #{clip_finetune_forward.3} parent=0 // pred_check_branch
    %162 = sbr.rel (0) target = $region13
  $region12: #{clip_finetune_forward.3} parent=0 // pred_region
    _
  $region13: #{clip_finetune_forward.3} parent=0 // pred_fallthru
    _
  // Predicated region
  $region14: #{clip_finetune_forward.3} parent=0 // pred_check
    _
  $region15: #{clip_finetune_forward.3} parent=0 // pred_check_branch
    %164 = sbr.rel (0) target = $region17
  $region16: #{clip_finetune_forward.3} parent=0 // pred_region
    _
  $region17: #{clip_finetune_forward.3} parent=0 // pred_fallthru
    _

// kernel: clip_finetune_forward.4
$region0: #{clip_finetune_forward.4}
  #allocation0 [shape = 'u32[]', space=smem, size = 0x4, offset = 0x4, fixed_abs, tag = 'smem constant byte address 0x4 - core index']
  #allocation1 [shape = 'u32[144,128]{1,0:T(1,128)}', space=vmem, size = 0x12000, scoped, tag = 'internal scratch']
  %s0 = inlined_call_operand.vmem [shape: f32[2,8,32], index: 0, kind: input, shape index: {}]
  %s1 = inlined_call_operand.vmem [shape: f32[1,32], index: 1, kind: input, shape index: {}]
  %s2 = inlined_call_operand.vmem [shape: f32[1,32], index: 2, kind: input, shape index: {}]
  %s3 = inlined_call_operand.vmem [shape: f32[2,1,32], index: 3, kind: input, shape index: {}]
  %s4 = inlined_call_operand.vmem [shape: f32[2,1,32], index: 4, kind: input, shape index: {}]
  %s5 = inlined_call_operand.vmem [shape: bf16[2,32,32], index: 5, kind: input, shape index: {}]
  %s6 = inlined_call_operand.vmem [shape: f32[2,1,32], index: 6, kind: input, shape index: {}]
  %s7 = inlined_call_operand.vmem [shape: bf16[2,32,32], index: 7, kind: input, shape index: {}]
  %s8 = inlined_call_operand.vmem [shape: f32[2,1,32], index: 8, kind: input, shape index: {}]
  %s9 = inlined_call_operand.vmem [shape: bf16[2,32,32], index: 9, kind: input, shape index: {}]
  %s10 = inlined_call_operand.vmem [shape: f32[2,1,32], index: 10, kind: input, shape index: {}]
  %s11 = inlined_call_operand.vmem [shape: bf16[2,32,32], index: 11, kind: input, shape index: {}]
  %s12 = inlined_call_operand.vmem [shape: f32[2,1,32], index: 12, kind: input, shape index: {}]
  %s13 = inlined_call_operand.vmem [shape: f32[2,1,32], index: 13, kind: input, shape index: {}]
  %s14 = inlined_call_operand.vmem [shape: f32[2,1,32], index: 14, kind: input, shape index: {}]
  %s15 = inlined_call_operand.vmem [shape: bf16[2,32,64], index: 15, kind: input, shape index: {}]
  %s16 = inlined_call_operand.vmem [shape: f32[2,1,64], index: 16, kind: input, shape index: {}]
  %s17 = inlined_call_operand.vmem [shape: bf16[2,64,32], index: 17, kind: input, shape index: {}]
  %s18 = inlined_call_operand.vmem [shape: f32[2,1,32], index: 18, kind: input, shape index: {}]
  %s19 = inlined_call_operand.vmem [shape: f32[2,8,32], index: 19, kind: output, shape index: {}]
  %s20 = sld [smem:[#allocation0]]
  $region113: #{clip_finetune_forward.4} parent=0
    _
  %s22 = ssub.s32 1, %s20
  %s23 = scalar_select 0, %s22, %s20
  loop: start=0, step=1, limit=4
  $region2: #{clip_finetune_forward.4} parent=0 // loop_pre_header
    _
  $region3: #{clip_finetune_forward.4} parent=0 // loop_header
    %s25 = sphi 0, %s29
    %p26 = scmp.ge.s32.totalorder %s25, 4
    %s32 = sphi 0, %s44
    %s33 = sphi 0, %s40
    %s34 = sphi 0, %s32
    %s35 = sphi 0, %s33
    %s36 = sphi 0, %s34
    %s37 = sphi 0, %s35
    %s47 = sphi 0, %s49
    %s50 = sphi 0, %s47
    %s51 = sphi 0, %s50
    %s67 = sphi 0, %s51
    %s71 = sphi 0, %s71
    %s73 = sphi 0, %s71
    %s74 = sphi 0, %s73
    %s88 = sphi 0, %s74
    %s92 = sphi 0, %s92
    %s94 = sphi 0, %s92
    %s95 = sphi 0, %s94
    %s109 = sphi 0, %s95
    %s115 = sphi 0, %s117
    %s118 = sphi 0, %s115
    %s119 = sphi 0, %s118
    %s135 = sphi 0, %s119
    %s141 = sphi 0, %s143
    %s144 = sphi 0, %s141
    %s145 = sphi 0, %s144
    %s161 = sphi 0, %s145
    %s167 = sphi 0, %s169
    %s170 = sphi 0, %s167
    %s171 = sphi 0, %s170
    %s187 = sphi 0, %s171
    %s193 = sphi 0, %s195
    %s196 = sphi 0, %s193
    %s197 = sphi 0, %s196
    %s213 = sphi 0, %s197
    %s219 = sphi 0, %s221
    %s222 = sphi 0, %s219
    %s223 = sphi 0, %s222
    %s239 = sphi 0, %s223
    %s245 = sphi 0, %s247
    %s248 = sphi 0, %s245
    %s249 = sphi 0, %s248
    %s265 = sphi 0, %s249
    %s271 = sphi 0, %s273
    %s274 = sphi 0, %s271
    %s275 = sphi 0, %s274
    %s291 = sphi 0, %s275
    %s297 = sphi 0, %s299
    %s300 = sphi 0, %s297
    %s301 = sphi 0, %s300
    %s317 = sphi 0, %s301
    %s323 = sphi 0, %s325
    %s326 = sphi 0, %s323
    %s327 = sphi 0, %s326
    %s343 = sphi 0, %s327
    %s349 = sphi 0, %s351
    %s352 = sphi 0, %s349
    %s353 = sphi 0, %s352
    %s369 = sphi 0, %s353
    %s375 = sphi 0, %s377
    %s378 = sphi 0, %s375
    %s379 = sphi 0, %s378
    %s395 = sphi 0, %s379
    %s401 = sphi 0, %s403
    %s404 = sphi 0, %s401
    %s405 = sphi 0, %s404
    %s421 = sphi 0, %s405
    %s427 = sphi 0, %s429
    %s430 = sphi 0, %s427
    %s431 = sphi 0, %s430
    %s447 = sphi 0, %s431
    %s453 = sphi 0, %s455
    %s456 = sphi 0, %s453
    %s457 = sphi 0, %s456
    %s473 = sphi 0, %s457
    %s479 = sphi 0, %s481
    %s482 = sphi 0, %s479
    %s483 = sphi 0, %s482
    %s499 = sphi 0, %s483
    %s505 = sphi 0, %s507
    %s508 = sphi 0, %s505
    %s509 = sphi 0, %s508
    %s525 = sphi 0, %s509
    %s531 = sphi 0, %s533
    %s534 = sphi 0, %s531
    %s535 = sphi 0, %s534
    %s551 = sphi 0, %s535
  $region4: #{clip_finetune_forward.4} parent=0 // loop_header_branch
    %28 = sbr.rel (%p26) target = $region8
  $region5: #{clip_finetune_forward.4} parent=0 // loop_body
    %s30 = ssub.s32 %s25, 1
    %s31 = ssub.s32 %s25, 2
    %s38 = sadd.s32 1, %s33
    %p39 = scmp.ge.s32.totalorder %s38, 2
    %s40 = scalar_select %p39, 0, %s38
    %s41 = sadd.s32 1, %s32
    %s42 = scalar_select %p39, %s41, %s32
    %p43 = scmp.ge.s32.totalorder %s42, 1
    %s44 = scalar_select %p43, 0, %s42
    %s45 = ssub.s32 %s32, %s44
    %p46 = scmp.eq.s32.totalorder %s45, 0
    %s48 = sadd.s32 %s47, 1
    %s49 = scalar_select %p46, %s47, %s48
    %p52 = pneg %p46
    %p53 = scmp.eq.s32.totalorder %s25, 1
    %p54 = por %p52, %p53
    %p55 = scmp.ne.s32.totalorder %s47, %s50
    %p56 = scmp.eq.s32.totalorder %s25, 0
    %p57 = por %p55, %p56
    %p58 = scmp.ne.s32.totalorder %s47, %s50
    %p59 = scmp.eq.s32.totalorder %s30, 1
    %p60 = por %p58, %p59
    %p61 = scmp.ne.s32.totalorder %s50, %s51
    %p62 = scmp.eq.s32.totalorder %s30, 0
    %p63 = por %p61, %p62
    %p64 = scmp.ne.s32.totalorder %s50, %s51
    %p65 = scmp.eq.s32.totalorder %s31, 1
    %p66 = por %p64, %p65
    %p68 = scmp.ne.s32.totalorder %s51, %s67
    %p69 = scmp.eq.s32.totalorder %s31, 0
    %p70 = por %p68, %p69
    %s72 = sadd.s32 %s71, 1
    %p75 = scmp.eq.s32.totalorder %s25, 1
    %p76 = scmp.ne.s32.totalorder %s71, %s73
    %p77 = scmp.eq.s32.totalorder %s25, 0
    %p78 = por %p76, %p77
    %p79 = scmp.ne.s32.totalorder %s71, %s73
    %p80 = scmp.eq.s32.totalorder %s30, 1
    %p81 = por %p79, %p80
    %p82 = scmp.ne.s32.totalorder %s73, %s74
    %p83 = scmp.eq.s32.totalorder %s30, 0
    %p84 = por %p82, %p83
    %p85 = scmp.ne.s32.totalorder %s73, %s74
    %p86 = scmp.eq.s32.totalorder %s31, 1
    %p87 = por %p85, %p86
    %p89 = scmp.ne.s32.totalorder %s74, %s88
    %p90 = scmp.eq.s32.totalorder %s31, 0
    %p91 = por %p89, %p90
    %s93 = sadd.s32 %s92, 1
    %p96 = scmp.eq.s32.totalorder %s25, 1
    %p97 = scmp.ne.s32.totalorder %s92, %s94
    %p98 = scmp.eq.s32.totalorder %s25, 0
    %p99 = por %p97, %p98
    %p100 = scmp.ne.s32.totalorder %s92, %s94
    %p101 = scmp.eq.s32.totalorder %s30, 1
    %p102 = por %p100, %p101
    %p103 = scmp.ne.s32.totalorder %s94, %s95
    %p104 = scmp.eq.s32.totalorder %s30, 0
    %p105 = por %p103, %p104
    %p106 = scmp.ne.s32.totalorder %s94, %s95
    %p107 = scmp.eq.s32.totalorder %s31, 1
    %p108 = por %p106, %p107
    %p110 = scmp.ne.s32.totalorder %s95, %s109
    %p111 = scmp.eq.s32.totalorder %s31, 0
    %p112 = por %p110, %p111
    %s113 = ssub.s32 %s33, %s40
    %p114 = scmp.eq.s32.totalorder %s113, 0
    %s116 = sadd.s32 %s115, 1
    %s117 = scalar_select %p114, %s115, %s116
    %p120 = pneg %p114
    %p121 = scmp.eq.s32.totalorder %s25, 1
    %p122 = por %p120, %p121
    %p123 = scmp.ne.s32.totalorder %s115, %s118
    %p124 = scmp.eq.s32.totalorder %s25, 0
    %p125 = por %p123, %p124
    %p126 = scmp.ne.s32.totalorder %s115, %s118
    %p127 = scmp.eq.s32.totalorder %s30, 1
    %p128 = por %p126, %p127
    %p129 = scmp.ne.s32.totalorder %s118, %s119
    %p130 = scmp.eq.s32.totalorder %s30, 0
    %p131 = por %p129, %p130
    %p132 = scmp.ne.s32.totalorder %s118, %s119
    %p133 = scmp.eq.s32.totalorder %s31, 1
    %p134 = por %p132, %p133
    %p136 = scmp.ne.s32.totalorder %s119, %s135
    %p137 = scmp.eq.s32.totalorder %s31, 0
    %p138 = por %p136, %p137
    %s139 = ssub.s32 %s33, %s40
    %p140 = scmp.eq.s32.totalorder %s139, 0
    %s142 = sadd.s32 %s141, 1
    %s143 = scalar_select %p140, %s141, %s142
    %p146 = pneg %p140
    %p147 = scmp.eq.s32.totalorder %s25, 1
    %p148 = por %p146, %p147
    %p149 = scmp.ne.s32.totalorder %s141, %s144
    %p150 = scmp.eq.s32.totalorder %s25, 0
    %p151 = por %p149, %p150
    %p152 = scmp.ne.s32.totalorder %s141, %s144
    %p153 = scmp.eq.s32.totalorder %s30, 1
    %p154 = por %p152, %p153
    %p155 = scmp.ne.s32.totalorder %s144, %s145
    %p156 = scmp.eq.s32.totalorder %s30, 0
    %p157 = por %p155, %p156
    %p158 = scmp.ne.s32.totalorder %s144, %s145
    %p159 = scmp.eq.s32.totalorder %s31, 1
    %p160 = por %p158, %p159
    %p162 = scmp.ne.s32.totalorder %s145, %s161
    %p163 = scmp.eq.s32.totalorder %s31, 0
    %p164 = por %p162, %p163
    %s165 = ssub.s32 %s33, %s40
    %p166 = scmp.eq.s32.totalorder %s165, 0
    %s168 = sadd.s32 %s167, 1
    %s169 = scalar_select %p166, %s167, %s168
    %p172 = pneg %p166
    %p173 = scmp.eq.s32.totalorder %s25, 1
    %p174 = por %p172, %p173
    %p175 = scmp.ne.s32.totalorder %s167, %s170
    %p176 = scmp.eq.s32.totalorder %s25, 0
    %p177 = por %p175, %p176
    %p178 = scmp.ne.s32.totalorder %s167, %s170
    %p179 = scmp.eq.s32.totalorder %s30, 1
    %p180 = por %p178, %p179
    %p181 = scmp.ne.s32.totalorder %s170, %s171
    %p182 = scmp.eq.s32.totalorder %s30, 0
    %p183 = por %p181, %p182
    %p184 = scmp.ne.s32.totalorder %s170, %s171
    %p185 = scmp.eq.s32.totalorder %s31, 1
    %p186 = por %p184, %p185
    %p188 = scmp.ne.s32.totalorder %s171, %s187
    %p189 = scmp.eq.s32.totalorder %s31, 0
    %p190 = por %p188, %p189
    %s191 = ssub.s32 %s33, %s40
    %p192 = scmp.eq.s32.totalorder %s191, 0
    %s194 = sadd.s32 %s193, 1
    %s195 = scalar_select %p192, %s193, %s194
    %p198 = pneg %p192
    %p199 = scmp.eq.s32.totalorder %s25, 1
    %p200 = por %p198, %p199
    %p201 = scmp.ne.s32.totalorder %s193, %s196
    %p202 = scmp.eq.s32.totalorder %s25, 0
    %p203 = por %p201, %p202
    %p204 = scmp.ne.s32.totalorder %s193, %s196
    %p205 = scmp.eq.s32.totalorder %s30, 1
    %p206 = por %p204, %p205
    %p207 = scmp.ne.s32.totalorder %s196, %s197
    %p208 = scmp.eq.s32.totalorder %s30, 0
    %p209 = por %p207, %p208
    %p210 = scmp.ne.s32.totalorder %s196, %s197
    %p211 = scmp.eq.s32.totalorder %s31, 1
    %p212 = por %p210, %p211
    %p214 = scmp.ne.s32.totalorder %s197, %s213
    %p215 = scmp.eq.s32.totalorder %s31, 0
    %p216 = por %p214, %p215
    %s217 = ssub.s32 %s33, %s40
    %p218 = scmp.eq.s32.totalorder %s217, 0
    %s220 = sadd.s32 %s219, 1
    %s221 = scalar_select %p218, %s219, %s220
    %p224 = pneg %p218
    %p225 = scmp.eq.s32.totalorder %s25, 1
    %p226 = por %p224, %p225
    %p227 = scmp.ne.s32.totalorder %s219, %s222
    %p228 = scmp.eq.s32.totalorder %s25, 0
    %p229 = por %p227, %p228
    %p230 = scmp.ne.s32.totalorder %s219, %s222
    %p231 = scmp.eq.s32.totalorder %s30, 1
    %p232 = por %p230, %p231
    %p233 = scmp.ne.s32.totalorder %s222, %s223
    %p234 = scmp.eq.s32.totalorder %s30, 0
    %p235 = por %p233, %p234
    %p236 = scmp.ne.s32.totalorder %s222, %s223
    %p237 = scmp.eq.s32.totalorder %s31, 1
    %p238 = por %p236, %p237
    %p240 = scmp.ne.s32.totalorder %s223, %s239
    %p241 = scmp.eq.s32.totalorder %s31, 0
    %p242 = por %p240, %p241
    %s243 = ssub.s32 %s33, %s40
    %p244 = scmp.eq.s32.totalorder %s243, 0
    %s246 = sadd.s32 %s245, 1
    %s247 = scalar_select %p244, %s245, %s246
    %p250 = pneg %p244
    %p251 = scmp.eq.s32.totalorder %s25, 1
    %p252 = por %p250, %p251
    %p253 = scmp.ne.s32.totalorder %s245, %s248
    %p254 = scmp.eq.s32.totalorder %s25, 0
    %p255 = por %p253, %p254
    %p256 = scmp.ne.s32.totalorder %s245, %s248
    %p257 = scmp.eq.s32.totalorder %s30, 1
    %p258 = por %p256, %p257
    %p259 = scmp.ne.s32.totalorder %s248, %s249
    %p260 = scmp.eq.s32.totalorder %s30, 0
    %p261 = por %p259, %p260
    %p262 = scmp.ne.s32.totalorder %s248, %s249
    %p263 = scmp.eq.s32.totalorder %s31, 1
    %p264 = por %p262, %p263
    %p266 = scmp.ne.s32.totalorder %s249, %s265
    %p267 = scmp.eq.s32.totalorder %s31, 0
    %p268 = por %p266, %p267
    %s269 = ssub.s32 %s33, %s40
    %p270 = scmp.eq.s32.totalorder %s269, 0
    %s272 = sadd.s32 %s271, 1
    %s273 = scalar_select %p270, %s271, %s272
    %p276 = pneg %p270
    %p277 = scmp.eq.s32.totalorder %s25, 1
    %p278 = por %p276, %p277
    %p279 = scmp.ne.s32.totalorder %s271, %s274
    %p280 = scmp.eq.s32.totalorder %s25, 0
    %p281 = por %p279, %p280
    %p282 = scmp.ne.s32.totalorder %s271, %s274
    %p283 = scmp.eq.s32.totalorder %s30, 1
    %p284 = por %p282, %p283
    %p285 = scmp.ne.s32.totalorder %s274, %s275
    %p286 = scmp.eq.s32.totalorder %s30, 0
    %p287 = por %p285, %p286
    %p288 = scmp.ne.s32.totalorder %s274, %s275
    %p289 = scmp.eq.s32.totalorder %s31, 1
    %p290 = por %p288, %p289
    %p292 = scmp.ne.s32.totalorder %s275, %s291
    %p293 = scmp.eq.s32.totalorder %s31, 0
    %p294 = por %p292, %p293
    %s295 = ssub.s32 %s33, %s40
    %p296 = scmp.eq.s32.totalorder %s295, 0
    %s298 = sadd.s32 %s297, 1
    %s299 = scalar_select %p296, %s297, %s298
    %p302 = pneg %p296
    %p303 = scmp.eq.s32.totalorder %s25, 1
    %p304 = por %p302, %p303
    %p305 = scmp.ne.s32.totalorder %s297, %s300
    %p306 = scmp.eq.s32.totalorder %s25, 0
    %p307 = por %p305, %p306
    %p308 = scmp.ne.s32.totalorder %s297, %s300
    %p309 = scmp.eq.s32.totalorder %s30, 1
    %p310 = por %p308, %p309
    %p311 = scmp.ne.s32.totalorder %s300, %s301
    %p312 = scmp.eq.s32.totalorder %s30, 0
    %p313 = por %p311, %p312
    %p314 = scmp.ne.s32.totalorder %s300, %s301
    %p315 = scmp.eq.s32.totalorder %s31, 1
    %p316 = por %p314, %p315
    %p318 = scmp.ne.s32.totalorder %s301, %s317
    %p319 = scmp.eq.s32.totalorder %s31, 0
    %p320 = por %p318, %p319
    %s321 = ssub.s32 %s33, %s40
    %p322 = scmp.eq.s32.totalorder %s321, 0
    %s324 = sadd.s32 %s323, 1
    %s325 = scalar_select %p322, %s323, %s324
    %p328 = pneg %p322
    %p329 = scmp.eq.s32.totalorder %s25, 1
    %p330 = por %p328, %p329
    %p331 = scmp.ne.s32.totalorder %s323, %s326
    %p332 = scmp.eq.s32.totalorder %s25, 0
    %p333 = por %p331, %p332
    %p334 = scmp.ne.s32.totalorder %s323, %s326
    %p335 = scmp.eq.s32.totalorder %s30, 1
    %p336 = por %p334, %p335
    %p337 = scmp.ne.s32.totalorder %s326, %s327
    %p338 = scmp.eq.s32.totalorder %s30, 0
    %p339 = por %p337, %p338
    %p340 = scmp.ne.s32.totalorder %s326, %s327
    %p341 = scmp.eq.s32.totalorder %s31, 1
    %p342 = por %p340, %p341
    %p344 = scmp.ne.s32.totalorder %s327, %s343
    %p345 = scmp.eq.s32.totalorder %s31, 0
    %p346 = por %p344, %p345
    %s347 = ssub.s32 %s33, %s40
    %p348 = scmp.eq.s32.totalorder %s347, 0
    %s350 = sadd.s32 %s349, 1
    %s351 = scalar_select %p348, %s349, %s350
    %p354 = pneg %p348
    %p355 = scmp.eq.s32.totalorder %s25, 1
    %p356 = por %p354, %p355
    %p357 = scmp.ne.s32.totalorder %s349, %s352
    %p358 = scmp.eq.s32.totalorder %s25, 0
    %p359 = por %p357, %p358
    %p360 = scmp.ne.s32.totalorder %s349, %s352
    %p361 = scmp.eq.s32.totalorder %s30, 1
    %p362 = por %p360, %p361
    %p363 = scmp.ne.s32.totalorder %s352, %s353
    %p364 = scmp.eq.s32.totalorder %s30, 0
    %p365 = por %p363, %p364
    %p366 = scmp.ne.s32.totalorder %s352, %s353
    %p367 = scmp.eq.s32.totalorder %s31, 1
    %p368 = por %p366, %p367
    %p370 = scmp.ne.s32.totalorder %s353, %s369
    %p371 = scmp.eq.s32.totalorder %s31, 0
    %p372 = por %p370, %p371
    %s373 = ssub.s32 %s33, %s40
    %p374 = scmp.eq.s32.totalorder %s373, 0
    %s376 = sadd.s32 %s375, 1
    %s377 = scalar_select %p374, %s375, %s376
    %p380 = pneg %p374
    %p381 = scmp.eq.s32.totalorder %s25, 1
    %p382 = por %p380, %p381
    %p383 = scmp.ne.s32.totalorder %s375, %s378
    %p384 = scmp.eq.s32.totalorder %s25, 0
    %p385 = por %p383, %p384
    %p386 = scmp.ne.s32.totalorder %s375, %s378
    %p387 = scmp.eq.s32.totalorder %s30, 1
    %p388 = por %p386, %p387
    %p389 = scmp.ne.s32.totalorder %s378, %s379
    %p390 = scmp.eq.s32.totalorder %s30, 0
    %p391 = por %p389, %p390
    %p392 = scmp.ne.s32.totalorder %s378, %s379
    %p393 = scmp.eq.s32.totalorder %s31, 1
    %p394 = por %p392, %p393
    %p396 = scmp.ne.s32.totalorder %s379, %s395
    %p397 = scmp.eq.s32.totalorder %s31, 0
    %p398 = por %p396, %p397
    %s399 = ssub.s32 %s33, %s40
    %p400 = scmp.eq.s32.totalorder %s399, 0
    %s402 = sadd.s32 %s401, 1
    %s403 = scalar_select %p400, %s401, %s402
    %p406 = pneg %p400
    %p407 = scmp.eq.s32.totalorder %s25, 1
    %p408 = por %p406, %p407
    %p409 = scmp.ne.s32.totalorder %s401, %s404
    %p410 = scmp.eq.s32.totalorder %s25, 0
    %p411 = por %p409, %p410
    %p412 = scmp.ne.s32.totalorder %s401, %s404
    %p413 = scmp.eq.s32.totalorder %s30, 1
    %p414 = por %p412, %p413
    %p415 = scmp.ne.s32.totalorder %s404, %s405
    %p416 = scmp.eq.s32.totalorder %s30, 0
    %p417 = por %p415, %p416
    %p418 = scmp.ne.s32.totalorder %s404, %s405
    %p419 = scmp.eq.s32.totalorder %s31, 1
    %p420 = por %p418, %p419
    %p422 = scmp.ne.s32.totalorder %s405, %s421
    %p423 = scmp.eq.s32.totalorder %s31, 0
    %p424 = por %p422, %p423
    %s425 = ssub.s32 %s33, %s40
    %p426 = scmp.eq.s32.totalorder %s425, 0
    %s428 = sadd.s32 %s427, 1
    %s429 = scalar_select %p426, %s427, %s428
    %p432 = pneg %p426
    %p433 = scmp.eq.s32.totalorder %s25, 1
    %p434 = por %p432, %p433
    %p435 = scmp.ne.s32.totalorder %s427, %s430
    %p436 = scmp.eq.s32.totalorder %s25, 0
    %p437 = por %p435, %p436
    %p438 = scmp.ne.s32.totalorder %s427, %s430
    %p439 = scmp.eq.s32.totalorder %s30, 1
    %p440 = por %p438, %p439
    %p441 = scmp.ne.s32.totalorder %s430, %s431
    %p442 = scmp.eq.s32.totalorder %s30, 0
    %p443 = por %p441, %p442
    %p444 = scmp.ne.s32.totalorder %s430, %s431
    %p445 = scmp.eq.s32.totalorder %s31, 1
    %p446 = por %p444, %p445
    %p448 = scmp.ne.s32.totalorder %s431, %s447
    %p449 = scmp.eq.s32.totalorder %s31, 0
    %p450 = por %p448, %p449
    %s451 = ssub.s32 %s33, %s40
    %p452 = scmp.eq.s32.totalorder %s451, 0
    %s454 = sadd.s32 %s453, 1
    %s455 = scalar_select %p452, %s453, %s454
    %p458 = pneg %p452
    %p459 = scmp.eq.s32.totalorder %s25, 1
    %p460 = por %p458, %p459
    %p461 = scmp.ne.s32.totalorder %s453, %s456
    %p462 = scmp.eq.s32.totalorder %s25, 0
    %p463 = por %p461, %p462
    %p464 = scmp.ne.s32.totalorder %s453, %s456
    %p465 = scmp.eq.s32.totalorder %s30, 1
    %p466 = por %p464, %p465
    %p467 = scmp.ne.s32.totalorder %s456, %s457
    %p468 = scmp.eq.s32.totalorder %s30, 0
    %p469 = por %p467, %p468
    %p470 = scmp.ne.s32.totalorder %s456, %s457
    %p471 = scmp.eq.s32.totalorder %s31, 1
    %p472 = por %p470, %p471
    %p474 = scmp.ne.s32.totalorder %s457, %s473
    %p475 = scmp.eq.s32.totalorder %s31, 0
    %p476 = por %p474, %p475
    %s477 = ssub.s32 %s33, %s40
    %p478 = scmp.eq.s32.totalorder %s477, 0
    %s480 = sadd.s32 %s479, 1
    %s481 = scalar_select %p478, %s479, %s480
    %p484 = pneg %p478
    %p485 = scmp.eq.s32.totalorder %s25, 1
    %p486 = por %p484, %p485
    %p487 = scmp.ne.s32.totalorder %s479, %s482
    %p488 = scmp.eq.s32.totalorder %s25, 0
    %p489 = por %p487, %p488
    %p490 = scmp.ne.s32.totalorder %s479, %s482
    %p491 = scmp.eq.s32.totalorder %s30, 1
    %p492 = por %p490, %p491
    %p493 = scmp.ne.s32.totalorder %s482, %s483
    %p494 = scmp.eq.s32.totalorder %s30, 0
    %p495 = por %p493, %p494
    %p496 = scmp.ne.s32.totalorder %s482, %s483
    %p497 = scmp.eq.s32.totalorder %s31, 1
    %p498 = por %p496, %p497
    %p500 = scmp.ne.s32.totalorder %s483, %s499
    %p501 = scmp.eq.s32.totalorder %s31, 0
    %p502 = por %p500, %p501
    %s503 = ssub.s32 %s33, %s40
    %p504 = scmp.eq.s32.totalorder %s503, 0
    %s506 = sadd.s32 %s505, 1
    %s507 = scalar_select %p504, %s505, %s506
    %p510 = pneg %p504
    %p511 = scmp.eq.s32.totalorder %s25, 1
    %p512 = por %p510, %p511
    %p513 = scmp.ne.s32.totalorder %s505, %s508
    %p514 = scmp.eq.s32.totalorder %s25, 0
    %p515 = por %p513, %p514
    %p516 = scmp.ne.s32.totalorder %s505, %s508
    %p517 = scmp.eq.s32.totalorder %s30, 1
    %p518 = por %p516, %p517
    %p519 = scmp.ne.s32.totalorder %s508, %s509
    %p520 = scmp.eq.s32.totalorder %s30, 0
    %p521 = por %p519, %p520
    %p522 = scmp.ne.s32.totalorder %s508, %s509
    %p523 = scmp.eq.s32.totalorder %s31, 1
    %p524 = por %p522, %p523
    %p526 = scmp.ne.s32.totalorder %s509, %s525
    %p527 = scmp.eq.s32.totalorder %s31, 0
    %p528 = por %p526, %p527
    %s529 = ssub.s32 %s32, %s44
    %p530 = scmp.eq.s32.totalorder %s529, 0
    %s532 = sadd.s32 %s531, 1
    %s533 = scalar_select %p530, %s531, %s532
    %p536 = pneg %p530
    %p537 = scmp.eq.s32.totalorder %s25, 1
    %p538 = por %p536, %p537
    %p539 = scmp.ne.s32.totalorder %s531, %s534
    %p540 = scmp.eq.s32.totalorder %s25, 0
    %p541 = por %p539, %p540
    %p542 = scmp.ne.s32.totalorder %s531, %s534
    %p543 = scmp.eq.s32.totalorder %s30, 1
    %p544 = por %p542, %p543
    %p545 = scmp.ne.s32.totalorder %s534, %s535
    %p546 = scmp.eq.s32.totalorder %s30, 0
    %p547 = por %p545, %p546
    %p548 = scmp.ne.s32.totalorder %s534, %s535
    %p549 = scmp.eq.s32.totalorder %s31, 1
    %p550 = por %p548, %p549
    %p552 = scmp.ne.s32.totalorder %s535, %s551
    %p553 = scmp.eq.s32.totalorder %s31, 0
    %p554 = por %p552, %p553
    %p555 = scmp.le.s32.totalorder 1, %s25
    %p556 = scmp.lt.s32.totalorder %s25, 3
    %p557 = pnand %p555, %p556
    %p558 = pneg %p557
    // Predicated region
    $region9: #{clip_finetune_forward.4} parent=5 // pred_check
      _
    $region10: #{clip_finetune_forward.4} parent=5 // pred_check_branch
      %560 = sbr.rel (%p557) target = $region12
    $region11: #{clip_finetune_forward.4} parent=5 // pred_region
      %s561 = ssub.s32 %s25, 1
      // Predicated region
      $region13: #{clip_finetune_forward.4} parent=11 // pred_check
        %p562 = pneg %p63
      $region14: #{clip_finetune_forward.4} parent=11 // pred_check_branch
        %564 = sbr.rel (%p562) target = $region16
      $region15: #{clip_finetune_forward.4} parent=11 // pred_region
        %s565 = smul.u32 2, %s34
        %p566 = scmp.lt.s32.totalorder %s565, 1
        %s567 = scalar_select %p566, %s565, 1
        %s568 = smul.addr %s567, 8
        %s569 = scalar_lea.vmem %s0, %s568
        %s570 = smul.u32 2, %s34
      $region16: #{clip_finetune_forward.4} parent=11 // pred_fallthru
        _
      // Predicated region
      $region17: #{clip_finetune_forward.4} parent=11 // pred_check
        %p571 = pneg %p84
      $region18: #{clip_finetune_forward.4} parent=11 // pred_check_branch
        %573 = sbr.rel (%p571) target = $region20
      $region19: #{clip_finetune_forward.4} parent=11 // pred_region
        _
      $region20: #{clip_finetune_forward.4} parent=11 // pred_fallthru
        _
      // Predicated region
      $region21: #{clip_finetune_forward.4} parent=11 // pred_check
        %p574 = pneg %p105
      $region22: #{clip_finetune_forward.4} parent=11 // pred_check_branch
        %576 = sbr.rel (%p574) target = $region24
      $region23: #{clip_finetune_forward.4} parent=11 // pred_region
        _
      $region24: #{clip_finetune_forward.4} parent=11 // pred_fallthru
        _
    $region12: #{clip_finetune_forward.4} parent=5 // pred_fallthru
      _
    %p577 = scmp.lt.s32.totalorder %s25, 2
    // Predicated region
    $region25: #{clip_finetune_forward.4} parent=5 // pred_check
      %p578 = pneg %p577
    $region26: #{clip_finetune_forward.4} parent=5 // pred_check_branch
      %580 = sbr.rel (%p578) target = $region28
    $region27: #{clip_finetune_forward.4} parent=5 // pred_region
      // Predicated region
      $region29: #{clip_finetune_forward.4} parent=27 // pred_check
        %p581 = pneg %p125
      $region30: #{clip_finetune_forward.4} parent=27 // pred_check_branch
        %583 = sbr.rel (%p581) target = $region32
      $region31: #{clip_finetune_forward.4} parent=27 // pred_region
        %p584 = scmp.lt.s32.totalorder %s33, 1
        %s585 = scalar_select %p584, %s33, 1
        %s586 = scalar_lea.vmem %s3, %s585
      $region32: #{clip_finetune_forward.4} parent=27 // pred_fallthru
        _
      // Predicated region
      $region33: #{clip_finetune_forward.4} parent=27 // pred_check
        %p587 = pneg %p151
      $region34: #{clip_finetune_forward.4} parent=27 // pred_check_branch
        %589 = sbr.rel (%p587) target = $region36
      $region35: #{clip_finetune_forward.4} parent=27 // pred_region
        %p590 = scmp.lt.s32.totalorder %s33, 1
        %s591 = scalar_select %p590, %s33, 1
        %s592 = scalar_lea.vmem %s4, %s591
      $region36: #{clip_finetune_forward.4} parent=27 // pred_fallthru
        _
      // Predicated region
      $region37: #{clip_finetune_forward.4} parent=27 // pred_check
        %p593 = pneg %p177
      $region38: #{clip_finetune_forward.4} parent=27 // pred_check_branch
        %595 = sbr.rel (%p593) target = $region40
      $region39: #{clip_finetune_forward.4} parent=27 // pred_region
        %p596 = scmp.lt.s32.totalorder %s33, 1
        %s597 = scalar_select %p596, %s33, 1
        %s598 = smul.addr %s597, 4
        %s599 = smul.addr %s598, 4
        %s600 = scalar_lea.vmem %s5, %s599
      $region40: #{clip_finetune_forward.4} parent=27 // pred_fallthru
        _
      // Predicated region
      $region41: #{clip_finetune_forward.4} parent=27 // pred_check
        %p601 = pneg %p203
      $region42: #{clip_finetune_forward.4} parent=27 // pred_check_branch
        %603 = sbr.rel (%p601) target = $region44
      $region43: #{clip_finetune_forward.4} parent=27 // pred_region
        %p604 = scmp.lt.s32.totalorder %s33, 1
        %s605 = scalar_select %p604, %s33, 1
        %s606 = scalar_lea.vmem %s6, %s605
      $region44: #{clip_finetune_forward.4} parent=27 // pred_fallthru
        _
      // Predicated region
      $region45: #{clip_finetune_forward.4} parent=27 // pred_check
        %p607 = pneg %p229
      $region46: #{clip_finetune_forward.4} parent=27 // pred_check_branch
        %609 = sbr.rel (%p607) target = $region48
      $region47: #{clip_finetune_forward.4} parent=27 // pred_region
        %p610 = scmp.lt.s32.totalorder %s33, 1
        %s611 = scalar_select %p610, %s33, 1
        %s612 = smul.addr %s611, 4
        %s613 = smul.addr %s612, 4
        %s614 = scalar_lea.vmem %s7, %s613
      $region48: #{clip_finetune_forward.4} parent=27 // pred_fallthru
        _
      // Predicated region
      $region49: #{clip_finetune_forward.4} parent=27 // pred_check
        %p615 = pneg %p255
      $region50: #{clip_finetune_forward.4} parent=27 // pred_check_branch
        %617 = sbr.rel (%p615) target = $region52
      $region51: #{clip_finetune_forward.4} parent=27 // pred_region
        %p618 = scmp.lt.s32.totalorder %s33, 1
        %s619 = scalar_select %p618, %s33, 1
        %s620 = scalar_lea.vmem %s8, %s619
      $region52: #{clip_finetune_forward.4} parent=27 // pred_fallthru
        _
      // Predicated region
      $region53: #{clip_finetune_forward.4} parent=27 // pred_check
        %p621 = pneg %p281
      $region54: #{clip_finetune_forward.4} parent=27 // pred_check_branch
        %623 = sbr.rel (%p621) target = $region56
      $region55: #{clip_finetune_forward.4} parent=27 // pred_region
        %p624 = scmp.lt.s32.totalorder %s33, 1
        %s625 = scalar_select %p624, %s33, 1
        %s626 = smul.addr %s625, 4
        %s627 = smul.addr %s626, 4
        %s628 = scalar_lea.vmem %s9, %s627
      $region56: #{clip_finetune_forward.4} parent=27 // pred_fallthru
        _
      // Predicated region
      $region57: #{clip_finetune_forward.4} parent=27 // pred_check
        %p629 = pneg %p307
      $region58: #{clip_finetune_forward.4} parent=27 // pred_check_branch
        %631 = sbr.rel (%p629) target = $region60
      $region59: #{clip_finetune_forward.4} parent=27 // pred_region
        %p632 = scmp.lt.s32.totalorder %s33, 1
        %s633 = scalar_select %p632, %s33, 1
        %s634 = scalar_lea.vmem %s10, %s633
      $region60: #{clip_finetune_forward.4} parent=27 // pred_fallthru
        _
      // Predicated region
      $region61: #{clip_finetune_forward.4} parent=27 // pred_check
        %p635 = pneg %p333
      $region62: #{clip_finetune_forward.4} parent=27 // pred_check_branch
        %637 = sbr.rel (%p635) target = $region64
      $region63: #{clip_finetune_forward.4} parent=27 // pred_region
        %p638 = scmp.lt.s32.totalorder %s33, 1
        %s639 = scalar_select %p638, %s33, 1
        %s640 = smul.addr %s639, 4
        %s641 = smul.addr %s640, 4
        %s642 = scalar_lea.vmem %s11, %s641
      $region64: #{clip_finetune_forward.4} parent=27 // pred_fallthru
        _
      // Predicated region
      $region65: #{clip_finetune_forward.4} parent=27 // pred_check
        %p643 = pneg %p359
      $region66: #{clip_finetune_forward.4} parent=27 // pred_check_branch
        %645 = sbr.rel (%p643) target = $region68
      $region67: #{clip_finetune_forward.4} parent=27 // pred_region
        %p646 = scmp.lt.s32.totalorder %s33, 1
        %s647 = scalar_select %p646, %s33, 1
        %s648 = scalar_lea.vmem %s12, %s647
      $region68: #{clip_finetune_forward.4} parent=27 // pred_fallthru
        _
      // Predicated region
      $region69: #{clip_finetune_forward.4} parent=27 // pred_check
        %p649 = pneg %p385
      $region70: #{clip_finetune_forward.4} parent=27 // pred_check_branch
        %651 = sbr.rel (%p649) target = $region72
      $region71: #{clip_finetune_forward.4} parent=27 // pred_region
        %p652 = scmp.lt.s32.totalorder %s33, 1
        %s653 = scalar_select %p652, %s33, 1
        %s654 = scalar_lea.vmem %s13, %s653
      $region72: #{clip_finetune_forward.4} parent=27 // pred_fallthru
        _
      // Predicated region
      $region73: #{clip_finetune_forward.4} parent=27 // pred_check
        %p655 = pneg %p411
      $region74: #{clip_finetune_forward.4} parent=27 // pred_check_branch
        %657 = sbr.rel (%p655) target = $region76
      $region75: #{clip_finetune_forward.4} parent=27 // pred_region
        %p658 = scmp.lt.s32.totalorder %s33, 1
        %s659 = scalar_select %p658, %s33, 1
        %s660 = scalar_lea.vmem %s14, %s659
      $region76: #{clip_finetune_forward.4} parent=27 // pred_fallthru
        _
      // Predicated region
      $region77: #{clip_finetune_forward.4} parent=27 // pred_check
        %p661 = pneg %p437
      $region78: #{clip_finetune_forward.4} parent=27 // pred_check_branch
        %663 = sbr.rel (%p661) target = $region80
      $region79: #{clip_finetune_forward.4} parent=27 // pred_region
        %p664 = scmp.lt.s32.totalorder %s33, 1
        %s665 = scalar_select %p664, %s33, 1
        %s666 = smul.addr %s665, 4
        %s667 = smul.addr %s666, 4
        %s668 = scalar_lea.vmem %s15, %s667
      $region80: #{clip_finetune_forward.4} parent=27 // pred_fallthru
        _
      // Predicated region
      $region81: #{clip_finetune_forward.4} parent=27 // pred_check
        %p669 = pneg %p463
      $region82: #{clip_finetune_forward.4} parent=27 // pred_check_branch
        %671 = sbr.rel (%p669) target = $region84
      $region83: #{clip_finetune_forward.4} parent=27 // pred_region
        %p672 = scmp.lt.s32.totalorder %s33, 1
        %s673 = scalar_select %p672, %s33, 1
        %s674 = scalar_lea.vmem %s16, %s673
      $region84: #{clip_finetune_forward.4} parent=27 // pred_fallthru
        _
      // Predicated region
      $region85: #{clip_finetune_forward.4} parent=27 // pred_check
        %p675 = pneg %p489
      $region86: #{clip_finetune_forward.4} parent=27 // pred_check_branch
        %677 = sbr.rel (%p675) target = $region88
      $region87: #{clip_finetune_forward.4} parent=27 // pred_region
        %p678 = scmp.lt.s32.totalorder %s33, 1
        %s679 = scalar_select %p678, %s33, 1
        %s680 = smul.addr %s679, 8
        %s681 = smul.addr %s680, 4
        %s682 = scalar_lea.vmem %s17, %s681
      $region88: #{clip_finetune_forward.4} parent=27 // pred_fallthru
        _
      // Predicated region
      $region89: #{clip_finetune_forward.4} parent=27 // pred_check
        %p683 = pneg %p515
      $region90: #{clip_finetune_forward.4} parent=27 // pred_check_branch
        %685 = sbr.rel (%p683) target = $region92
      $region91: #{clip_finetune_forward.4} parent=27 // pred_region
        %p686 = scmp.lt.s32.totalorder %s33, 1
        %s687 = scalar_select %p686, %s33, 1
        %s688 = scalar_lea.vmem %s18, %s687
      $region92: #{clip_finetune_forward.4} parent=27 // pred_fallthru
        _
    $region28: #{clip_finetune_forward.4} parent=5 // pred_fallthru
      _
    %p689 = scmp.le.s32.totalorder 1, %s25
    %p690 = scmp.lt.s32.totalorder %s25, 3
    %p691 = pnand %p689, %p690
    %p692 = pneg %p691
    // Predicated region
    $region93: #{clip_finetune_forward.4} parent=5 // pred_check
      _
    $region94: #{clip_finetune_forward.4} parent=5 // pred_check_branch
      %694 = sbr.rel (%p691) target = $region96
    $region95: #{clip_finetune_forward.4} parent=5 // pred_region
      %s695 = ssub.s32 %s25, 1
      %s696 = smul.u32 2, %s34
      %p697 = scmp.lt.s32.totalorder %s696, 1
      %s698 = scalar_select %p697, %s696, 1
      %s699 = smul.addr %s698, 8
      %s700 = scalar_lea.vmem %s0, %s699
      %p701 = pneg %p63
      %p702 = pneg %p60
      %p703 = pneg %p84
      %p704 = pneg %p81
      %p705 = pneg %p105
      %p706 = pneg %p102
      %p707 = scmp.lt.s32.totalorder %s35, 1
      %s708 = scalar_select %p707, %s35, 1
      %s709 = scalar_lea.vmem %s3, %s708
      %p710 = pneg %p131
      %p711 = pneg %p128
      %p712 = scmp.lt.s32.totalorder %s35, 1
      %s713 = scalar_select %p712, %s35, 1
      %s714 = scalar_lea.vmem %s4, %s713
      %p715 = pneg %p157
      %p716 = pneg %p154
      %p717 = scmp.lt.s32.totalorder %s35, 1
      %s718 = scalar_select %p717, %s35, 1
      %s719 = smul.addr %s718, 4
      %s720 = smul.addr %s719, 4
      %s721 = scalar_lea.vmem %s5, %s720
      %p722 = pneg %p183
      %p723 = pneg %p180
      %p724 = scmp.lt.s32.totalorder %s35, 1
      %s725 = scalar_select %p724, %s35, 1
      %s726 = scalar_lea.vmem %s6, %s725
      %p727 = pneg %p209
      %p728 = pneg %p206
      %p729 = scmp.lt.s32.totalorder %s35, 1
      %s730 = scalar_select %p729, %s35, 1
      %s731 = smul.addr %s730, 4
      %s732 = smul.addr %s731, 4
      %s733 = scalar_lea.vmem %s7, %s732
      %p734 = pneg %p235
      %p735 = pneg %p232
      %p736 = scmp.lt.s32.totalorder %s35, 1
      %s737 = scalar_select %p736, %s35, 1
      %s738 = scalar_lea.vmem %s8, %s737
      %p739 = pneg %p261
      %p740 = pneg %p258
      %p741 = scmp.lt.s32.totalorder %s35, 1
      %s742 = scalar_select %p741, %s35, 1
      %s743 = smul.addr %s742, 4
      %s744 = smul.addr %s743, 4
      %s745 = scalar_lea.vmem %s9, %s744
      %p746 = pneg %p287
      %p747 = pneg %p284
      %p748 = scmp.lt.s32.totalorder %s35, 1
      %s749 = scalar_select %p748, %s35, 1
      %s750 = scalar_lea.vmem %s10, %s749
      %p751 = pneg %p313
      %p752 = pneg %p310
      %p753 = scmp.lt.s32.totalorder %s35, 1
      %s754 = scalar_select %p753, %s35, 1
      %s755 = smul.addr %s754, 4
      %s756 = smul.addr %s755, 4
      %s757 = scalar_lea.vmem %s11, %s756
      %p758 = pneg %p339
      %p759 = pneg %p336
      %p760 = scmp.lt.s32.totalorder %s35, 1
      %s761 = scalar_select %p760, %s35, 1
      %s762 = scalar_lea.vmem %s12, %s761
      %p763 = pneg %p365
      %p764 = pneg %p362
      %p765 = scmp.lt.s32.totalorder %s35, 1
      %s766 = scalar_select %p765, %s35, 1
      %s767 = scalar_lea.vmem %s13, %s766
      %p768 = pneg %p391
      %p769 = pneg %p388
      %p770 = scmp.lt.s32.totalorder %s35, 1
      %s771 = scalar_select %p770, %s35, 1
      %s772 = scalar_lea.vmem %s14, %s771
      %p773 = pneg %p417
      %p774 = pneg %p414
      %p775 = scmp.lt.s32.totalorder %s35, 1
      %s776 = scalar_select %p775, %s35, 1
      %s777 = smul.addr %s776, 4
      %s778 = smul.addr %s777, 4
      %s779 = scalar_lea.vmem %s15, %s778
      %p780 = pneg %p443
      %p781 = pneg %p440
      %p782 = scmp.lt.s32.totalorder %s35, 1
      %s783 = scalar_select %p782, %s35, 1
      %s784 = scalar_lea.vmem %s16, %s783
      %p785 = pneg %p469
      %p786 = pneg %p466
      %p787 = scmp.lt.s32.totalorder %s35, 1
      %s788 = scalar_select %p787, %s35, 1
      %s789 = smul.addr %s788, 8
      %s790 = smul.addr %s789, 4
      %s791 = scalar_lea.vmem %s17, %s790
      %p792 = pneg %p495
      %p793 = pneg %p492
      %p794 = scmp.lt.s32.totalorder %s35, 1
      %s795 = scalar_select %p794, %s35, 1
      %s796 = scalar_lea.vmem %s18, %s795
      %p797 = pneg %p521
      %p798 = pneg %p518
      %p799 = pneg %p547
      %p800 = pneg %p544
      %s801 = smul.u32 2, %s34
      %p802 = scmp.lt.s32.totalorder %s801, 1
      %s803 = scalar_select %p802, %s801, 1
      %s804 = smul.addr %s803, 8
      %s805 = scalar_lea.vmem %s19, %s804
      %s806 = smul.u32 2, %s34
      %p807 = scmp.lt.s32.totalorder %s806, 1
      %s808 = scalar_select %p807, %s806, 1
      %s809 = smul.addr %s808, 8
      %s810 = scalar_lea.vmem %s0, %s809
      %s811 = smul.u32 2, %s34
      %p812 = scmp.lt.s32.totalorder %s35, 1
      %s813 = scalar_select %p812, %s35, 1
      %s814 = scalar_lea.vmem %s3, %s813
      %p815 = scmp.lt.s32.totalorder %s35, 1
      %s816 = scalar_select %p815, %s35, 1
      %s817 = scalar_lea.vmem %s4, %s816
      %p818 = scmp.lt.s32.totalorder %s35, 1
      %s819 = scalar_select %p818, %s35, 1
      %s820 = smul.addr %s819, 4
      %s821 = smul.addr %s820, 4
      %s822 = scalar_lea.vmem %s5, %s821
      %p823 = scmp.lt.s32.totalorder %s35, 1
      %s824 = scalar_select %p823, %s35, 1
      %s825 = scalar_lea.vmem %s6, %s824
      %p826 = scmp.lt.s32.totalorder %s35, 1
      %s827 = scalar_select %p826, %s35, 1
      %s828 = smul.addr %s827, 4
      %s829 = smul.addr %s828, 4
      %s830 = scalar_lea.vmem %s7, %s829
      %p831 = scmp.lt.s32.totalorder %s35, 1
      %s832 = scalar_select %p831, %s35, 1
      %s833 = scalar_lea.vmem %s8, %s832
      %p834 = scmp.lt.s32.totalorder %s35, 1
      %s835 = scalar_select %p834, %s35, 1
      %s836 = smul.addr %s835, 4
      %s837 = smul.addr %s836, 4
      %s838 = scalar_lea.vmem %s9, %s837
      %p839 = scmp.lt.s32.totalorder %s35, 1
      %s840 = scalar_select %p839, %s35, 1
      %s841 = scalar_lea.vmem %s10, %s840
      %p842 = scmp.lt.s32.totalorder %s35, 1
      %s843 = scalar_select %p842, %s35, 1
      %s844 = smul.addr %s843, 4
      %s845 = smul.addr %s844, 4
      %s846 = scalar_lea.vmem %s11, %s845
      %p847 = scmp.lt.s32.totalorder %s35, 1
      %s848 = scalar_select %p847, %s35, 1
      %s849 = scalar_lea.vmem %s12, %s848
      %p850 = scmp.lt.s32.totalorder %s35, 1
      %s851 = scalar_select %p850, %s35, 1
      %s852 = scalar_lea.vmem %s13, %s851
      %p853 = scmp.lt.s32.totalorder %s35, 1
      %s854 = scalar_select %p853, %s35, 1
      %s855 = scalar_lea.vmem %s14, %s854
      %p856 = scmp.lt.s32.totalorder %s35, 1
      %s857 = scalar_select %p856, %s35, 1
      %s858 = smul.addr %s857, 4
      %s859 = smul.addr %s858, 4
      %s860 = scalar_lea.vmem %s15, %s859
      %p861 = scmp.lt.s32.totalorder %s35, 1
      %s862 = scalar_select %p861, %s35, 1
      %s863 = scalar_lea.vmem %s16, %s862
      %p864 = scmp.lt.s32.totalorder %s35, 1
      %s865 = scalar_select %p864, %s35, 1
      %s866 = smul.addr %s865, 8
      %s867 = smul.addr %s866, 4
      %s868 = scalar_lea.vmem %s17, %s867
      %p869 = scmp.lt.s32.totalorder %s35, 1
      %s870 = scalar_select %p869, %s35, 1
      %s871 = scalar_lea.vmem %s18, %s870
      %s872 = smul.u32 2, %s34
      %p873 = scmp.lt.s32.totalorder %s872, 1
      %s874 = scalar_select %p873, %s872, 1
      %s875 = smul.addr %s874, 8
      %s876 = scalar_lea.vmem %s19, %s875
      %s877 = smul.u32 2, %s34
      %p879 = scmp.eq.s32.totalorder %s35, 0
      // Predicated region
      $region97: #{clip_finetune_forward.4} parent=95 // pred_check
        %p880 = pneg %p879
      $region98: #{clip_finetune_forward.4} parent=95 // pred_check_branch
        %882 = sbr.rel (%p880) target = $region100
      $region99: #{clip_finetune_forward.4} parent=95 // pred_region
        %v883 = vld [vmem:[%s810] sm:$0xff]
        %v884 = vld [vmem:[%s810 + $0x8] sm:$0xff]
        %v885 = vld [vmem:[%s1] sm:$0x1]
        %v886 = vld [vmem:[%s2] sm:$0x1]
        %vm887 = vcmask 261120
        %v888 = vsel %vm887, %v883, 0.0
        %889 = vadd.xlane.f32.xlu0 %v888
        %v890 = vpop.xlane.xlu0 %889
        %v891 = vsel %vm887, %v884, 0.0
        %892 = vadd.xlane.f32.xlu0 %v891
        %v893 = vpop.xlane.xlu0 %892
        %v894 = vrcp.pop 32.0
        %v895 = vmul.f32 %v890, %v894
        %v896 = vmul.f32 %v893, %v894
        %v897 = vsub.f32 %v883, %v895
        %v898 = vsub.f32 %v884, %v896
        %v899 = vmul.f32 %v897, %v897
        %v900 = vmul.f32 %v898, %v898
        %v901 = vsel %vm887, %v899, 0.0
        %902 = vadd.xlane.f32.xlu0 %v901
        %v903 = vpop.xlane.xlu0 %902
        %v904 = vsel %vm887, %v900, 0.0
        %905 = vadd.xlane.f32.xlu0 %v904
        %v906 = vpop.xlane.xlu0 %905
        %v907 = vmul.f32 %v903, %v894
        %v908 = vmul.f32 %v906, %v894
        %v909 = vadd.f32 %v907, 1e-05
        %v910 = vadd.f32 %v908, 1e-05
        %v911 = vrsqrt.pop %v909
        %v912 = vrsqrt.pop %v910
        %v913 = vmul.f32 %v897, %v911
        %v914 = vmul.f32 %v898, %v912
        %v916 = vlaneseq
        %v917 = vshrl.u32 %v916, 7
        %v918 = vsub.s32 0, %v917
        %v919 = vrot.slane %v885, %v918
        %v921 = vmul.f32 %v913, %v919
        %v922 = vmul.f32 %v914, %v919
        %v924 = vlaneseq
        %v925 = vshrl.u32 %v924, 7
        %v926 = vsub.s32 0, %v925
        %v927 = vrot.slane %v886, %v926
        %v929 = vadd.f32 %v921, %v927
        %v930 = vadd.f32 %v922, %v927
        %931 = vst.msk [vmem:[%s876] sm:$0xff] %vm887, %v929
        %932 = vst.msk [vmem:[%s876 + $0x8] sm:$0xff] %vm887, %v930
      $region100: #{clip_finetune_forward.4} parent=95 // pred_fallthru
        _
      %v933 = vld [vmem:[%s876] sm:$0xff]
      %v934 = vld [vmem:[%s876 + $0x8] sm:$0xff]
      %v935 = vld [vmem:[%s814] sm:$0x1]
      %v936 = vld [vmem:[%s817] sm:$0x1]
      %vm937 = vcmask 261120
      %v938 = vsel %vm937, %v933, 0.0
      %939 = vadd.xlane.f32.xlu0 %v938
      %v940 = vpop.xlane.xlu0 %939
      %v941 = vsel %vm937, %v934, 0.0
      %942 = vadd.xlane.f32.xlu0 %v941
      %v943 = vpop.xlane.xlu0 %942
      %v944 = vrcp.pop 32.0
      %v945 = vmul.f32 %v940, %v944
      %v946 = vmul.f32 %v943, %v944
      %v947 = vsub.f32 %v933, %v945
      %v948 = vsub.f32 %v934, %v946
      %v949 = vmul.f32 %v947, %v947
      %v950 = vmul.f32 %v948, %v948
      %v951 = vsel %vm937, %v949, 0.0
      %952 = vadd.xlane.f32.xlu0 %v951
      %v953 = vpop.xlane.xlu0 %952
      %v954 = vsel %vm937, %v950, 0.0
      %955 = vadd.xlane.f32.xlu0 %v954
      %v956 = vpop.xlane.xlu0 %955
      %v957 = vmul.f32 %v953, %v944
      %v958 = vmul.f32 %v956, %v944
      %v959 = vadd.f32 %v957, 1e-05
      %v960 = vadd.f32 %v958, 1e-05
      %v961 = vrsqrt.pop %v959
      %v962 = vrsqrt.pop %v960
      %v963 = vmul.f32 %v947, %v961
      %v964 = vmul.f32 %v948, %v962
      %v966 = vlaneseq
      %v967 = vshrl.u32 %v966, 7
      %v968 = vsub.s32 0, %v967
      %v969 = vrot.slane %v935, %v968
      %v971 = vmul.f32 %v963, %v969
      %v972 = vmul.f32 %v964, %v969
      %v974 = vlaneseq
      %v975 = vshrl.u32 %v974, 7
      %v976 = vsub.s32 0, %v975
      %v977 = vrot.slane %v936, %v976
      %v979 = vadd.f32 %v971, %v977
      %v980 = vadd.f32 %v972, %v977
      %v981 = vpack.c.bf16 %v980, %v979
      %v982 = vld [vmem:[%s822] sm:$0xf]
      %v983 = vld [vmem:[%s822 + $0x4] sm:$0xf]
      %v984 = vld [vmem:[%s822 + $0x8] sm:$0xf]
      %v985 = vld [vmem:[%s822 + $0xc] sm:$0xf]
      %v986 = vld [vmem:[%s825] sm:$0x1]
      %v988 = vlaneseq
      %v989 = vshrl.u32 %v988, 7
      %v990 = vsub.s32 0, %v989
      %v991 = vrot.slane %v986, %v990
      %v997 = vunpack.c.l.b16 %v982
      %v998 = vunpack.c.l.b16 %v983
      %v999 = vunpack.c.l.b16 %v984
      %v1000 = vunpack.c.l.b16 %v985
      %v1001 = vpack.c.b16 %v998, %v997
      %v1002 = vpack.c.b16 %v1000, %v999
      %v1006 = vsel %vm937, %v981, 0
      %1008 = vmatprep.subr.bf16.mxu0 0
      %1009 = vmatpush1.bf16.msra.mxu0 0
      %1010 = vmatprep.subr.bf16.mxu0 0
      %1011 = vmatpush1.bf16.msra.mxu0 0
      %1012 = vmatprep.subr.bf16.mxu0 0
      %1013 = vmatpush1.bf16.msra.mxu0 0
      %1014 = vmatprep.subr.bf16.mxu0 0
      %1015 = vmatpush1.bf16.msra.mxu0 0
      %1016 = vmatprep.subr.bf16.mxu0 0
      %1017 = vmatpush1.bf16.msra.mxu0 0
      %1018 = vmatprep.subr.bf16.mxu0 0
      %1019 = vmatpush1.bf16.msra.mxu0 0
      %1020 = vmatprep.subr.bf16.mxu0 0
      %1021 = vmatpush1.bf16.msra.mxu0 %v1002
      %1022 = vmatprep.subr.bf16.mxu0 0
      %1023 = vmatpush1.bf16.msra.mxu0 %v1001
      %1024 = vmatprep.subr.bf16.mxu0 0
      %1025 = vmatpush2.bf16.msra.mxu0 0
      %1026 = vmatprep.subr.bf16.mxu0 0
      %1027 = vmatpush2.bf16.msra.mxu0 0
      %1028 = vmatprep.subr.bf16.mxu0 0
      %1029 = vmatpush2.bf16.msra.mxu0 0
      %1030 = vmatprep.subr.bf16.mxu0 0
      %1031 = vmatpush2.bf16.msra.mxu0 0
      %1032 = vmatprep.subr.bf16.mxu0 0
      %1033 = vmatpush2.bf16.msra.mxu0 0
      %1034 = vmatprep.subr.bf16.mxu0 0
      %1035 = vmatpush2.bf16.msra.mxu0 0
      %1036 = vmatprep.subr.bf16.mxu0 0
      %1037 = vmatpush2.bf16.msra.mxu0 0
      %1038 = vmatprep.subr.bf16.mxu0 0
      %1039 = vmatpush2.bf16.msra.mxu0 0
      %1040 = vmatprep.mubr.bf16.mxu0 0
      %1041 = vmatmul.mubr.bf16.gmra.mxu0 %v1006
      %v1042 = vpop.f32.mrf.mxu0
      %v1043 = vadd.f32 %v991, %v1042
      %v1044 = vpop.f32.mrf.mxu0
      %v1045 = vpop.f32.mrf.mxu0
      %v1046 = vadd.f32 %v991, %v1045
      %v1047 = vpop.f32.mrf.mxu0
      %1048 = vdwg.mxu0
      %v1049 = vld [vmem:[%s830] sm:$0xf]
      %v1050 = vld [vmem:[%s830 + $0x4] sm:$0xf]
      %v1051 = vld [vmem:[%s830 + $0x8] sm:$0xf]
      %v1052 = vld [vmem:[%s830 + $0xc] sm:$0xf]
      %v1053 = vld [vmem:[%s833] sm:$0x1]
      %v1055 = vlaneseq
      %v1056 = vshrl.u32 %v1055, 7
      %v1057 = vsub.s32 0, %v1056
      %v1058 = vrot.slane %v1053, %v1057
      %v1064 = vunpack.c.l.b16 %v1049
      %v1065 = vunpack.c.l.b16 %v1050
      %v1066 = vunpack.c.l.b16 %v1051
      %v1067 = vunpack.c.l.b16 %v1052
      %v1068 = vpack.c.b16 %v1065, %v1064
      %v1069 = vpack.c.b16 %v1067, %v1066
      %1072 = vmatprep.subr.bf16.mxu0 0
      %1073 = vmatpush1.bf16.msra.mxu0 0
      %1074 = vmatprep.subr.bf16.mxu0 0
      %1075 = vmatpush1.bf16.msra.mxu0 0
      %1076 = vmatprep.subr.bf16.mxu0 0
      %1077 = vmatpush1.bf16.msra.mxu0 0
      %1078 = vmatprep.subr.bf16.mxu0 0
      %1079 = vmatpush1.bf16.msra.mxu0 0
      %1080 = vmatprep.subr.bf16.mxu0 0
      %1081 = vmatpush1.bf16.msra.mxu0 0
      %1082 = vmatprep.subr.bf16.mxu0 0
      %1083 = vmatpush1.bf16.msra.mxu0 0
      %1084 = vmatprep.subr.bf16.mxu0 0
      %1085 = vmatpush1.bf16.msra.mxu0 %v1069
      %1086 = vmatprep.subr.bf16.mxu0 0
      %1087 = vmatpush1.bf16.msra.mxu0 %v1068
      %1088 = vmatprep.subr.bf16.mxu0 0
      %1089 = vmatpush2.bf16.msra.mxu0 0
      %1090 = vmatprep.subr.bf16.mxu0 0
      %1091 = vmatpush2.bf16.msra.mxu0 0
      %1092 = vmatprep.subr.bf16.mxu0 0
      %1093 = vmatpush2.bf16.msra.mxu0 0
      %1094 = vmatprep.subr.bf16.mxu0 0
      %1095 = vmatpush2.bf16.msra.mxu0 0
      %1096 = vmatprep.subr.bf16.mxu0 0
      %1097 = vmatpush2.bf16.msra.mxu0 0
      %1098 = vmatprep.subr.bf16.mxu0 0
      %1099 = vmatpush2.bf16.msra.mxu0 0
      %1100 = vmatprep.subr.bf16.mxu0 0
      %1101 = vmatpush2.bf16.msra.mxu0 0
      %1102 = vmatprep.subr.bf16.mxu0 0
      %1103 = vmatpush2.bf16.msra.mxu0 0
      %1104 = vmatprep.mubr.bf16.mxu0 0
      %1105 = vmatmul.mubr.bf16.gmra.mxu0 %v1006
      %v1106 = vpop.f32.mrf.mxu0
      %v1107 = vadd.f32 %v1058, %v1106
      %v1108 = vpop.f32.mrf.mxu0
      %v1109 = vpop.f32.mrf.mxu0
      %v1110 = vadd.f32 %v1058, %v1109
      %v1111 = vpop.f32.mrf.mxu0
      %1112 = vdwg.mxu0
      %v1113 = vld [vmem:[%s838] sm:$0xf]
      %v1114 = vld [vmem:[%s838 + $0x4] sm:$0xf]
      %v1115 = vld [vmem:[%s838 + $0x8] sm:$0xf]
      %v1116 = vld [vmem:[%s838 + $0xc] sm:$0xf]
      %v1117 = vld [vmem:[%s841] sm:$0x1]
      %v1119 = vlaneseq
      %v1120 = vshrl.u32 %v1119, 7
      %v1121 = vsub.s32 0, %v1120
      %v1122 = vrot.slane %v1117, %v1121
      %v1128 = vunpack.c.l.b16 %v1113
      %v1129 = vunpack.c.l.b16 %v1114
      %v1130 = vunpack.c.l.b16 %v1115
      %v1131 = vunpack.c.l.b16 %v1116
      %v1132 = vpack.c.b16 %v1129, %v1128
      %v1133 = vpack.c.b16 %v1131, %v1130
      %1136 = vmatprep.subr.bf16.mxu0 0
      %1137 = vmatpush1.bf16.msra.mxu0 0
      %1138 = vmatprep.subr.bf16.mxu0 0
      %1139 = vmatpush1.bf16.msra.mxu0 0
      %1140 = vmatprep.subr.bf16.mxu0 0
      %1141 = vmatpush1.bf16.msra.mxu0 0
      %1142 = vmatprep.subr.bf16.mxu0 0
      %1143 = vmatpush1.bf16.msra.mxu0 0
      %1144 = vmatprep.subr.bf16.mxu0 0
      %1145 = vmatpush1.bf16.msra.mxu0 0
      %1146 = vmatprep.subr.bf16.mxu0 0
      %1147 = vmatpush1.bf16.msra.mxu0 0
      %1148 = vmatprep.subr.bf16.mxu0 0
      %1149 = vmatpush1.bf16.msra.mxu0 %v1133
      %1150 = vmatprep.subr.bf16.mxu0 0
      %1151 = vmatpush1.bf16.msra.mxu0 %v1132
      %1152 = vmatprep.subr.bf16.mxu0 0
      %1153 = vmatpush2.bf16.msra.mxu0 0
      %1154 = vmatprep.subr.bf16.mxu0 0
      %1155 = vmatpush2.bf16.msra.mxu0 0
      %1156 = vmatprep.subr.bf16.mxu0 0
      %1157 = vmatpush2.bf16.msra.mxu0 0
      %1158 = vmatprep.subr.bf16.mxu0 0
      %1159 = vmatpush2.bf16.msra.mxu0 0
      %1160 = vmatprep.subr.bf16.mxu0 0
      %1161 = vmatpush2.bf16.msra.mxu0 0
      %1162 = vmatprep.subr.bf16.mxu0 0
      %1163 = vmatpush2.bf16.msra.mxu0 0
      %1164 = vmatprep.subr.bf16.mxu0 0
      %1165 = vmatpush2.bf16.msra.mxu0 0
      %1166 = vmatprep.subr.bf16.mxu0 0
      %1167 = vmatpush2.bf16.msra.mxu0 0
      %1168 = vmatprep.mubr.bf16.mxu0 0
      %1169 = vmatmul.mubr.bf16.gmra.mxu0 %v1006
      %v1170 = vpop.f32.mrf.mxu0
      %v1171 = vadd.f32 %v1122, %v1170
      %v1172 = vpop.f32.mrf.mxu0
      %v1173 = vpop.f32.mrf.mxu0
      %v1174 = vadd.f32 %v1122, %v1173
      %v1175 = vpop.f32.mrf.mxu0
      %1176 = vdwg.mxu0
      %v1177 = vmul.f32 %v1043, 0.35355338
      %v1178 = vmul.f32 %v1046, 0.35355338
      %1181 = vrot.lane.b32.xlu0 %v1177, 120
      %v1182 = vpop.permute.xlu0 %1181
      %1183 = vrot.lane.b32.xlu0 %v1178, 120
      %v1184 = vpop.permute.xlu0 %1183
      %1187 = vrot.lane.b32.xlu0 %v1177, 112
      %v1188 = vpop.permute.xlu0 %1187
      %1189 = vrot.lane.b32.xlu0 %v1178, 112
      %v1190 = vpop.permute.xlu0 %1189
      %1193 = vrot.lane.b32.xlu0 %v1177, 104
      %v1194 = vpop.permute.xlu0 %1193
      %1195 = vrot.lane.b32.xlu0 %v1178, 104
      %v1196 = vpop.permute.xlu0 %1195
      %v1199 = vcombine.low %v1177, %v1188
      %v1200 = vcombine.high %v1177, %v1188
      %v1202 = vunpack.c.l.s4 1983009808
      %v1203 = vunpack.c.0.s8 %v1202
      %v1204 = vlaneseq
      %v1205 = vshrl.u32 %v1204, 7
      %v1206 = vsub.s32 %v1203, %v1205
      %v1207 = vrot.slane %v1199, %v1206
      %v1209 = vunpack.c.l.s4 1983009808
      %v1210 = vunpack.c.0.s8 %v1209
      %v1211 = vlaneseq
      %v1212 = vshrl.u32 %v1211, 7
      %v1213 = vsub.s32 %v1210, %v1212
      %v1214 = vrot.slane %v1200, %v1213
      %v1215 = vcombine.low %v1182, %v1194
      %v1216 = vcombine.high %v1182, %v1194
      %v1218 = vunpack.c.l.s4 1983009808
      %v1219 = vunpack.c.0.s8 %v1218
      %v1220 = vlaneseq
      %v1221 = vshrl.u32 %v1220, 7
      %v1222 = vsub.s32 %v1219, %v1221
      %v1223 = vrot.slane %v1215, %v1222
      %v1225 = vunpack.c.l.s4 1983009808
      %v1226 = vunpack.c.0.s8 %v1225
      %v1227 = vlaneseq
      %v1228 = vshrl.u32 %v1227, 7
      %v1229 = vsub.s32 %v1226, %v1228
      %v1230 = vrot.slane %v1216, %v1229
      %v1231 = vcombine.low %v1207, %v1223
      %v1232 = vcombine.high %v1207, %v1223
      %v1234 = vunpack.c.l.s4 1934713408
      %v1235 = vunpack.c.0.s8 %v1234
      %v1236 = vlaneseq
      %v1237 = vshrl.u32 %v1236, 7
      %v1238 = vsub.s32 %v1235, %v1237
      %v1239 = vrot.slane %v1231, %v1238
      %v1241 = vunpack.c.l.s4 1934713408
      %v1242 = vunpack.c.0.s8 %v1241
      %v1243 = vlaneseq
      %v1244 = vshrl.u32 %v1243, 7
      %v1245 = vsub.s32 %v1242, %v1244
      %v1246 = vrot.slane %v1232, %v1245
      %v1247 = vcombine.low %v1214, %v1230
      %v1248 = vcombine.high %v1214, %v1230
      %v1250 = vunpack.c.l.s4 1934713408
      %v1251 = vunpack.c.0.s8 %v1250
      %v1252 = vlaneseq
      %v1253 = vshrl.u32 %v1252, 7
      %v1254 = vsub.s32 %v1251, %v1253
      %v1255 = vrot.slane %v1247, %v1254
      %v1257 = vunpack.c.l.s4 1934713408
      %v1258 = vunpack.c.0.s8 %v1257
      %v1259 = vlaneseq
      %v1260 = vshrl.u32 %v1259, 7
      %v1261 = vsub.s32 %v1258, %v1260
      %v1262 = vrot.slane %v1248, %v1261
      %v1263 = vcombine.high %v1239, 0.0
      %v1264 = vcombine.high %v1246, 0.0
      %v1265 = vcombine.high %v1255, 0.0
      %v1266 = vcombine.high %v1262, 0.0
      %v1267 = vcombine.low %v1178, %v1190
      %v1268 = vcombine.high %v1178, %v1190
      %v1270 = vunpack.c.l.s4 1983009808
      %v1271 = vunpack.c.0.s8 %v1270
      %v1272 = vlaneseq
      %v1273 = vshrl.u32 %v1272, 7
      %v1274 = vsub.s32 %v1271, %v1273
      %v1275 = vrot.slane %v1267, %v1274
      %v1277 = vunpack.c.l.s4 1983009808
      %v1278 = vunpack.c.0.s8 %v1277
      %v1279 = vlaneseq
      %v1280 = vshrl.u32 %v1279, 7
      %v1281 = vsub.s32 %v1278, %v1280
      %v1282 = vrot.slane %v1268, %v1281
      %v1283 = vcombine.low %v1184, %v1196
      %v1284 = vcombine.high %v1184, %v1196
      %v1286 = vunpack.c.l.s4 1983009808
      %v1287 = vunpack.c.0.s8 %v1286
      %v1288 = vlaneseq
      %v1289 = vshrl.u32 %v1288, 7
      %v1290 = vsub.s32 %v1287, %v1289
      %v1291 = vrot.slane %v1283, %v1290
      %v1293 = vunpack.c.l.s4 1983009808
      %v1294 = vunpack.c.0.s8 %v1293
      %v1295 = vlaneseq
      %v1296 = vshrl.u32 %v1295, 7
      %v1297 = vsub.s32 %v1294, %v1296
      %v1298 = vrot.slane %v1284, %v1297
      %v1299 = vcombine.low %v1275, %v1291
      %v1300 = vcombine.high %v1275, %v1291
      %v1302 = vunpack.c.l.s4 1934713408
      %v1303 = vunpack.c.0.s8 %v1302
      %v1304 = vlaneseq
      %v1305 = vshrl.u32 %v1304, 7
      %v1306 = vsub.s32 %v1303, %v1305
      %v1307 = vrot.slane %v1299, %v1306
      %v1309 = vunpack.c.l.s4 1934713408
      %v1310 = vunpack.c.0.s8 %v1309
      %v1311 = vlaneseq
      %v1312 = vshrl.u32 %v1311, 7
      %v1313 = vsub.s32 %v1310, %v1312
      %v1314 = vrot.slane %v1300, %v1313
      %v1315 = vcombine.low %v1282, %v1298
      %v1316 = vcombine.high %v1282, %v1298
      %v1318 = vunpack.c.l.s4 1934713408
      %v1319 = vunpack.c.0.s8 %v1318
      %v1320 = vlaneseq
      %v1321 = vshrl.u32 %v1320, 7
      %v1322 = vsub.s32 %v1319, %v1321
      %v1323 = vrot.slane %v1315, %v1322
      %v1325 = vunpack.c.l.s4 1934713408
      %v1326 = vunpack.c.0.s8 %v1325
      %v1327 = vlaneseq
      %v1328 = vshrl.u32 %v1327, 7
      %v1329 = vsub.s32 %v1326, %v1328
      %v1330 = vrot.slane %v1316, %v1329
      %v1331 = vcombine.high %v1307, 0.0
      %v1332 = vcombine.high %v1314, 0.0
      %v1333 = vcombine.high %v1323, 0.0
      %v1334 = vcombine.high %v1330, 0.0
      %v1335 = vcombine.low %v1239, %v1246
      %v1337 = vunpack.c.l.s4 1983009808
      %v1338 = vunpack.c.0.s8 %v1337
      %v1339 = vlaneseq
      %v1340 = vshrl.u32 %v1339, 7
      %v1341 = vsub.s32 %v1338, %v1340
      %v1342 = vrot.slane %v1335, %v1341
      %v1343 = vcombine.low %v1263, %v1264
      %v1345 = vunpack.c.l.s4 1983009808
      %v1346 = vunpack.c.0.s8 %v1345
      %v1347 = vlaneseq
      %v1348 = vshrl.u32 %v1347, 7
      %v1349 = vsub.s32 %v1346, %v1348
      %v1350 = vrot.slane %v1343, %v1349
      %v1351 = vcombine.low %v1255, %v1262
      %v1353 = vunpack.c.l.s4 1983009808
      %v1354 = vunpack.c.0.s8 %v1353
      %v1355 = vlaneseq
      %v1356 = vshrl.u32 %v1355, 7
      %v1357 = vsub.s32 %v1354, %v1356
      %v1358 = vrot.slane %v1351, %v1357
      %v1359 = vcombine.low %v1265, %v1266
      %v1361 = vunpack.c.l.s4 1983009808
      %v1362 = vunpack.c.0.s8 %v1361
      %v1363 = vlaneseq
      %v1364 = vshrl.u32 %v1363, 7
      %v1365 = vsub.s32 %v1362, %v1364
      %v1366 = vrot.slane %v1359, %v1365
      %v1367 = vcombine.low %v1342, %v1350
      %v1368 = vcombine.high %v1342, %v1350
      %v1370 = vunpack.c.l.s4 1934713408
      %v1371 = vunpack.c.0.s8 %v1370
      %v1372 = vlaneseq
      %v1373 = vshrl.u32 %v1372, 7
      %v1374 = vsub.s32 %v1371, %v1373
      %v1375 = vrot.slane %v1367, %v1374
      %v1377 = vunpack.c.l.s4 1934713408
      %v1378 = vunpack.c.0.s8 %v1377
      %v1379 = vlaneseq
      %v1380 = vshrl.u32 %v1379, 7
      %v1381 = vsub.s32 %v1378, %v1380
      %v1382 = vrot.slane %v1368, %v1381
      %v1383 = vcombine.low %v1358, %v1366
      %v1384 = vcombine.high %v1358, %v1366
      %v1386 = vunpack.c.l.s4 1934713408
      %v1387 = vunpack.c.0.s8 %v1386
      %v1388 = vlaneseq
      %v1389 = vshrl.u32 %v1388, 7
      %v1390 = vsub.s32 %v1387, %v1389
      %v1391 = vrot.slane %v1383, %v1390
      %v1393 = vunpack.c.l.s4 1934713408
      %v1394 = vunpack.c.0.s8 %v1393
      %v1395 = vlaneseq
      %v1396 = vshrl.u32 %v1395, 7
      %v1397 = vsub.s32 %v1394, %v1396
      %v1398 = vrot.slane %v1384, %v1397
      %v1399 = vcombine.low %v1375, %v1391
      %v1400 = vcombine.high %v1375, %v1391
      %v1401 = vcombine.low %v1382, %v1398
      %v1402 = vcombine.high %v1382, %v1398
      %v1403 = vcombine.low %v1307, %v1314
      %v1405 = vunpack.c.l.s4 1983009808
      %v1406 = vunpack.c.0.s8 %v1405
      %v1407 = vlaneseq
      %v1408 = vshrl.u32 %v1407, 7
      %v1409 = vsub.s32 %v1406, %v1408
      %v1410 = vrot.slane %v1403, %v1409
      %v1411 = vcombine.low %v1331, %v1332
      %v1413 = vunpack.c.l.s4 1983009808
      %v1414 = vunpack.c.0.s8 %v1413
      %v1415 = vlaneseq
      %v1416 = vshrl.u32 %v1415, 7
      %v1417 = vsub.s32 %v1414, %v1416
      %v1418 = vrot.slane %v1411, %v1417
      %v1419 = vcombine.low %v1323, %v1330
      %v1421 = vunpack.c.l.s4 1983009808
      %v1422 = vunpack.c.0.s8 %v1421
      %v1423 = vlaneseq
      %v1424 = vshrl.u32 %v1423, 7
      %v1425 = vsub.s32 %v1422, %v1424
      %v1426 = vrot.slane %v1419, %v1425
      %v1427 = vcombine.low %v1333, %v1334
      %v1429 = vunpack.c.l.s4 1983009808
      %v1430 = vunpack.c.0.s8 %v1429
      %v1431 = vlaneseq
      %v1432 = vshrl.u32 %v1431, 7
      %v1433 = vsub.s32 %v1430, %v1432
      %v1434 = vrot.slane %v1427, %v1433
      %v1435 = vcombine.low %v1410, %v1418
      %v1436 = vcombine.high %v1410, %v1418
      %v1438 = vunpack.c.l.s4 1934713408
      %v1439 = vunpack.c.0.s8 %v1438
      %v1440 = vlaneseq
      %v1441 = vshrl.u32 %v1440, 7
      %v1442 = vsub.s32 %v1439, %v1441
      %v1443 = vrot.slane %v1435, %v1442
      %v1445 = vunpack.c.l.s4 1934713408
      %v1446 = vunpack.c.0.s8 %v1445
      %v1447 = vlaneseq
      %v1448 = vshrl.u32 %v1447, 7
      %v1449 = vsub.s32 %v1446, %v1448
      %v1450 = vrot.slane %v1436, %v1449
      %v1451 = vcombine.low %v1426, %v1434
      %v1452 = vcombine.high %v1426, %v1434
      %v1454 = vunpack.c.l.s4 1934713408
      %v1455 = vunpack.c.0.s8 %v1454
      %v1456 = vlaneseq
      %v1457 = vshrl.u32 %v1456, 7
      %v1458 = vsub.s32 %v1455, %v1457
      %v1459 = vrot.slane %v1451, %v1458
      %v1461 = vunpack.c.l.s4 1934713408
      %v1462 = vunpack.c.0.s8 %v1461
      %v1463 = vlaneseq
      %v1464 = vshrl.u32 %v1463, 7
      %v1465 = vsub.s32 %v1462, %v1464
      %v1466 = vrot.slane %v1452, %v1465
      %v1467 = vcombine.low %v1443, %v1459
      %v1468 = vcombine.high %v1443, %v1459
      %v1469 = vcombine.low %v1450, %v1466
      %v1470 = vcombine.high %v1450, %v1466
      %v1471 = vpack.c.bf16 %v1399, %v1399
      %v1472 = vpack.c.bf16 %v1400, %v1400
      %v1473 = vpack.c.bf16 %v1401, %v1401
      %v1474 = vpack.c.bf16 %v1402, %v1402
      %v1475 = vpack.c.bf16 %v1467, %v1467
      %v1476 = vpack.c.bf16 %v1468, %v1468
      %v1477 = vpack.c.bf16 %v1469, %v1469
      %v1478 = vpack.c.bf16 %v1470, %v1470
      %1481 = vrot.lane.b32.xlu0 %v1107, 120
      %v1482 = vpop.permute.xlu0 %1481
      %1483 = vrot.lane.b32.xlu0 %v1110, 120
      %v1484 = vpop.permute.xlu0 %1483
      %1487 = vrot.lane.b32.xlu0 %v1107, 112
      %v1488 = vpop.permute.xlu0 %1487
      %1489 = vrot.lane.b32.xlu0 %v1110, 112
      %v1490 = vpop.permute.xlu0 %1489
      %1493 = vrot.lane.b32.xlu0 %v1107, 104
      %v1494 = vpop.permute.xlu0 %1493
      %1495 = vrot.lane.b32.xlu0 %v1110, 104
      %v1496 = vpop.permute.xlu0 %1495
      %v1499 = vcombine.low %v1107, %v1488
      %v1500 = vcombine.high %v1107, %v1488
      %v1502 = vunpack.c.l.s4 1983009808
      %v1503 = vunpack.c.0.s8 %v1502
      %v1504 = vlaneseq
      %v1505 = vshrl.u32 %v1504, 7
      %v1506 = vsub.s32 %v1503, %v1505
      %v1507 = vrot.slane %v1499, %v1506
      %v1509 = vunpack.c.l.s4 1983009808
      %v1510 = vunpack.c.0.s8 %v1509
      %v1511 = vlaneseq
      %v1512 = vshrl.u32 %v1511, 7
      %v1513 = vsub.s32 %v1510, %v1512
      %v1514 = vrot.slane %v1500, %v1513
      %v1515 = vcombine.low %v1482, %v1494
      %v1516 = vcombine.high %v1482, %v1494
      %v1518 = vunpack.c.l.s4 1983009808
      %v1519 = vunpack.c.0.s8 %v1518
      %v1520 = vlaneseq
      %v1521 = vshrl.u32 %v1520, 7
      %v1522 = vsub.s32 %v1519, %v1521
      %v1523 = vrot.slane %v1515, %v1522
      %v1525 = vunpack.c.l.s4 1983009808
      %v1526 = vunpack.c.0.s8 %v1525
      %v1527 = vlaneseq
      %v1528 = vshrl.u32 %v1527, 7
      %v1529 = vsub.s32 %v1526, %v1528
      %v1530 = vrot.slane %v1516, %v1529
      %v1531 = vcombine.low %v1507, %v1523
      %v1532 = vcombine.high %v1507, %v1523
      %v1534 = vunpack.c.l.s4 1934713408
      %v1535 = vunpack.c.0.s8 %v1534
      %v1536 = vlaneseq
      %v1537 = vshrl.u32 %v1536, 7
      %v1538 = vsub.s32 %v1535, %v1537
      %v1539 = vrot.slane %v1531, %v1538
      %v1541 = vunpack.c.l.s4 1934713408
      %v1542 = vunpack.c.0.s8 %v1541
      %v1543 = vlaneseq
      %v1544 = vshrl.u32 %v1543, 7
      %v1545 = vsub.s32 %v1542, %v1544
      %v1546 = vrot.slane %v1532, %v1545
      %v1547 = vcombine.low %v1514, %v1530
      %v1548 = vcombine.high %v1514, %v1530
      %v1550 = vunpack.c.l.s4 1934713408
      %v1551 = vunpack.c.0.s8 %v1550
      %v1552 = vlaneseq
      %v1553 = vshrl.u32 %v1552, 7
      %v1554 = vsub.s32 %v1551, %v1553
      %v1555 = vrot.slane %v1547, %v1554
      %v1557 = vunpack.c.l.s4 1934713408
      %v1558 = vunpack.c.0.s8 %v1557
      %v1559 = vlaneseq
      %v1560 = vshrl.u32 %v1559, 7
      %v1561 = vsub.s32 %v1558, %v1560
      %v1562 = vrot.slane %v1548, %v1561
      %v1563 = vcombine.high %v1539, 0.0
      %v1564 = vcombine.high %v1546, 0.0
      %v1565 = vcombine.high %v1555, 0.0
      %v1566 = vcombine.high %v1562, 0.0
      %v1567 = vcombine.low %v1110, %v1490
      %v1568 = vcombine.high %v1110, %v1490
      %v1570 = vunpack.c.l.s4 1983009808
      %v1571 = vunpack.c.0.s8 %v1570
      %v1572 = vlaneseq
      %v1573 = vshrl.u32 %v1572, 7
      %v1574 = vsub.s32 %v1571, %v1573
      %v1575 = vrot.slane %v1567, %v1574
      %v1577 = vunpack.c.l.s4 1983009808
      %v1578 = vunpack.c.0.s8 %v1577
      %v1579 = vlaneseq
      %v1580 = vshrl.u32 %v1579, 7
      %v1581 = vsub.s32 %v1578, %v1580
      %v1582 = vrot.slane %v1568, %v1581
      %v1583 = vcombine.low %v1484, %v1496
      %v1584 = vcombine.high %v1484, %v1496
      %v1586 = vunpack.c.l.s4 1983009808
      %v1587 = vunpack.c.0.s8 %v1586
      %v1588 = vlaneseq
      %v1589 = vshrl.u32 %v1588, 7
      %v1590 = vsub.s32 %v1587, %v1589
      %v1591 = vrot.slane %v1583, %v1590
      %v1593 = vunpack.c.l.s4 1983009808
      %v1594 = vunpack.c.0.s8 %v1593
      %v1595 = vlaneseq
      %v1596 = vshrl.u32 %v1595, 7
      %v1597 = vsub.s32 %v1594, %v1596
      %v1598 = vrot.slane %v1584, %v1597
      %v1599 = vcombine.low %v1575, %v1591
      %v1600 = vcombine.high %v1575, %v1591
      %v1602 = vunpack.c.l.s4 1934713408
      %v1603 = vunpack.c.0.s8 %v1602
      %v1604 = vlaneseq
      %v1605 = vshrl.u32 %v1604, 7
      %v1606 = vsub.s32 %v1603, %v1605
      %v1607 = vrot.slane %v1599, %v1606
      %v1609 = vunpack.c.l.s4 1934713408
      %v1610 = vunpack.c.0.s8 %v1609
      %v1611 = vlaneseq
      %v1612 = vshrl.u32 %v1611, 7
      %v1613 = vsub.s32 %v1610, %v1612
      %v1614 = vrot.slane %v1600, %v1613
      %v1615 = vcombine.low %v1582, %v1598
      %v1616 = vcombine.high %v1582, %v1598
      %v1618 = vunpack.c.l.s4 1934713408
      %v1619 = vunpack.c.0.s8 %v1618
      %v1620 = vlaneseq
      %v1621 = vshrl.u32 %v1620, 7
      %v1622 = vsub.s32 %v1619, %v1621
      %v1623 = vrot.slane %v1615, %v1622
      %v1625 = vunpack.c.l.s4 1934713408
      %v1626 = vunpack.c.0.s8 %v1625
      %v1627 = vlaneseq
      %v1628 = vshrl.u32 %v1627, 7
      %v1629 = vsub.s32 %v1626, %v1628
      %v1630 = vrot.slane %v1616, %v1629
      %v1631 = vcombine.high %v1607, 0.0
      %v1632 = vcombine.high %v1614, 0.0
      %v1633 = vcombine.high %v1623, 0.0
      %v1634 = vcombine.high %v1630, 0.0
      %v1635 = vcombine.low %v1539, %v1546
      %v1637 = vunpack.c.l.s4 1983009808
      %v1638 = vunpack.c.0.s8 %v1637
      %v1639 = vlaneseq
      %v1640 = vshrl.u32 %v1639, 7
      %v1641 = vsub.s32 %v1638, %v1640
      %v1642 = vrot.slane %v1635, %v1641
      %v1643 = vcombine.low %v1563, %v1564
      %v1645 = vunpack.c.l.s4 1983009808
      %v1646 = vunpack.c.0.s8 %v1645
      %v1647 = vlaneseq
      %v1648 = vshrl.u32 %v1647, 7
      %v1649 = vsub.s32 %v1646, %v1648
      %v1650 = vrot.slane %v1643, %v1649
      %v1651 = vcombine.low %v1555, %v1562
      %v1653 = vunpack.c.l.s4 1983009808
      %v1654 = vunpack.c.0.s8 %v1653
      %v1655 = vlaneseq
      %v1656 = vshrl.u32 %v1655, 7
      %v1657 = vsub.s32 %v1654, %v1656
      %v1658 = vrot.slane %v1651, %v1657
      %v1659 = vcombine.low %v1565, %v1566
      %v1661 = vunpack.c.l.s4 1983009808
      %v1662 = vunpack.c.0.s8 %v1661
      %v1663 = vlaneseq
      %v1664 = vshrl.u32 %v1663, 7
      %v1665 = vsub.s32 %v1662, %v1664
      %v1666 = vrot.slane %v1659, %v1665
      %v1667 = vcombine.low %v1642, %v1650
      %v1668 = vcombine.high %v1642, %v1650
      %v1670 = vunpack.c.l.s4 1934713408
      %v1671 = vunpack.c.0.s8 %v1670
      %v1672 = vlaneseq
      %v1673 = vshrl.u32 %v1672, 7
      %v1674 = vsub.s32 %v1671, %v1673
      %v1675 = vrot.slane %v1667, %v1674
      %v1677 = vunpack.c.l.s4 1934713408
      %v1678 = vunpack.c.0.s8 %v1677
      %v1679 = vlaneseq
      %v1680 = vshrl.u32 %v1679, 7
      %v1681 = vsub.s32 %v1678, %v1680
      %v1682 = vrot.slane %v1668, %v1681
      %v1683 = vcombine.low %v1658, %v1666
      %v1684 = vcombine.high %v1658, %v1666
      %v1686 = vunpack.c.l.s4 1934713408
      %v1687 = vunpack.c.0.s8 %v1686
      %v1688 = vlaneseq
      %v1689 = vshrl.u32 %v1688, 7
      %v1690 = vsub.s32 %v1687, %v1689
      %v1691 = vrot.slane %v1683, %v1690
      %v1693 = vunpack.c.l.s4 1934713408
      %v1694 = vunpack.c.0.s8 %v1693
      %v1695 = vlaneseq
      %v1696 = vshrl.u32 %v1695, 7
      %v1697 = vsub.s32 %v1694, %v1696
      %v1698 = vrot.slane %v1684, %v1697
      %v1699 = vcombine.low %v1675, %v1691
      %v1700 = vcombine.high %v1675, %v1691
      %v1701 = vcombine.low %v1682, %v1698
      %v1702 = vcombine.high %v1682, %v1698
      %v1703 = vcombine.low %v1607, %v1614
      %v1705 = vunpack.c.l.s4 1983009808
      %v1706 = vunpack.c.0.s8 %v1705
      %v1707 = vlaneseq
      %v1708 = vshrl.u32 %v1707, 7
      %v1709 = vsub.s32 %v1706, %v1708
      %v1710 = vrot.slane %v1703, %v1709
      %v1711 = vcombine.low %v1631, %v1632
      %v1713 = vunpack.c.l.s4 1983009808
      %v1714 = vunpack.c.0.s8 %v1713
      %v1715 = vlaneseq
      %v1716 = vshrl.u32 %v1715, 7
      %v1717 = vsub.s32 %v1714, %v1716
      %v1718 = vrot.slane %v1711, %v1717
      %v1719 = vcombine.low %v1623, %v1630
      %v1721 = vunpack.c.l.s4 1983009808
      %v1722 = vunpack.c.0.s8 %v1721
      %v1723 = vlaneseq
      %v1724 = vshrl.u32 %v1723, 7
      %v1725 = vsub.s32 %v1722, %v1724
      %v1726 = vrot.slane %v1719, %v1725
      %v1727 = vcombine.low %v1633, %v1634
      %v1729 = vunpack.c.l.s4 1983009808
      %v1730 = vunpack.c.0.s8 %v1729
      %v1731 = vlaneseq
      %v1732 = vshrl.u32 %v1731, 7
      %v1733 = vsub.s32 %v1730, %v1732
      %v1734 = vrot.slane %v1727, %v1733
      %v1735 = vcombine.low %v1710, %v1718
      %v1736 = vcombine.high %v1710, %v1718
      %v1738 = vunpack.c.l.s4 1934713408
      %v1739 = vunpack.c.0.s8 %v1738
      %v1740 = vlaneseq
      %v1741 = vshrl.u32 %v1740, 7
      %v1742 = vsub.s32 %v1739, %v1741
      %v1743 = vrot.slane %v1735, %v1742
      %v1745 = vunpack.c.l.s4 1934713408
      %v1746 = vunpack.c.0.s8 %v1745
      %v1747 = vlaneseq
      %v1748 = vshrl.u32 %v1747, 7
      %v1749 = vsub.s32 %v1746, %v1748
      %v1750 = vrot.slane %v1736, %v1749
      %v1751 = vcombine.low %v1726, %v1734
      %v1752 = vcombine.high %v1726, %v1734
      %v1754 = vunpack.c.l.s4 1934713408
      %v1755 = vunpack.c.0.s8 %v1754
      %v1756 = vlaneseq
      %v1757 = vshrl.u32 %v1756, 7
      %v1758 = vsub.s32 %v1755, %v1757
      %v1759 = vrot.slane %v1751, %v1758
      %v1761 = vunpack.c.l.s4 1934713408
      %v1762 = vunpack.c.0.s8 %v1761
      %v1763 = vlaneseq
      %v1764 = vshrl.u32 %v1763, 7
      %v1765 = vsub.s32 %v1762, %v1764
      %v1766 = vrot.slane %v1752, %v1765
      %v1767 = vcombine.low %v1743, %v1759
      %v1768 = vcombine.high %v1743, %v1759
      %v1769 = vcombine.low %v1750, %v1766
      %v1770 = vcombine.high %v1750, %v1766
      %v1771 = vpack.c.bf16 %v1699, %v1699
      %v1772 = vpack.c.bf16 %v1700, %v1700
      %v1773 = vpack.c.bf16 %v1701, %v1701
      %v1774 = vpack.c.bf16 %v1702, %v1702
      %v1775 = vpack.c.bf16 %v1767, %v1767
      %v1776 = vpack.c.bf16 %v1768, %v1768
      %v1777 = vpack.c.bf16 %v1769, %v1769
      %v1778 = vpack.c.bf16 %v1770, %v1770
      %1781 = vrot.lane.b32.xlu0 %v1171, 120
      %v1782 = vpop.permute.xlu0 %1781
      %1783 = vrot.lane.b32.xlu0 %v1174, 120
      %v1784 = vpop.permute.xlu0 %1783
      %1787 = vrot.lane.b32.xlu0 %v1171, 112
      %v1788 = vpop.permute.xlu0 %1787
      %1789 = vrot.lane.b32.xlu0 %v1174, 112
      %v1790 = vpop.permute.xlu0 %1789
      %1793 = vrot.lane.b32.xlu0 %v1171, 104
      %v1794 = vpop.permute.xlu0 %1793
      %1795 = vrot.lane.b32.xlu0 %v1174, 104
      %v1796 = vpop.permute.xlu0 %1795
      %v1799 = vcombine.low %v1171, %v1788
      %v1800 = vcombine.high %v1171, %v1788
      %v1802 = vunpack.c.l.s4 1983009808
      %v1803 = vunpack.c.0.s8 %v1802
      %v1804 = vlaneseq
      %v1805 = vshrl.u32 %v1804, 7
      %v1806 = vsub.s32 %v1803, %v1805
      %v1807 = vrot.slane %v1799, %v1806
      %v1809 = vunpack.c.l.s4 1983009808
      %v1810 = vunpack.c.0.s8 %v1809
      %v1811 = vlaneseq
      %v1812 = vshrl.u32 %v1811, 7
      %v1813 = vsub.s32 %v1810, %v1812
      %v1814 = vrot.slane %v1800, %v1813
      %v1815 = vcombine.low %v1782, %v1794
      %v1816 = vcombine.high %v1782, %v1794
      %v1818 = vunpack.c.l.s4 1983009808
      %v1819 = vunpack.c.0.s8 %v1818
      %v1820 = vlaneseq
      %v1821 = vshrl.u32 %v1820, 7
      %v1822 = vsub.s32 %v1819, %v1821
      %v1823 = vrot.slane %v1815, %v1822
      %v1825 = vunpack.c.l.s4 1983009808
      %v1826 = vunpack.c.0.s8 %v1825
      %v1827 = vlaneseq
      %v1828 = vshrl.u32 %v1827, 7
      %v1829 = vsub.s32 %v1826, %v1828
      %v1830 = vrot.slane %v1816, %v1829
      %v1831 = vcombine.low %v1807, %v1823
      %v1832 = vcombine.high %v1807, %v1823
      %v1834 = vunpack.c.l.s4 1934713408
      %v1835 = vunpack.c.0.s8 %v1834
      %v1836 = vlaneseq
      %v1837 = vshrl.u32 %v1836, 7
      %v1838 = vsub.s32 %v1835, %v1837
      %v1839 = vrot.slane %v1831, %v1838
      %v1841 = vunpack.c.l.s4 1934713408
      %v1842 = vunpack.c.0.s8 %v1841
      %v1843 = vlaneseq
      %v1844 = vshrl.u32 %v1843, 7
      %v1845 = vsub.s32 %v1842, %v1844
      %v1846 = vrot.slane %v1832, %v1845
      %v1847 = vcombine.low %v1814, %v1830
      %v1848 = vcombine.high %v1814, %v1830
      %v1850 = vunpack.c.l.s4 1934713408
      %v1851 = vunpack.c.0.s8 %v1850
      %v1852 = vlaneseq
      %v1853 = vshrl.u32 %v1852, 7
      %v1854 = vsub.s32 %v1851, %v1853
      %v1855 = vrot.slane %v1847, %v1854
      %v1857 = vunpack.c.l.s4 1934713408
      %v1858 = vunpack.c.0.s8 %v1857
      %v1859 = vlaneseq
      %v1860 = vshrl.u32 %v1859, 7
      %v1861 = vsub.s32 %v1858, %v1860
      %v1862 = vrot.slane %v1848, %v1861
      %v1863 = vcombine.high %v1839, 0.0
      %v1864 = vcombine.high %v1846, 0.0
      %v1865 = vcombine.high %v1855, 0.0
      %v1866 = vcombine.high %v1862, 0.0
      %v1867 = vcombine.low %v1174, %v1790
      %v1868 = vcombine.high %v1174, %v1790
      %v1870 = vunpack.c.l.s4 1983009808
      %v1871 = vunpack.c.0.s8 %v1870
      %v1872 = vlaneseq
      %v1873 = vshrl.u32 %v1872, 7
      %v1874 = vsub.s32 %v1871, %v1873
      %v1875 = vrot.slane %v1867, %v1874
      %v1877 = vunpack.c.l.s4 1983009808
      %v1878 = vunpack.c.0.s8 %v1877
      %v1879 = vlaneseq
      %v1880 = vshrl.u32 %v1879, 7
      %v1881 = vsub.s32 %v1878, %v1880
      %v1882 = vrot.slane %v1868, %v1881
      %v1883 = vcombine.low %v1784, %v1796
      %v1884 = vcombine.high %v1784, %v1796
      %v1886 = vunpack.c.l.s4 1983009808
      %v1887 = vunpack.c.0.s8 %v1886
      %v1888 = vlaneseq
      %v1889 = vshrl.u32 %v1888, 7
      %v1890 = vsub.s32 %v1887, %v1889
      %v1891 = vrot.slane %v1883, %v1890
      %v1893 = vunpack.c.l.s4 1983009808
      %v1894 = vunpack.c.0.s8 %v1893
      %v1895 = vlaneseq
      %v1896 = vshrl.u32 %v1895, 7
      %v1897 = vsub.s32 %v1894, %v1896
      %v1898 = vrot.slane %v1884, %v1897
      %v1899 = vcombine.low %v1875, %v1891
      %v1900 = vcombine.high %v1875, %v1891
      %v1902 = vunpack.c.l.s4 1934713408
      %v1903 = vunpack.c.0.s8 %v1902
      %v1904 = vlaneseq
      %v1905 = vshrl.u32 %v1904, 7
      %v1906 = vsub.s32 %v1903, %v1905
      %v1907 = vrot.slane %v1899, %v1906
      %v1909 = vunpack.c.l.s4 1934713408
      %v1910 = vunpack.c.0.s8 %v1909
      %v1911 = vlaneseq
      %v1912 = vshrl.u32 %v1911, 7
      %v1913 = vsub.s32 %v1910, %v1912
      %v1914 = vrot.slane %v1900, %v1913
      %v1915 = vcombine.low %v1882, %v1898
      %v1916 = vcombine.high %v1882, %v1898
      %v1918 = vunpack.c.l.s4 1934713408
      %v1919 = vunpack.c.0.s8 %v1918
      %v1920 = vlaneseq
      %v1921 = vshrl.u32 %v1920, 7
      %v1922 = vsub.s32 %v1919, %v1921
      %v1923 = vrot.slane %v1915, %v1922
      %v1925 = vunpack.c.l.s4 1934713408
      %v1926 = vunpack.c.0.s8 %v1925
      %v1927 = vlaneseq
      %v1928 = vshrl.u32 %v1927, 7
      %v1929 = vsub.s32 %v1926, %v1928
      %v1930 = vrot.slane %v1916, %v1929
      %v1931 = vcombine.high %v1907, 0.0
      %v1932 = vcombine.high %v1914, 0.0
      %v1933 = vcombine.high %v1923, 0.0
      %v1934 = vcombine.high %v1930, 0.0
      %v1935 = vcombine.low %v1839, %v1846
      %v1937 = vunpack.c.l.s4 1983009808
      %v1938 = vunpack.c.0.s8 %v1937
      %v1939 = vlaneseq
      %v1940 = vshrl.u32 %v1939, 7
      %v1941 = vsub.s32 %v1938, %v1940
      %v1942 = vrot.slane %v1935, %v1941
      %v1943 = vcombine.low %v1863, %v1864
      %v1945 = vunpack.c.l.s4 1983009808
      %v1946 = vunpack.c.0.s8 %v1945
      %v1947 = vlaneseq
      %v1948 = vshrl.u32 %v1947, 7
      %v1949 = vsub.s32 %v1946, %v1948
      %v1950 = vrot.slane %v1943, %v1949
      %v1951 = vcombine.low %v1855, %v1862
      %v1953 = vunpack.c.l.s4 1983009808
      %v1954 = vunpack.c.0.s8 %v1953
      %v1955 = vlaneseq
      %v1956 = vshrl.u32 %v1955, 7
      %v1957 = vsub.s32 %v1954, %v1956
      %v1958 = vrot.slane %v1951, %v1957
      %v1959 = vcombine.low %v1865, %v1866
      %v1961 = vunpack.c.l.s4 1983009808
      %v1962 = vunpack.c.0.s8 %v1961
      %v1963 = vlaneseq
      %v1964 = vshrl.u32 %v1963, 7
      %v1965 = vsub.s32 %v1962, %v1964
      %v1966 = vrot.slane %v1959, %v1965
      %v1967 = vcombine.low %v1942, %v1950
      %v1968 = vcombine.high %v1942, %v1950
      %v1970 = vunpack.c.l.s4 1934713408
      %v1971 = vunpack.c.0.s8 %v1970
      %v1972 = vlaneseq
      %v1973 = vshrl.u32 %v1972, 7
      %v1974 = vsub.s32 %v1971, %v1973
      %v1975 = vrot.slane %v1967, %v1974
      %v1977 = vunpack.c.l.s4 1934713408
      %v1978 = vunpack.c.0.s8 %v1977
      %v1979 = vlaneseq
      %v1980 = vshrl.u32 %v1979, 7
      %v1981 = vsub.s32 %v1978, %v1980
      %v1982 = vrot.slane %v1968, %v1981
      %v1983 = vcombine.low %v1958, %v1966
      %v1984 = vcombine.high %v1958, %v1966
      %v1986 = vunpack.c.l.s4 1934713408
      %v1987 = vunpack.c.0.s8 %v1986
      %v1988 = vlaneseq
      %v1989 = vshrl.u32 %v1988, 7
      %v1990 = vsub.s32 %v1987, %v1989
      %v1991 = vrot.slane %v1983, %v1990
      %v1993 = vunpack.c.l.s4 1934713408
      %v1994 = vunpack.c.0.s8 %v1993
      %v1995 = vlaneseq
      %v1996 = vshrl.u32 %v1995, 7
      %v1997 = vsub.s32 %v1994, %v1996
      %v1998 = vrot.slane %v1984, %v1997
      %v1999 = vcombine.low %v1975, %v1991
      %v2000 = vcombine.high %v1975, %v1991
      %v2001 = vcombine.low %v1982, %v1998
      %v2002 = vcombine.high %v1982, %v1998
      %v2003 = vcombine.low %v1907, %v1914
      %v2005 = vunpack.c.l.s4 1983009808
      %v2006 = vunpack.c.0.s8 %v2005
      %v2007 = vlaneseq
      %v2008 = vshrl.u32 %v2007, 7
      %v2009 = vsub.s32 %v2006, %v2008
      %v2010 = vrot.slane %v2003, %v2009
      %v2011 = vcombine.low %v1931, %v1932
      %v2013 = vunpack.c.l.s4 1983009808
      %v2014 = vunpack.c.0.s8 %v2013
      %v2015 = vlaneseq
      %v2016 = vshrl.u32 %v2015, 7
      %v2017 = vsub.s32 %v2014, %v2016
      %v2018 = vrot.slane %v2011, %v2017
      %v2019 = vcombine.low %v1923, %v1930
      %v2021 = vunpack.c.l.s4 1983009808
      %v2022 = vunpack.c.0.s8 %v2021
      %v2023 = vlaneseq
      %v2024 = vshrl.u32 %v2023, 7
      %v2025 = vsub.s32 %v2022, %v2024
      %v2026 = vrot.slane %v2019, %v2025
      %v2027 = vcombine.low %v1933, %v1934
      %v2029 = vunpack.c.l.s4 1983009808
      %v2030 = vunpack.c.0.s8 %v2029
      %v2031 = vlaneseq
      %v2032 = vshrl.u32 %v2031, 7
      %v2033 = vsub.s32 %v2030, %v2032
      %v2034 = vrot.slane %v2027, %v2033
      %v2035 = vcombine.low %v2010, %v2018
      %v2036 = vcombine.high %v2010, %v2018
      %v2038 = vunpack.c.l.s4 1934713408
      %v2039 = vunpack.c.0.s8 %v2038
      %v2040 = vlaneseq
      %v2041 = vshrl.u32 %v2040, 7
      %v2042 = vsub.s32 %v2039, %v2041
      %v2043 = vrot.slane %v2035, %v2042
      %v2045 = vunpack.c.l.s4 1934713408
      %v2046 = vunpack.c.0.s8 %v2045
      %v2047 = vlaneseq
      %v2048 = vshrl.u32 %v2047, 7
      %v2049 = vsub.s32 %v2046, %v2048
      %v2050 = vrot.slane %v2036, %v2049
      %v2051 = vcombine.low %v2026, %v2034
      %v2052 = vcombine.high %v2026, %v2034
      %v2054 = vunpack.c.l.s4 1934713408
      %v2055 = vunpack.c.0.s8 %v2054
      %v2056 = vlaneseq
      %v2057 = vshrl.u32 %v2056, 7
      %v2058 = vsub.s32 %v2055, %v2057
      %v2059 = vrot.slane %v2051, %v2058
      %v2061 = vunpack.c.l.s4 1934713408
      %v2062 = vunpack.c.0.s8 %v2061
      %v2063 = vlaneseq
      %v2064 = vshrl.u32 %v2063, 7
      %v2065 = vsub.s32 %v2062, %v2064
      %v2066 = vrot.slane %v2052, %v2065
      %v2067 = vcombine.low %v2043, %v2059
      %v2068 = vcombine.high %v2043, %v2059
      %v2069 = vcombine.low %v2050, %v2066
      %v2070 = vcombine.high %v2050, %v2066
      %v2071 = vpack.c.bf16 %v1999, %v1999
      %v2072 = vpack.c.bf16 %v2000, %v2000
      %v2073 = vpack.c.bf16 %v2001, %v2001
      %v2074 = vpack.c.bf16 %v2002, %v2002
      %v2075 = vpack.c.bf16 %v2067, %v2067
      %v2076 = vpack.c.bf16 %v2068, %v2068
      %v2077 = vpack.c.bf16 %v2069, %v2069
      %v2078 = vpack.c.bf16 %v2070, %v2070
      %vm2079 = vcmask 64512
      %v2081 = vsel %vm2079, %v1471, 0
      %v2084 = vsel %vm2079, %v1771, 0
      %2086 = vmatprep.subr.bf16.mxu0 0
      %2087 = vmatpush1.bf16.xpose.msra.mxu0 0
      %2088 = vmatprep.subr.bf16.mxu0 0
      %2089 = vmatpush1.bf16.xpose.msra.mxu0 0
      %2090 = vmatprep.subr.bf16.mxu0 0
      %2091 = vmatpush1.bf16.xpose.msra.mxu0 0
      %2092 = vmatprep.subr.bf16.mxu0 0
      %2093 = vmatpush1.bf16.xpose.msra.mxu0 0
      %2094 = vmatprep.subr.bf16.mxu0 0
      %2095 = vmatpush1.bf16.xpose.msra.mxu0 0
      %2096 = vmatprep.subr.bf16.mxu0 0
      %2097 = vmatpush1.bf16.xpose.msra.mxu0 0
      %2098 = vmatprep.subr.bf16.mxu0 0
      %2099 = vmatpush1.bf16.xpose.msra.mxu0 0
      %2100 = vmatprep.subr.bf16.mxu0 0
      %2101 = vmatpush1.bf16.xpose.msra.mxu0 %v2084
      %2102 = vmatprep.subr.bf16.mxu0 0
      %2103 = vmatpush2.bf16.xpose.msra.mxu0 0
      %2104 = vmatprep.subr.bf16.mxu0 0
      %2105 = vmatpush2.bf16.xpose.msra.mxu0 0
      %2106 = vmatprep.subr.bf16.mxu0 0
      %2107 = vmatpush2.bf16.xpose.msra.mxu0 0
      %2108 = vmatprep.subr.bf16.mxu0 0
      %2109 = vmatpush2.bf16.xpose.msra.mxu0 0
      %2110 = vmatprep.subr.bf16.mxu0 0
      %2111 = vmatpush2.bf16.xpose.msra.mxu0 0
      %2112 = vmatprep.subr.bf16.mxu0 0
      %2113 = vmatpush2.bf16.xpose.msra.mxu0 0
      %2114 = vmatprep.subr.bf16.mxu0 0
      %2115 = vmatpush2.bf16.xpose.msra.mxu0 0
      %2116 = vmatprep.subr.bf16.mxu0 0
      %2117 = vmatpush2.bf16.xpose.msra.mxu0 0
      %2118 = vmatprep.mubr.bf16.mxu0 0
      %2119 = vmatmul.mubr.bf16.gmra.mxu0 %v2081
      %v2120 = vpop.f32.mrf.mxu0
      %v2121 = vadd.f32 0.0, %v2120
      %v2122 = vpop.f32.mrf.mxu0
      %v2123 = vpop.f32.mrf.mxu0
      %v2124 = vpop.f32.mrf.mxu0
      %2125 = vdwg.mxu0
      %v2127 = vsel %vm2079, %v1472, 0
      %v2130 = vsel %vm2079, %v1772, 0
      %2132 = vmatprep.subr.bf16.mxu0 0
      %2133 = vmatpush1.bf16.xpose.msra.mxu0 0
      %2134 = vmatprep.subr.bf16.mxu0 0
      %2135 = vmatpush1.bf16.xpose.msra.mxu0 0
      %2136 = vmatprep.subr.bf16.mxu0 0
      %2137 = vmatpush1.bf16.xpose.msra.mxu0 0
      %2138 = vmatprep.subr.bf16.mxu0 0
      %2139 = vmatpush1.bf16.xpose.msra.mxu0 0
      %2140 = vmatprep.subr.bf16.mxu0 0
      %2141 = vmatpush1.bf16.xpose.msra.mxu0 0
      %2142 = vmatprep.subr.bf16.mxu0 0
      %2143 = vmatpush1.bf16.xpose.msra.mxu0 0
      %2144 = vmatprep.subr.bf16.mxu0 0
      %2145 = vmatpush1.bf16.xpose.msra.mxu0 0
      %2146 = vmatprep.subr.bf16.mxu0 0
      %2147 = vmatpush1.bf16.xpose.msra.mxu0 %v2130
      %2148 = vmatprep.subr.bf16.mxu0 0
      %2149 = vmatpush2.bf16.xpose.msra.mxu0 0
      %2150 = vmatprep.subr.bf16.mxu0 0
      %2151 = vmatpush2.bf16.xpose.msra.mxu0 0
      %2152 = vmatprep.subr.bf16.mxu0 0
      %2153 = vmatpush2.bf16.xpose.msra.mxu0 0
      %2154 = vmatprep.subr.bf16.mxu0 0
      %2155 = vmatpush2.bf16.xpose.msra.mxu0 0
      %2156 = vmatprep.subr.bf16.mxu0 0
      %2157 = vmatpush2.bf16.xpose.msra.mxu0 0
      %2158 = vmatprep.subr.bf16.mxu0 0
      %2159 = vmatpush2.bf16.xpose.msra.mxu0 0
      %2160 = vmatprep.subr.bf16.mxu0 0
      %2161 = vmatpush2.bf16.xpose.msra.mxu0 0
      %2162 = vmatprep.subr.bf16.mxu0 0
      %2163 = vmatpush2.bf16.xpose.msra.mxu0 0
      %2164 = vmatprep.mubr.bf16.mxu0 0
      %2165 = vmatmul.mubr.bf16.gmra.mxu0 %v2127
      %v2166 = vpop.f32.mrf.mxu0
      %v2167 = vadd.f32 0.0, %v2166
      %v2168 = vpop.f32.mrf.mxu0
      %v2169 = vpop.f32.mrf.mxu0
      %v2170 = vpop.f32.mrf.mxu0
      %2171 = vdwg.mxu0
      %v2173 = vsel %vm2079, %v1473, 0
      %v2176 = vsel %vm2079, %v1773, 0
      %2178 = vmatprep.subr.bf16.mxu0 0
      %2179 = vmatpush1.bf16.xpose.msra.mxu0 0
      %2180 = vmatprep.subr.bf16.mxu0 0
      %2181 = vmatpush1.bf16.xpose.msra.mxu0 0
      %2182 = vmatprep.subr.bf16.mxu0 0
      %2183 = vmatpush1.bf16.xpose.msra.mxu0 0
      %2184 = vmatprep.subr.bf16.mxu0 0
      %2185 = vmatpush1.bf16.xpose.msra.mxu0 0
      %2186 = vmatprep.subr.bf16.mxu0 0
      %2187 = vmatpush1.bf16.xpose.msra.mxu0 0
      %2188 = vmatprep.subr.bf16.mxu0 0
      %2189 = vmatpush1.bf16.xpose.msra.mxu0 0
      %2190 = vmatprep.subr.bf16.mxu0 0
      %2191 = vmatpush1.bf16.xpose.msra.mxu0 0
      %2192 = vmatprep.subr.bf16.mxu0 0
      %2193 = vmatpush1.bf16.xpose.msra.mxu0 %v2176
      %2194 = vmatprep.subr.bf16.mxu0 0
      %2195 = vmatpush2.bf16.xpose.msra.mxu0 0
      %2196 = vmatprep.subr.bf16.mxu0 0
      %2197 = vmatpush2.bf16.xpose.msra.mxu0 0
      %2198 = vmatprep.subr.bf16.mxu0 0
      %2199 = vmatpush2.bf16.xpose.msra.mxu0 0
      %2200 = vmatprep.subr.bf16.mxu0 0
      %2201 = vmatpush2.bf16.xpose.msra.mxu0 0
      %2202 = vmatprep.subr.bf16.mxu0 0
      %2203 = vmatpush2.bf16.xpose.msra.mxu0 0
      %2204 = vmatprep.subr.bf16.mxu0 0
      %2205 = vmatpush2.bf16.xpose.msra.mxu0 0
      %2206 = vmatprep.subr.bf16.mxu0 0
      %2207 = vmatpush2.bf16.xpose.msra.mxu0 0
      %2208 = vmatprep.subr.bf16.mxu0 0
      %2209 = vmatpush2.bf16.xpose.msra.mxu0 0
      %2210 = vmatprep.mubr.bf16.mxu0 0
      %2211 = vmatmul.mubr.bf16.gmra.mxu0 %v2173
      %v2212 = vpop.f32.mrf.mxu0
      %v2213 = vadd.f32 0.0, %v2212
      %v2214 = vpop.f32.mrf.mxu0
      %v2215 = vpop.f32.mrf.mxu0
      %v2216 = vpop.f32.mrf.mxu0
      %2217 = vdwg.mxu0
      %v2219 = vsel %vm2079, %v1474, 0
      %v2222 = vsel %vm2079, %v1774, 0
      %2224 = vmatprep.subr.bf16.mxu0 0
      %2225 = vmatpush1.bf16.xpose.msra.mxu0 0
      %2226 = vmatprep.subr.bf16.mxu0 0
      %2227 = vmatpush1.bf16.xpose.msra.mxu0 0
      %2228 = vmatprep.subr.bf16.mxu0 0
      %2229 = vmatpush1.bf16.xpose.msra.mxu0 0
      %2230 = vmatprep.subr.bf16.mxu0 0
      %2231 = vmatpush1.bf16.xpose.msra.mxu0 0
      %2232 = vmatprep.subr.bf16.mxu0 0
      %2233 = vmatpush1.bf16.xpose.msra.mxu0 0
      %2234 = vmatprep.subr.bf16.mxu0 0
      %2235 = vmatpush1.bf16.xpose.msra.mxu0 0
      %2236 = vmatprep.subr.bf16.mxu0 0
      %2237 = vmatpush1.bf16.xpose.msra.mxu0 0
      %2238 = vmatprep.subr.bf16.mxu0 0
      %2239 = vmatpush1.bf16.xpose.msra.mxu0 %v2222
      %2240 = vmatprep.subr.bf16.mxu0 0
      %2241 = vmatpush2.bf16.xpose.msra.mxu0 0
      %2242 = vmatprep.subr.bf16.mxu0 0
      %2243 = vmatpush2.bf16.xpose.msra.mxu0 0
      %2244 = vmatprep.subr.bf16.mxu0 0
      %2245 = vmatpush2.bf16.xpose.msra.mxu0 0
      %2246 = vmatprep.subr.bf16.mxu0 0
      %2247 = vmatpush2.bf16.xpose.msra.mxu0 0
      %2248 = vmatprep.subr.bf16.mxu0 0
      %2249 = vmatpush2.bf16.xpose.msra.mxu0 0
      %2250 = vmatprep.subr.bf16.mxu0 0
      %2251 = vmatpush2.bf16.xpose.msra.mxu0 0
      %2252 = vmatprep.subr.bf16.mxu0 0
      %2253 = vmatpush2.bf16.xpose.msra.mxu0 0
      %2254 = vmatprep.subr.bf16.mxu0 0
      %2255 = vmatpush2.bf16.xpose.msra.mxu0 0
      %2256 = vmatprep.mubr.bf16.mxu0 0
      %2257 = vmatmul.mubr.bf16.gmra.mxu0 %v2219
      %v2258 = vpop.f32.mrf.mxu0
      %v2259 = vadd.f32 0.0, %v2258
      %v2260 = vpop.f32.mrf.mxu0
      %v2261 = vpop.f32.mrf.mxu0
      %v2262 = vpop.f32.mrf.mxu0
      %2263 = vdwg.mxu0
      %v2265 = vsel %vm2079, %v1475, 0
      %v2268 = vsel %vm2079, %v1775, 0
      %2270 = vmatprep.subr.bf16.mxu0 0
      %2271 = vmatpush1.bf16.xpose.msra.mxu0 0
      %2272 = vmatprep.subr.bf16.mxu0 0
      %2273 = vmatpush1.bf16.xpose.msra.mxu0 0
      %2274 = vmatprep.subr.bf16.mxu0 0
      %2275 = vmatpush1.bf16.xpose.msra.mxu0 0
      %2276 = vmatprep.subr.bf16.mxu0 0
      %2277 = vmatpush1.bf16.xpose.msra.mxu0 0
      %2278 = vmatprep.subr.bf16.mxu0 0
      %2279 = vmatpush1.bf16.xpose.msra.mxu0 0
      %2280 = vmatprep.subr.bf16.mxu0 0
      %2281 = vmatpush1.bf16.xpose.msra.mxu0 0
      %2282 = vmatprep.subr.bf16.mxu0 0
      %2283 = vmatpush1.bf16.xpose.msra.mxu0 0
      %2284 = vmatprep.subr.bf16.mxu0 0
      %2285 = vmatpush1.bf16.xpose.msra.mxu0 %v2268
      %2286 = vmatprep.subr.bf16.mxu0 0
      %2287 = vmatpush2.bf16.xpose.msra.mxu0 0
      %2288 = vmatprep.subr.bf16.mxu0 0
      %2289 = vmatpush2.bf16.xpose.msra.mxu0 0
      %2290 = vmatprep.subr.bf16.mxu0 0
      %2291 = vmatpush2.bf16.xpose.msra.mxu0 0
      %2292 = vmatprep.subr.bf16.mxu0 0
      %2293 = vmatpush2.bf16.xpose.msra.mxu0 0
      %2294 = vmatprep.subr.bf16.mxu0 0
      %2295 = vmatpush2.bf16.xpose.msra.mxu0 0
      %2296 = vmatprep.subr.bf16.mxu0 0
      %2297 = vmatpush2.bf16.xpose.msra.mxu0 0
      %2298 = vmatprep.subr.bf16.mxu0 0
      %2299 = vmatpush2.bf16.xpose.msra.mxu0 0
      %2300 = vmatprep.subr.bf16.mxu0 0
      %2301 = vmatpush2.bf16.xpose.msra.mxu0 0
      %2302 = vmatprep.mubr.bf16.mxu0 0
      %2303 = vmatmul.mubr.bf16.gmra.mxu0 %v2265
      %v2304 = vpop.f32.mrf.mxu0
      %v2305 = vadd.f32 0.0, %v2304
      %v2306 = vpop.f32.mrf.mxu0
      %v2307 = vpop.f32.mrf.mxu0
      %v2308 = vpop.f32.mrf.mxu0
      %2309 = vdwg.mxu0
      %v2311 = vsel %vm2079, %v1476, 0
      %v2314 = vsel %vm2079, %v1776, 0
      %2316 = vmatprep.subr.bf16.mxu0 0
      %2317 = vmatpush1.bf16.xpose.msra.mxu0 0
      %2318 = vmatprep.subr.bf16.mxu0 0
      %2319 = vmatpush1.bf16.xpose.msra.mxu0 0
      %2320 = vmatprep.subr.bf16.mxu0 0
      %2321 = vmatpush1.bf16.xpose.msra.mxu0 0
      %2322 = vmatprep.subr.bf16.mxu0 0
      %2323 = vmatpush1.bf16.xpose.msra.mxu0 0
      %2324 = vmatprep.subr.bf16.mxu0 0
      %2325 = vmatpush1.bf16.xpose.msra.mxu0 0
      %2326 = vmatprep.subr.bf16.mxu0 0
      %2327 = vmatpush1.bf16.xpose.msra.mxu0 0
      %2328 = vmatprep.subr.bf16.mxu0 0
      %2329 = vmatpush1.bf16.xpose.msra.mxu0 0
      %2330 = vmatprep.subr.bf16.mxu0 0
      %2331 = vmatpush1.bf16.xpose.msra.mxu0 %v2314
      %2332 = vmatprep.subr.bf16.mxu0 0
      %2333 = vmatpush2.bf16.xpose.msra.mxu0 0
      %2334 = vmatprep.subr.bf16.mxu0 0
      %2335 = vmatpush2.bf16.xpose.msra.mxu0 0
      %2336 = vmatprep.subr.bf16.mxu0 0
      %2337 = vmatpush2.bf16.xpose.msra.mxu0 0
      %2338 = vmatprep.subr.bf16.mxu0 0
      %2339 = vmatpush2.bf16.xpose.msra.mxu0 0
      %2340 = vmatprep.subr.bf16.mxu0 0
      %2341 = vmatpush2.bf16.xpose.msra.mxu0 0
      %2342 = vmatprep.subr.bf16.mxu0 0
      %2343 = vmatpush2.bf16.xpose.msra.mxu0 0
      %2344 = vmatprep.subr.bf16.mxu0 0
      %2345 = vmatpush2.bf16.xpose.msra.mxu0 0
      %2346 = vmatprep.subr.bf16.mxu0 0
      %2347 = vmatpush2.bf16.xpose.msra.mxu0 0
      %2348 = vmatprep.mubr.bf16.mxu0 0
      %2349 = vmatmul.mubr.bf16.gmra.mxu0 %v2311
      %v2350 = vpop.f32.mrf.mxu0
      %v2351 = vadd.f32 0.0, %v2350
      %v2352 = vpop.f32.mrf.mxu0
      %v2353 = vpop.f32.mrf.mxu0
      %v2354 = vpop.f32.mrf.mxu0
      %2355 = vdwg.mxu0
      %v2357 = vsel %vm2079, %v1477, 0
      %v2360 = vsel %vm2079, %v1777, 0
      %2362 = vmatprep.subr.bf16.mxu0 0
      %2363 = vmatpush1.bf16.xpose.msra.mxu0 0
      %2364 = vmatprep.subr.bf16.mxu0 0
      %2365 = vmatpush1.bf16.xpose.msra.mxu0 0
      %2366 = vmatprep.subr.bf16.mxu0 0
      %2367 = vmatpush1.bf16.xpose.msra.mxu0 0
      %2368 = vmatprep.subr.bf16.mxu0 0
      %2369 = vmatpush1.bf16.xpose.msra.mxu0 0
      %2370 = vmatprep.subr.bf16.mxu0 0
      %2371 = vmatpush1.bf16.xpose.msra.mxu0 0
      %2372 = vmatprep.subr.bf16.mxu0 0
      %2373 = vmatpush1.bf16.xpose.msra.mxu0 0
      %2374 = vmatprep.subr.bf16.mxu0 0
      %2375 = vmatpush1.bf16.xpose.msra.mxu0 0
      %2376 = vmatprep.subr.bf16.mxu0 0
      %2377 = vmatpush1.bf16.xpose.msra.mxu0 %v2360
      %2378 = vmatprep.subr.bf16.mxu0 0
      %2379 = vmatpush2.bf16.xpose.msra.mxu0 0
      %2380 = vmatprep.subr.bf16.mxu0 0
      %2381 = vmatpush2.bf16.xpose.msra.mxu0 0
      %2382 = vmatprep.subr.bf16.mxu0 0
      %2383 = vmatpush2.bf16.xpose.msra.mxu0 0
      %2384 = vmatprep.subr.bf16.mxu0 0
      %2385 = vmatpush2.bf16.xpose.msra.mxu0 0
      %2386 = vmatprep.subr.bf16.mxu0 0
      %2387 = vmatpush2.bf16.xpose.msra.mxu0 0
      %2388 = vmatprep.subr.bf16.mxu0 0
      %2389 = vmatpush2.bf16.xpose.msra.mxu0 0
      %2390 = vmatprep.subr.bf16.mxu0 0
      %2391 = vmatpush2.bf16.xpose.msra.mxu0 0
      %2392 = vmatprep.subr.bf16.mxu0 0
      %2393 = vmatpush2.bf16.xpose.msra.mxu0 0
      %2394 = vmatprep.mubr.bf16.mxu0 0
      %2395 = vmatmul.mubr.bf16.gmra.mxu0 %v2357
      %v2396 = vpop.f32.mrf.mxu0
      %v2397 = vadd.f32 0.0, %v2396
      %v2398 = vpop.f32.mrf.mxu0
      %v2399 = vpop.f32.mrf.mxu0
      %v2400 = vpop.f32.mrf.mxu0
      %2401 = vdwg.mxu0
      %v2403 = vsel %vm2079, %v1478, 0
      %v2406 = vsel %vm2079, %v1778, 0
      %2408 = vmatprep.subr.bf16.mxu0 0
      %2409 = vmatpush1.bf16.xpose.msra.mxu0 0
      %2410 = vmatprep.subr.bf16.mxu0 0
      %2411 = vmatpush1.bf16.xpose.msra.mxu0 0
      %2412 = vmatprep.subr.bf16.mxu0 0
      %2413 = vmatpush1.bf16.xpose.msra.mxu0 0
      %2414 = vmatprep.subr.bf16.mxu0 0
      %2415 = vmatpush1.bf16.xpose.msra.mxu0 0
      %2416 = vmatprep.subr.bf16.mxu0 0
      %2417 = vmatpush1.bf16.xpose.msra.mxu0 0
      %2418 = vmatprep.subr.bf16.mxu0 0
      %2419 = vmatpush1.bf16.xpose.msra.mxu0 0
      %2420 = vmatprep.subr.bf16.mxu0 0
      %2421 = vmatpush1.bf16.xpose.msra.mxu0 0
      %2422 = vmatprep.subr.bf16.mxu0 0
      %2423 = vmatpush1.bf16.xpose.msra.mxu0 %v2406
      %2424 = vmatprep.subr.bf16.mxu0 0
      %2425 = vmatpush2.bf16.xpose.msra.mxu0 0
      %2426 = vmatprep.subr.bf16.mxu0 0
      %2427 = vmatpush2.bf16.xpose.msra.mxu0 0
      %2428 = vmatprep.subr.bf16.mxu0 0
      %2429 = vmatpush2.bf16.xpose.msra.mxu0 0
      %2430 = vmatprep.subr.bf16.mxu0 0
      %2431 = vmatpush2.bf16.xpose.msra.mxu0 0
      %2432 = vmatprep.subr.bf16.mxu0 0
      %2433 = vmatpush2.bf16.xpose.msra.mxu0 0
      %2434 = vmatprep.subr.bf16.mxu0 0
      %2435 = vmatpush2.bf16.xpose.msra.mxu0 0
      %2436 = vmatprep.subr.bf16.mxu0 0
      %2437 = vmatpush2.bf16.xpose.msra.mxu0 0
      %2438 = vmatprep.subr.bf16.mxu0 0
      %2439 = vmatpush2.bf16.xpose.msra.mxu0 0
      %2440 = vmatprep.mubr.bf16.mxu0 0
      %2441 = vmatmul.mubr.bf16.gmra.mxu0 %v2403
      %v2442 = vpop.f32.mrf.mxu0
      %v2443 = vadd.f32 0.0, %v2442
      %v2444 = vpop.f32.mrf.mxu0
      %v2445 = vpop.f32.mrf.mxu0
      %v2446 = vpop.f32.mrf.mxu0
      %2447 = vdwg.mxu0
      %v2448 = vlaneseq
      %v2449 = vand.u32 %v2448, 127
      %vm2450 = vcmp.lt.s32.totalorder %v2449, 5
      %v2451 = vsel %vm2450, %v2121, -1e+30
      %v2452 = vsel %vm2450, %v2167, -1e+30
      %v2453 = vsel %vm2450, %v2213, -1e+30
      %v2454 = vsel %vm2450, %v2259, -1e+30
      %v2455 = vsel %vm2450, %v2305, -1e+30
      %v2456 = vsel %vm2450, %v2351, -1e+30
      %v2457 = vsel %vm2450, %v2397, -1e+30
      %v2458 = vsel %vm2450, %v2443, -1e+30
      %v2459 = vsel %vm2079, %v2451, -inf
      %2460 = vmax.xlane.f32.xlu0 %v2459
      %v2461 = vpop.xlane.xlu0 %2460
      %v2462 = vsel %vm2079, %v2452, -inf
      %2463 = vmax.xlane.f32.xlu0 %v2462
      %v2464 = vpop.xlane.xlu0 %2463
      %v2465 = vsel %vm2079, %v2453, -inf
      %2466 = vmax.xlane.f32.xlu0 %v2465
      %v2467 = vpop.xlane.xlu0 %2466
      %v2468 = vsel %vm2079, %v2454, -inf
      %2469 = vmax.xlane.f32.xlu0 %v2468
      %v2470 = vpop.xlane.xlu0 %2469
      %v2471 = vsel %vm2079, %v2455, -inf
      %2472 = vmax.xlane.f32.xlu0 %v2471
      %v2473 = vpop.xlane.xlu0 %2472
      %v2474 = vsel %vm2079, %v2456, -inf
      %2475 = vmax.xlane.f32.xlu0 %v2474
      %v2476 = vpop.xlane.xlu0 %2475
      %v2477 = vsel %vm2079, %v2457, -inf
      %2478 = vmax.xlane.f32.xlu0 %v2477
      %v2479 = vpop.xlane.xlu0 %2478
      %v2480 = vsel %vm2079, %v2458, -inf
      %2481 = vmax.xlane.f32.xlu0 %v2480
      %v2482 = vpop.xlane.xlu0 %2481
      %v2483 = vsub.f32 %v2451, %v2461
      %v2484 = vsub.f32 %v2452, %v2464
      %v2485 = vsub.f32 %v2453, %v2467
      %v2486 = vsub.f32 %v2454, %v2470
      %v2487 = vsub.f32 %v2455, %v2473
      %v2488 = vsub.f32 %v2456, %v2476
      %v2489 = vsub.f32 %v2457, %v2479
      %v2490 = vsub.f32 %v2458, %v2482
      %v2491 = vmul.f32 %v2483, 1.442695
      %v2492 = vpow.pop %v2491
      %v2493 = vmul.f32 %v2484, 1.442695
      %v2494 = vpow.pop %v2493
      %v2495 = vmul.f32 %v2485, 1.442695
      %v2496 = vpow.pop %v2495
      %v2497 = vmul.f32 %v2486, 1.442695
      %v2498 = vpow.pop %v2497
      %v2499 = vmul.f32 %v2487, 1.442695
      %v2500 = vpow.pop %v2499
      %v2501 = vmul.f32 %v2488, 1.442695
      %v2502 = vpow.pop %v2501
      %v2503 = vmul.f32 %v2489, 1.442695
      %v2504 = vpow.pop %v2503
      %v2505 = vmul.f32 %v2490, 1.442695
      %v2506 = vpow.pop %v2505
      %v2507 = vsel %vm2079, %v2492, 0.0
      %2508 = vadd.xlane.f32.xlu0 %v2507
      %v2509 = vpop.xlane.xlu0 %2508
      %v2510 = vsel %vm2079, %v2494, 0.0
      %2511 = vadd.xlane.f32.xlu0 %v2510
      %v2512 = vpop.xlane.xlu0 %2511
      %v2513 = vsel %vm2079, %v2496, 0.0
      %2514 = vadd.xlane.f32.xlu0 %v2513
      %v2515 = vpop.xlane.xlu0 %2514
      %v2516 = vsel %vm2079, %v2498, 0.0
      %2517 = vadd.xlane.f32.xlu0 %v2516
      %v2518 = vpop.xlane.xlu0 %2517
      %v2519 = vsel %vm2079, %v2500, 0.0
      %2520 = vadd.xlane.f32.xlu0 %v2519
      %v2521 = vpop.xlane.xlu0 %2520
      %v2522 = vsel %vm2079, %v2502, 0.0
      %2523 = vadd.xlane.f32.xlu0 %v2522
      %v2524 = vpop.xlane.xlu0 %2523
      %v2525 = vsel %vm2079, %v2504, 0.0
      %2526 = vadd.xlane.f32.xlu0 %v2525
      %v2527 = vpop.xlane.xlu0 %2526
      %v2528 = vsel %vm2079, %v2506, 0.0
      %2529 = vadd.xlane.f32.xlu0 %v2528
      %v2530 = vpop.xlane.xlu0 %2529
      %v2531 = vrcp.pop %v2509
      %v2532 = vrcp.pop %v2512
      %v2533 = vrcp.pop %v2515
      %v2534 = vrcp.pop %v2518
      %v2535 = vrcp.pop %v2521
      %v2536 = vrcp.pop %v2524
      %v2537 = vrcp.pop %v2527
      %v2538 = vrcp.pop %v2530
      %v2539 = vmul.f32 %v2492, %v2531
      %v2540 = vmul.f32 %v2494, %v2532
      %v2541 = vmul.f32 %v2496, %v2533
      %v2542 = vmul.f32 %v2498, %v2534
      %v2543 = vmul.f32 %v2500, %v2535
      %v2544 = vmul.f32 %v2502, %v2536
      %v2545 = vmul.f32 %v2504, %v2537
      %v2546 = vmul.f32 %v2506, %v2538
      %v2547 = vpack.c.bf16 %v2539, %v2539
      %v2548 = vpack.c.bf16 %v2540, %v2540
      %v2549 = vpack.c.bf16 %v2541, %v2541
      %v2550 = vpack.c.bf16 %v2542, %v2542
      %v2551 = vpack.c.bf16 %v2543, %v2543
      %v2552 = vpack.c.bf16 %v2544, %v2544
      %v2553 = vpack.c.bf16 %v2545, %v2545
      %v2554 = vpack.c.bf16 %v2546, %v2546
      %v2556 = vsel %vm2079, %v2547, 0
      %vm2558 = vcmask 1043456
      %v2560 = vsel %vm2558, %v2071, 0
      %2562 = vmatprep.subr.bf16.mxu0 0
      %2563 = vmatpush1.bf16.msra.mxu0 0
      %2564 = vmatprep.subr.bf16.mxu0 0
      %2565 = vmatpush1.bf16.msra.mxu0 0
      %2566 = vmatprep.subr.bf16.mxu0 0
      %2567 = vmatpush1.bf16.msra.mxu0 0
      %2568 = vmatprep.subr.bf16.mxu0 0
      %2569 = vmatpush1.bf16.msra.mxu0 0
      %2570 = vmatprep.subr.bf16.mxu0 0
      %2571 = vmatpush1.bf16.msra.mxu0 0
      %2572 = vmatprep.subr.bf16.mxu0 0
      %2573 = vmatpush1.bf16.msra.mxu0 0
      %2574 = vmatprep.subr.bf16.mxu0 0
      %2575 = vmatpush1.bf16.msra.mxu0 0
      %2576 = vmatprep.subr.bf16.mxu0 0
      %2577 = vmatpush1.bf16.msra.mxu0 %v2560
      %2578 = vmatprep.subr.bf16.mxu0 0
      %2579 = vmatpush2.bf16.msra.mxu0 0
      %2580 = vmatprep.subr.bf16.mxu0 0
      %2581 = vmatpush2.bf16.msra.mxu0 0
      %2582 = vmatprep.subr.bf16.mxu0 0
      %2583 = vmatpush2.bf16.msra.mxu0 0
      %2584 = vmatprep.subr.bf16.mxu0 0
      %2585 = vmatpush2.bf16.msra.mxu0 0
      %2586 = vmatprep.subr.bf16.mxu0 0
      %2587 = vmatpush2.bf16.msra.mxu0 0
      %2588 = vmatprep.subr.bf16.mxu0 0
      %2589 = vmatpush2.bf16.msra.mxu0 0
      %2590 = vmatprep.subr.bf16.mxu0 0
      %2591 = vmatpush2.bf16.msra.mxu0 0
      %2592 = vmatprep.subr.bf16.mxu0 0
      %2593 = vmatpush2.bf16.msra.mxu0 0
      %2594 = vmatprep.mubr.bf16.mxu0 0
      %2595 = vmatmul.mubr.bf16.gmra.mxu0 %v2556
      %v2596 = vpop.f32.mrf.mxu0
      %v2597 = vadd.f32 0.0, %v2596
      %v2598 = vpop.f32.mrf.mxu0
      %v2599 = vpop.f32.mrf.mxu0
      %v2600 = vpop.f32.mrf.mxu0
      %2601 = vdwg.mxu0
      %v2603 = vsel %vm2079, %v2548, 0
      %v2606 = vsel %vm2558, %v2072, 0
      %2608 = vmatprep.subr.bf16.mxu0 0
      %2609 = vmatpush1.bf16.msra.mxu0 0
      %2610 = vmatprep.subr.bf16.mxu0 0
      %2611 = vmatpush1.bf16.msra.mxu0 0
      %2612 = vmatprep.subr.bf16.mxu0 0
      %2613 = vmatpush1.bf16.msra.mxu0 0
      %2614 = vmatprep.subr.bf16.mxu0 0
      %2615 = vmatpush1.bf16.msra.mxu0 0
      %2616 = vmatprep.subr.bf16.mxu0 0
      %2617 = vmatpush1.bf16.msra.mxu0 0
      %2618 = vmatprep.subr.bf16.mxu0 0
      %2619 = vmatpush1.bf16.msra.mxu0 0
      %2620 = vmatprep.subr.bf16.mxu0 0
      %2621 = vmatpush1.bf16.msra.mxu0 0
      %2622 = vmatprep.subr.bf16.mxu0 0
      %2623 = vmatpush1.bf16.msra.mxu0 %v2606
      %2624 = vmatprep.subr.bf16.mxu0 0
      %2625 = vmatpush2.bf16.msra.mxu0 0
      %2626 = vmatprep.subr.bf16.mxu0 0
      %2627 = vmatpush2.bf16.msra.mxu0 0
      %2628 = vmatprep.subr.bf16.mxu0 0
      %2629 = vmatpush2.bf16.msra.mxu0 0
      %2630 = vmatprep.subr.bf16.mxu0 0
      %2631 = vmatpush2.bf16.msra.mxu0 0
      %2632 = vmatprep.subr.bf16.mxu0 0
      %2633 = vmatpush2.bf16.msra.mxu0 0
      %2634 = vmatprep.subr.bf16.mxu0 0
      %2635 = vmatpush2.bf16.msra.mxu0 0
      %2636 = vmatprep.subr.bf16.mxu0 0
      %2637 = vmatpush2.bf16.msra.mxu0 0
      %2638 = vmatprep.subr.bf16.mxu0 0
      %2639 = vmatpush2.bf16.msra.mxu0 0
      %2640 = vmatprep.mubr.bf16.mxu0 0
      %2641 = vmatmul.mubr.bf16.gmra.mxu0 %v2603
      %v2642 = vpop.f32.mrf.mxu0
      %v2643 = vadd.f32 0.0, %v2642
      %v2644 = vpop.f32.mrf.mxu0
      %v2645 = vpop.f32.mrf.mxu0
      %v2646 = vpop.f32.mrf.mxu0
      %2647 = vdwg.mxu0
      %v2649 = vsel %vm2079, %v2549, 0
      %v2652 = vsel %vm2558, %v2073, 0
      %2654 = vmatprep.subr.bf16.mxu0 0
      %2655 = vmatpush1.bf16.msra.mxu0 0
      %2656 = vmatprep.subr.bf16.mxu0 0
      %2657 = vmatpush1.bf16.msra.mxu0 0
      %2658 = vmatprep.subr.bf16.mxu0 0
      %2659 = vmatpush1.bf16.msra.mxu0 0
      %2660 = vmatprep.subr.bf16.mxu0 0
      %2661 = vmatpush1.bf16.msra.mxu0 0
      %2662 = vmatprep.subr.bf16.mxu0 0
      %2663 = vmatpush1.bf16.msra.mxu0 0
      %2664 = vmatprep.subr.bf16.mxu0 0
      %2665 = vmatpush1.bf16.msra.mxu0 0
      %2666 = vmatprep.subr.bf16.mxu0 0
      %2667 = vmatpush1.bf16.msra.mxu0 0
      %2668 = vmatprep.subr.bf16.mxu0 0
      %2669 = vmatpush1.bf16.msra.mxu0 %v2652
      %2670 = vmatprep.subr.bf16.mxu0 0
      %2671 = vmatpush2.bf16.msra.mxu0 0
      %2672 = vmatprep.subr.bf16.mxu0 0
      %2673 = vmatpush2.bf16.msra.mxu0 0
      %2674 = vmatprep.subr.bf16.mxu0 0
      %2675 = vmatpush2.bf16.msra.mxu0 0
      %2676 = vmatprep.subr.bf16.mxu0 0
      %2677 = vmatpush2.bf16.msra.mxu0 0
      %2678 = vmatprep.subr.bf16.mxu0 0
      %2679 = vmatpush2.bf16.msra.mxu0 0
      %2680 = vmatprep.subr.bf16.mxu0 0
      %2681 = vmatpush2.bf16.msra.mxu0 0
      %2682 = vmatprep.subr.bf16.mxu0 0
      %2683 = vmatpush2.bf16.msra.mxu0 0
      %2684 = vmatprep.subr.bf16.mxu0 0
      %2685 = vmatpush2.bf16.msra.mxu0 0
      %2686 = vmatprep.mubr.bf16.mxu0 0
      %2687 = vmatmul.mubr.bf16.gmra.mxu0 %v2649
      %v2688 = vpop.f32.mrf.mxu0
      %v2689 = vadd.f32 0.0, %v2688
      %v2690 = vpop.f32.mrf.mxu0
      %v2691 = vpop.f32.mrf.mxu0
      %v2692 = vpop.f32.mrf.mxu0
      %2693 = vdwg.mxu0
      %v2695 = vsel %vm2079, %v2550, 0
      %v2698 = vsel %vm2558, %v2074, 0
      %2700 = vmatprep.subr.bf16.mxu0 0
      %2701 = vmatpush1.bf16.msra.mxu0 0
      %2702 = vmatprep.subr.bf16.mxu0 0
      %2703 = vmatpush1.bf16.msra.mxu0 0
      %2704 = vmatprep.subr.bf16.mxu0 0
      %2705 = vmatpush1.bf16.msra.mxu0 0
      %2706 = vmatprep.subr.bf16.mxu0 0
      %2707 = vmatpush1.bf16.msra.mxu0 0
      %2708 = vmatprep.subr.bf16.mxu0 0
      %2709 = vmatpush1.bf16.msra.mxu0 0
      %2710 = vmatprep.subr.bf16.mxu0 0
      %2711 = vmatpush1.bf16.msra.mxu0 0
      %2712 = vmatprep.subr.bf16.mxu0 0
      %2713 = vmatpush1.bf16.msra.mxu0 0
      %2714 = vmatprep.subr.bf16.mxu0 0
      %2715 = vmatpush1.bf16.msra.mxu0 %v2698
      %2716 = vmatprep.subr.bf16.mxu0 0
      %2717 = vmatpush2.bf16.msra.mxu0 0
      %2718 = vmatprep.subr.bf16.mxu0 0
      %2719 = vmatpush2.bf16.msra.mxu0 0
      %2720 = vmatprep.subr.bf16.mxu0 0
      %2721 = vmatpush2.bf16.msra.mxu0 0
      %2722 = vmatprep.subr.bf16.mxu0 0
      %2723 = vmatpush2.bf16.msra.mxu0 0
      %2724 = vmatprep.subr.bf16.mxu0 0
      %2725 = vmatpush2.bf16.msra.mxu0 0
      %2726 = vmatprep.subr.bf16.mxu0 0
      %2727 = vmatpush2.bf16.msra.mxu0 0
      %2728 = vmatprep.subr.bf16.mxu0 0
      %2729 = vmatpush2.bf16.msra.mxu0 0
      %2730 = vmatprep.subr.bf16.mxu0 0
      %2731 = vmatpush2.bf16.msra.mxu0 0
      %2732 = vmatprep.mubr.bf16.mxu0 0
      %2733 = vmatmul.mubr.bf16.gmra.mxu0 %v2695
      %v2734 = vpop.f32.mrf.mxu0
      %v2735 = vadd.f32 0.0, %v2734
      %v2736 = vpop.f32.mrf.mxu0
      %v2737 = vpop.f32.mrf.mxu0
      %v2738 = vpop.f32.mrf.mxu0
      %2739 = vdwg.mxu0
      %v2741 = vsel %vm2079, %v2551, 0
      %v2744 = vsel %vm2558, %v2075, 0
      %2746 = vmatprep.subr.bf16.mxu0 0
      %2747 = vmatpush1.bf16.msra.mxu0 0
      %2748 = vmatprep.subr.bf16.mxu0 0
      %2749 = vmatpush1.bf16.msra.mxu0 0
      %2750 = vmatprep.subr.bf16.mxu0 0
      %2751 = vmatpush1.bf16.msra.mxu0 0
      %2752 = vmatprep.subr.bf16.mxu0 0
      %2753 = vmatpush1.bf16.msra.mxu0 0
      %2754 = vmatprep.subr.bf16.mxu0 0
      %2755 = vmatpush1.bf16.msra.mxu0 0
      %2756 = vmatprep.subr.bf16.mxu0 0
      %2757 = vmatpush1.bf16.msra.mxu0 0
      %2758 = vmatprep.subr.bf16.mxu0 0
      %2759 = vmatpush1.bf16.msra.mxu0 0
      %2760 = vmatprep.subr.bf16.mxu0 0
      %2761 = vmatpush1.bf16.msra.mxu0 %v2744
      %2762 = vmatprep.subr.bf16.mxu0 0
      %2763 = vmatpush2.bf16.msra.mxu0 0
      %2764 = vmatprep.subr.bf16.mxu0 0
      %2765 = vmatpush2.bf16.msra.mxu0 0
      %2766 = vmatprep.subr.bf16.mxu0 0
      %2767 = vmatpush2.bf16.msra.mxu0 0
      %2768 = vmatprep.subr.bf16.mxu0 0
      %2769 = vmatpush2.bf16.msra.mxu0 0
      %2770 = vmatprep.subr.bf16.mxu0 0
      %2771 = vmatpush2.bf16.msra.mxu0 0
      %2772 = vmatprep.subr.bf16.mxu0 0
      %2773 = vmatpush2.bf16.msra.mxu0 0
      %2774 = vmatprep.subr.bf16.mxu0 0
      %2775 = vmatpush2.bf16.msra.mxu0 0
      %2776 = vmatprep.subr.bf16.mxu0 0
      %2777 = vmatpush2.bf16.msra.mxu0 0
      %2778 = vmatprep.mubr.bf16.mxu0 0
      %2779 = vmatmul.mubr.bf16.gmra.mxu0 %v2741
      %v2780 = vpop.f32.mrf.mxu0
      %v2781 = vadd.f32 0.0, %v2780
      %v2782 = vpop.f32.mrf.mxu0
      %v2783 = vpop.f32.mrf.mxu0
      %v2784 = vpop.f32.mrf.mxu0
      %2785 = vdwg.mxu0
      %v2787 = vsel %vm2079, %v2552, 0
      %v2790 = vsel %vm2558, %v2076, 0
      %2792 = vmatprep.subr.bf16.mxu0 0
      %2793 = vmatpush1.bf16.msra.mxu0 0
      %2794 = vmatprep.subr.bf16.mxu0 0
      %2795 = vmatpush1.bf16.msra.mxu0 0
      %2796 = vmatprep.subr.bf16.mxu0 0
      %2797 = vmatpush1.bf16.msra.mxu0 0
      %2798 = vmatprep.subr.bf16.mxu0 0
      %2799 = vmatpush1.bf16.msra.mxu0 0
      %2800 = vmatprep.subr.bf16.mxu0 0
      %2801 = vmatpush1.bf16.msra.mxu0 0
      %2802 = vmatprep.subr.bf16.mxu0 0
      %2803 = vmatpush1.bf16.msra.mxu0 0
      %2804 = vmatprep.subr.bf16.mxu0 0
      %2805 = vmatpush1.bf16.msra.mxu0 0
      %2806 = vmatprep.subr.bf16.mxu0 0
      %2807 = vmatpush1.bf16.msra.mxu0 %v2790
      %2808 = vmatprep.subr.bf16.mxu0 0
      %2809 = vmatpush2.bf16.msra.mxu0 0
      %2810 = vmatprep.subr.bf16.mxu0 0
      %2811 = vmatpush2.bf16.msra.mxu0 0
      %2812 = vmatprep.subr.bf16.mxu0 0
      %2813 = vmatpush2.bf16.msra.mxu0 0
      %2814 = vmatprep.subr.bf16.mxu0 0
      %2815 = vmatpush2.bf16.msra.mxu0 0
      %2816 = vmatprep.subr.bf16.mxu0 0
      %2817 = vmatpush2.bf16.msra.mxu0 0
      %2818 = vmatprep.subr.bf16.mxu0 0
      %2819 = vmatpush2.bf16.msra.mxu0 0
      %2820 = vmatprep.subr.bf16.mxu0 0
      %2821 = vmatpush2.bf16.msra.mxu0 0
      %2822 = vmatprep.subr.bf16.mxu0 0
      %2823 = vmatpush2.bf16.msra.mxu0 0
      %2824 = vmatprep.mubr.bf16.mxu0 0
      %2825 = vmatmul.mubr.bf16.gmra.mxu0 %v2787
      %v2826 = vpop.f32.mrf.mxu0
      %v2827 = vadd.f32 0.0, %v2826
      %v2828 = vpop.f32.mrf.mxu0
      %v2829 = vpop.f32.mrf.mxu0
      %v2830 = vpop.f32.mrf.mxu0
      %2831 = vdwg.mxu0
      %v2833 = vsel %vm2079, %v2553, 0
      %v2836 = vsel %vm2558, %v2077, 0
      %2838 = vmatprep.subr.bf16.mxu0 0
      %2839 = vmatpush1.bf16.msra.mxu0 0
      %2840 = vmatprep.subr.bf16.mxu0 0
      %2841 = vmatpush1.bf16.msra.mxu0 0
      %2842 = vmatprep.subr.bf16.mxu0 0
      %2843 = vmatpush1.bf16.msra.mxu0 0
      %2844 = vmatprep.subr.bf16.mxu0 0
      %2845 = vmatpush1.bf16.msra.mxu0 0
      %2846 = vmatprep.subr.bf16.mxu0 0
      %2847 = vmatpush1.bf16.msra.mxu0 0
      %2848 = vmatprep.subr.bf16.mxu0 0
      %2849 = vmatpush1.bf16.msra.mxu0 0
      %2850 = vmatprep.subr.bf16.mxu0 0
      %2851 = vmatpush1.bf16.msra.mxu0 0
      %2852 = vmatprep.subr.bf16.mxu0 0
      %2853 = vmatpush1.bf16.msra.mxu0 %v2836
      %2854 = vmatprep.subr.bf16.mxu0 0
      %2855 = vmatpush2.bf16.msra.mxu0 0
      %2856 = vmatprep.subr.bf16.mxu0 0
      %2857 = vmatpush2.bf16.msra.mxu0 0
      %2858 = vmatprep.subr.bf16.mxu0 0
      %2859 = vmatpush2.bf16.msra.mxu0 0
      %2860 = vmatprep.subr.bf16.mxu0 0
      %2861 = vmatpush2.bf16.msra.mxu0 0
      %2862 = vmatprep.subr.bf16.mxu0 0
      %2863 = vmatpush2.bf16.msra.mxu0 0
      %2864 = vmatprep.subr.bf16.mxu0 0
      %2865 = vmatpush2.bf16.msra.mxu0 0
      %2866 = vmatprep.subr.bf16.mxu0 0
      %2867 = vmatpush2.bf16.msra.mxu0 0
      %2868 = vmatprep.subr.bf16.mxu0 0
      %2869 = vmatpush2.bf16.msra.mxu0 0
      %2870 = vmatprep.mubr.bf16.mxu0 0
      %2871 = vmatmul.mubr.bf16.gmra.mxu0 %v2833
      %v2872 = vpop.f32.mrf.mxu0
      %v2873 = vadd.f32 0.0, %v2872
      %v2874 = vpop.f32.mrf.mxu0
      %v2875 = vpop.f32.mrf.mxu0
      %v2876 = vpop.f32.mrf.mxu0
      %2877 = vdwg.mxu0
      %v2879 = vsel %vm2079, %v2554, 0
      %v2882 = vsel %vm2558, %v2078, 0
      %2884 = vmatprep.subr.bf16.mxu0 0
      %2885 = vmatpush1.bf16.msra.mxu0 0
      %2886 = vmatprep.subr.bf16.mxu0 0
      %2887 = vmatpush1.bf16.msra.mxu0 0
      %2888 = vmatprep.subr.bf16.mxu0 0
      %2889 = vmatpush1.bf16.msra.mxu0 0
      %2890 = vmatprep.subr.bf16.mxu0 0
      %2891 = vmatpush1.bf16.msra.mxu0 0
      %2892 = vmatprep.subr.bf16.mxu0 0
      %2893 = vmatpush1.bf16.msra.mxu0 0
      %2894 = vmatprep.subr.bf16.mxu0 0
      %2895 = vmatpush1.bf16.msra.mxu0 0
      %2896 = vmatprep.subr.bf16.mxu0 0
      %2897 = vmatpush1.bf16.msra.mxu0 0
      %2898 = vmatprep.subr.bf16.mxu0 0
      %2899 = vmatpush1.bf16.msra.mxu0 %v2882
      %2900 = vmatprep.subr.bf16.mxu0 0
      %2901 = vmatpush2.bf16.msra.mxu0 0
      %2902 = vmatprep.subr.bf16.mxu0 0
      %2903 = vmatpush2.bf16.msra.mxu0 0
      %2904 = vmatprep.subr.bf16.mxu0 0
      %2905 = vmatpush2.bf16.msra.mxu0 0
      %2906 = vmatprep.subr.bf16.mxu0 0
      %2907 = vmatpush2.bf16.msra.mxu0 0
      %2908 = vmatprep.subr.bf16.mxu0 0
      %2909 = vmatpush2.bf16.msra.mxu0 0
      %2910 = vmatprep.subr.bf16.mxu0 0
      %2911 = vmatpush2.bf16.msra.mxu0 0
      %2912 = vmatprep.subr.bf16.mxu0 0
      %2913 = vmatpush2.bf16.msra.mxu0 0
      %2914 = vmatprep.subr.bf16.mxu0 0
      %2915 = vmatpush2.bf16.msra.mxu0 0
      %2916 = vmatprep.mubr.bf16.mxu0 0
      %2917 = vmatmul.mubr.bf16.gmra.mxu0 %v2879
      %v2918 = vpop.f32.mrf.mxu0
      %v2919 = vadd.f32 0.0, %v2918
      %v2920 = vpop.f32.mrf.mxu0
      %v2921 = vpop.f32.mrf.mxu0
      %v2922 = vpop.f32.mrf.mxu0
      %2923 = vdwg.mxu0
      %v2924 = vcombine.low %v2597, %v2689
      %v2925 = vcombine.high %v2597, %v2689
      %v2927 = vunpack.c.l.s4 1983009808
      %v2928 = vunpack.c.0.s8 %v2927
      %v2929 = vlaneseq
      %v2930 = vshrl.u32 %v2929, 7
      %v2931 = vsub.s32 %v2928, %v2930
      %v2932 = vrot.slane %v2924, %v2931
      %v2934 = vunpack.c.l.s4 1983009808
      %v2935 = vunpack.c.0.s8 %v2934
      %v2936 = vlaneseq
      %v2937 = vshrl.u32 %v2936, 7
      %v2938 = vsub.s32 %v2935, %v2937
      %v2939 = vrot.slane %v2925, %v2938
      %v2940 = vcombine.low %v2643, %v2735
      %v2941 = vcombine.high %v2643, %v2735
      %v2943 = vunpack.c.l.s4 1983009808
      %v2944 = vunpack.c.0.s8 %v2943
      %v2945 = vlaneseq
      %v2946 = vshrl.u32 %v2945, 7
      %v2947 = vsub.s32 %v2944, %v2946
      %v2948 = vrot.slane %v2940, %v2947
      %v2950 = vunpack.c.l.s4 1983009808
      %v2951 = vunpack.c.0.s8 %v2950
      %v2952 = vlaneseq
      %v2953 = vshrl.u32 %v2952, 7
      %v2954 = vsub.s32 %v2951, %v2953
      %v2955 = vrot.slane %v2941, %v2954
      %v2956 = vcombine.low %v2932, %v2948
      %v2957 = vcombine.high %v2932, %v2948
      %v2959 = vunpack.c.l.s4 1934713408
      %v2960 = vunpack.c.0.s8 %v2959
      %v2961 = vlaneseq
      %v2962 = vshrl.u32 %v2961, 7
      %v2963 = vsub.s32 %v2960, %v2962
      %v2964 = vrot.slane %v2956, %v2963
      %v2966 = vunpack.c.l.s4 1934713408
      %v2967 = vunpack.c.0.s8 %v2966
      %v2968 = vlaneseq
      %v2969 = vshrl.u32 %v2968, 7
      %v2970 = vsub.s32 %v2967, %v2969
      %v2971 = vrot.slane %v2957, %v2970
      %v2972 = vcombine.low %v2939, %v2955
      %v2973 = vcombine.high %v2939, %v2955
      %v2975 = vunpack.c.l.s4 1934713408
      %v2976 = vunpack.c.0.s8 %v2975
      %v2977 = vlaneseq
      %v2978 = vshrl.u32 %v2977, 7
      %v2979 = vsub.s32 %v2976, %v2978
      %v2980 = vrot.slane %v2972, %v2979
      %v2982 = vunpack.c.l.s4 1934713408
      %v2983 = vunpack.c.0.s8 %v2982
      %v2984 = vlaneseq
      %v2985 = vshrl.u32 %v2984, 7
      %v2986 = vsub.s32 %v2983, %v2985
      %v2987 = vrot.slane %v2973, %v2986
      %v2988 = vcombine.high %v2964, 0.0
      %v2989 = vcombine.high %v2971, 0.0
      %v2990 = vcombine.high %v2980, 0.0
      %v2991 = vcombine.high %v2987, 0.0
      %v2992 = vcombine.low %v2781, %v2873
      %v2993 = vcombine.high %v2781, %v2873
      %v2995 = vunpack.c.l.s4 1983009808
      %v2996 = vunpack.c.0.s8 %v2995
      %v2997 = vlaneseq
      %v2998 = vshrl.u32 %v2997, 7
      %v2999 = vsub.s32 %v2996, %v2998
      %v3000 = vrot.slane %v2992, %v2999
      %v3002 = vunpack.c.l.s4 1983009808
      %v3003 = vunpack.c.0.s8 %v3002
      %v3004 = vlaneseq
      %v3005 = vshrl.u32 %v3004, 7
      %v3006 = vsub.s32 %v3003, %v3005
      %v3007 = vrot.slane %v2993, %v3006
      %v3008 = vcombine.low %v2827, %v2919
      %v3009 = vcombine.high %v2827, %v2919
      %v3011 = vunpack.c.l.s4 1983009808
      %v3012 = vunpack.c.0.s8 %v3011
      %v3013 = vlaneseq
      %v3014 = vshrl.u32 %v3013, 7
      %v3015 = vsub.s32 %v3012, %v3014
      %v3016 = vrot.slane %v3008, %v3015
      %v3018 = vunpack.c.l.s4 1983009808
      %v3019 = vunpack.c.0.s8 %v3018
      %v3020 = vlaneseq
      %v3021 = vshrl.u32 %v3020, 7
      %v3022 = vsub.s32 %v3019, %v3021
      %v3023 = vrot.slane %v3009, %v3022
      %v3024 = vcombine.low %v3000, %v3016
      %v3025 = vcombine.high %v3000, %v3016
      %v3027 = vunpack.c.l.s4 1934713408
      %v3028 = vunpack.c.0.s8 %v3027
      %v3029 = vlaneseq
      %v3030 = vshrl.u32 %v3029, 7
      %v3031 = vsub.s32 %v3028, %v3030
      %v3032 = vrot.slane %v3024, %v3031
      %v3034 = vunpack.c.l.s4 1934713408
      %v3035 = vunpack.c.0.s8 %v3034
      %v3036 = vlaneseq
      %v3037 = vshrl.u32 %v3036, 7
      %v3038 = vsub.s32 %v3035, %v3037
      %v3039 = vrot.slane %v3025, %v3038
      %v3040 = vcombine.low %v3007, %v3023
      %v3041 = vcombine.high %v3007, %v3023
      %v3043 = vunpack.c.l.s4 1934713408
      %v3044 = vunpack.c.0.s8 %v3043
      %v3045 = vlaneseq
      %v3046 = vshrl.u32 %v3045, 7
      %v3047 = vsub.s32 %v3044, %v3046
      %v3048 = vrot.slane %v3040, %v3047
      %v3050 = vunpack.c.l.s4 1934713408
      %v3051 = vunpack.c.0.s8 %v3050
      %v3052 = vlaneseq
      %v3053 = vshrl.u32 %v3052, 7
      %v3054 = vsub.s32 %v3051, %v3053
      %v3055 = vrot.slane %v3041, %v3054
      %v3056 = vcombine.high %v3032, 0.0
      %v3057 = vcombine.high %v3039, 0.0
      %v3058 = vcombine.high %v3048, 0.0
      %v3059 = vcombine.high %v3055, 0.0
      %v3060 = vcombine.low %v2964, %v2971
      %v3062 = vunpack.c.l.s4 1983009808
      %v3063 = vunpack.c.0.s8 %v3062
      %v3064 = vlaneseq
      %v3065 = vshrl.u32 %v3064, 7
      %v3066 = vsub.s32 %v3063, %v3065
      %v3067 = vrot.slane %v3060, %v3066
      %v3068 = vcombine.low %v2988, %v2989
      %v3070 = vunpack.c.l.s4 1983009808
      %v3071 = vunpack.c.0.s8 %v3070
      %v3072 = vlaneseq
      %v3073 = vshrl.u32 %v3072, 7
      %v3074 = vsub.s32 %v3071, %v3073
      %v3075 = vrot.slane %v3068, %v3074
      %v3076 = vcombine.low %v2980, %v2987
      %v3078 = vunpack.c.l.s4 1983009808
      %v3079 = vunpack.c.0.s8 %v3078
      %v3080 = vlaneseq
      %v3081 = vshrl.u32 %v3080, 7
      %v3082 = vsub.s32 %v3079, %v3081
      %v3083 = vrot.slane %v3076, %v3082
      %v3084 = vcombine.low %v2990, %v2991
      %v3086 = vunpack.c.l.s4 1983009808
      %v3087 = vunpack.c.0.s8 %v3086
      %v3088 = vlaneseq
      %v3089 = vshrl.u32 %v3088, 7
      %v3090 = vsub.s32 %v3087, %v3089
      %v3091 = vrot.slane %v3084, %v3090
      %v3092 = vcombine.low %v3067, %v3075
      %v3093 = vcombine.high %v3067, %v3075
      %v3095 = vunpack.c.l.s4 1934713408
      %v3096 = vunpack.c.0.s8 %v3095
      %v3097 = vlaneseq
      %v3098 = vshrl.u32 %v3097, 7
      %v3099 = vsub.s32 %v3096, %v3098
      %v3100 = vrot.slane %v3092, %v3099
      %v3102 = vunpack.c.l.s4 1934713408
      %v3103 = vunpack.c.0.s8 %v3102
      %v3104 = vlaneseq
      %v3105 = vshrl.u32 %v3104, 7
      %v3106 = vsub.s32 %v3103, %v3105
      %v3107 = vrot.slane %v3093, %v3106
      %v3108 = vcombine.low %v3083, %v3091
      %v3109 = vcombine.high %v3083, %v3091
      %v3111 = vunpack.c.l.s4 1934713408
      %v3112 = vunpack.c.0.s8 %v3111
      %v3113 = vlaneseq
      %v3114 = vshrl.u32 %v3113, 7
      %v3115 = vsub.s32 %v3112, %v3114
      %v3116 = vrot.slane %v3108, %v3115
      %v3118 = vunpack.c.l.s4 1934713408
      %v3119 = vunpack.c.0.s8 %v3118
      %v3120 = vlaneseq
      %v3121 = vshrl.u32 %v3120, 7
      %v3122 = vsub.s32 %v3119, %v3121
      %v3123 = vrot.slane %v3109, %v3122
      %v3124 = vcombine.low %v3100, %v3116
      %v3125 = vcombine.high %v3100, %v3116
      %v3126 = vcombine.low %v3107, %v3123
      %v3127 = vcombine.high %v3107, %v3123
      %v3128 = vcombine.low %v3032, %v3039
      %v3130 = vunpack.c.l.s4 1983009808
      %v3131 = vunpack.c.0.s8 %v3130
      %v3132 = vlaneseq
      %v3133 = vshrl.u32 %v3132, 7
      %v3134 = vsub.s32 %v3131, %v3133
      %v3135 = vrot.slane %v3128, %v3134
      %v3136 = vcombine.low %v3056, %v3057
      %v3138 = vunpack.c.l.s4 1983009808
      %v3139 = vunpack.c.0.s8 %v3138
      %v3140 = vlaneseq
      %v3141 = vshrl.u32 %v3140, 7
      %v3142 = vsub.s32 %v3139, %v3141
      %v3143 = vrot.slane %v3136, %v3142
      %v3144 = vcombine.low %v3048, %v3055
      %v3146 = vunpack.c.l.s4 1983009808
      %v3147 = vunpack.c.0.s8 %v3146
      %v3148 = vlaneseq
      %v3149 = vshrl.u32 %v3148, 7
      %v3150 = vsub.s32 %v3147, %v3149
      %v3151 = vrot.slane %v3144, %v3150
      %v3152 = vcombine.low %v3058, %v3059
      %v3154 = vunpack.c.l.s4 1983009808
      %v3155 = vunpack.c.0.s8 %v3154
      %v3156 = vlaneseq
      %v3157 = vshrl.u32 %v3156, 7
      %v3158 = vsub.s32 %v3155, %v3157
      %v3159 = vrot.slane %v3152, %v3158
      %v3160 = vcombine.low %v3135, %v3143
      %v3161 = vcombine.high %v3135, %v3143
      %v3163 = vunpack.c.l.s4 1934713408
      %v3164 = vunpack.c.0.s8 %v3163
      %v3165 = vlaneseq
      %v3166 = vshrl.u32 %v3165, 7
      %v3167 = vsub.s32 %v3164, %v3166
      %v3168 = vrot.slane %v3160, %v3167
      %v3170 = vunpack.c.l.s4 1934713408
      %v3171 = vunpack.c.0.s8 %v3170
      %v3172 = vlaneseq
      %v3173 = vshrl.u32 %v3172, 7
      %v3174 = vsub.s32 %v3171, %v3173
      %v3175 = vrot.slane %v3161, %v3174
      %v3176 = vcombine.low %v3151, %v3159
      %v3177 = vcombine.high %v3151, %v3159
      %v3179 = vunpack.c.l.s4 1934713408
      %v3180 = vunpack.c.0.s8 %v3179
      %v3181 = vlaneseq
      %v3182 = vshrl.u32 %v3181, 7
      %v3183 = vsub.s32 %v3180, %v3182
      %v3184 = vrot.slane %v3176, %v3183
      %v3186 = vunpack.c.l.s4 1934713408
      %v3187 = vunpack.c.0.s8 %v3186
      %v3188 = vlaneseq
      %v3189 = vshrl.u32 %v3188, 7
      %v3190 = vsub.s32 %v3187, %v3189
      %v3191 = vrot.slane %v3177, %v3190
      %v3192 = vcombine.low %v3168, %v3184
      %v3193 = vcombine.high %v3168, %v3184
      %v3194 = vcombine.low %v3175, %v3191
      %v3195 = vcombine.high %v3175, %v3191
      %3198 = vrot.lane.b32.xlu0 %v3125, 8
      %v3199 = vpop.permute.xlu0 %3198
      %3200 = vrot.lane.b32.xlu0 %v3193, 8
      %v3201 = vpop.permute.xlu0 %3200
      %3206 = vrot.lane.b32.xlu0 %v3126, 16
      %v3207 = vpop.permute.xlu0 %3206
      %3208 = vrot.lane.b32.xlu0 %v3194, 16
      %v3209 = vpop.permute.xlu0 %3208
      %3214 = vrot.lane.b32.xlu0 %v3127, 24
      %v3215 = vpop.permute.xlu0 %3214
      %3216 = vrot.lane.b32.xlu0 %v3195, 24
      %v3217 = vpop.permute.xlu0 %3216
      %v3220 = vsel %vm2079, %v3124, %v3199
      %v3221 = vsel %vm2079, %v3192, %v3201
      %vm3222 = vcmask 130048
      %v3223 = vsel %vm3222, %v3220, %v3207
      %v3224 = vsel %vm3222, %v3221, %v3209
      %vm3225 = vcmask 195584
      %v3226 = vsel %vm3225, %v3223, %v3215
      %v3227 = vsel %vm3225, %v3224, %v3217
      %v3228 = vpack.c.bf16 %v3227, %v3226
      %v3229 = vld [vmem:[%s846] sm:$0xf]
      %v3230 = vld [vmem:[%s846 + $0x4] sm:$0xf]
      %v3231 = vld [vmem:[%s846 + $0x8] sm:$0xf]
      %v3232 = vld [vmem:[%s846 + $0xc] sm:$0xf]
      %v3233 = vld [vmem:[%s849] sm:$0x1]
      %v3235 = vlaneseq
      %v3236 = vshrl.u32 %v3235, 7
      %v3237 = vsub.s32 0, %v3236
      %v3238 = vrot.slane %v3233, %v3237
      %v3244 = vunpack.c.l.b16 %v3229
      %v3245 = vunpack.c.l.b16 %v3230
      %v3246 = vunpack.c.l.b16 %v3231
      %v3247 = vunpack.c.l.b16 %v3232
      %v3248 = vpack.c.b16 %v3245, %v3244
      %v3249 = vpack.c.b16 %v3247, %v3246
      %v3253 = vsel %vm937, %v3228, 0
      %3255 = vmatprep.subr.bf16.mxu0 0
      %3256 = vmatpush1.bf16.msra.mxu0 0
      %3257 = vmatprep.subr.bf16.mxu0 0
      %3258 = vmatpush1.bf16.msra.mxu0 0
      %3259 = vmatprep.subr.bf16.mxu0 0
      %3260 = vmatpush1.bf16.msra.mxu0 0
      %3261 = vmatprep.subr.bf16.mxu0 0
      %3262 = vmatpush1.bf16.msra.mxu0 0
      %3263 = vmatprep.subr.bf16.mxu0 0
      %3264 = vmatpush1.bf16.msra.mxu0 0
      %3265 = vmatprep.subr.bf16.mxu0 0
      %3266 = vmatpush1.bf16.msra.mxu0 0
      %3267 = vmatprep.subr.bf16.mxu0 0
      %3268 = vmatpush1.bf16.msra.mxu0 %v3249
      %3269 = vmatprep.subr.bf16.mxu0 0
      %3270 = vmatpush1.bf16.msra.mxu0 %v3248
      %3271 = vmatprep.subr.bf16.mxu0 0
      %3272 = vmatpush2.bf16.msra.mxu0 0
      %3273 = vmatprep.subr.bf16.mxu0 0
      %3274 = vmatpush2.bf16.msra.mxu0 0
      %3275 = vmatprep.subr.bf16.mxu0 0
      %3276 = vmatpush2.bf16.msra.mxu0 0
      %3277 = vmatprep.subr.bf16.mxu0 0
      %3278 = vmatpush2.bf16.msra.mxu0 0
      %3279 = vmatprep.subr.bf16.mxu0 0
      %3280 = vmatpush2.bf16.msra.mxu0 0
      %3281 = vmatprep.subr.bf16.mxu0 0
      %3282 = vmatpush2.bf16.msra.mxu0 0
      %3283 = vmatprep.subr.bf16.mxu0 0
      %3284 = vmatpush2.bf16.msra.mxu0 0
      %3285 = vmatprep.subr.bf16.mxu0 0
      %3286 = vmatpush2.bf16.msra.mxu0 0
      %3287 = vmatprep.mubr.bf16.mxu0 0
      %3288 = vmatmul.mubr.bf16.gmra.mxu0 %v3253
      %v3289 = vpop.f32.mrf.mxu0
      %v3290 = vadd.f32 %v3238, %v3289
      %v3291 = vpop.f32.mrf.mxu0
      %v3292 = vpop.f32.mrf.mxu0
      %v3293 = vadd.f32 %v3238, %v3292
      %v3294 = vpop.f32.mrf.mxu0
      %3295 = vdwg.mxu0
      %v3296 = vadd.f32 %v933, %v3290
      %v3297 = vadd.f32 %v934, %v3293
      %v3298 = vld [vmem:[%s852] sm:$0x1]
      %v3299 = vld [vmem:[%s855] sm:$0x1]
      %v3300 = vsel %vm937, %v3296, 0.0
      %3301 = vadd.xlane.f32.xlu0 %v3300
      %v3302 = vpop.xlane.xlu0 %3301
      %v3303 = vsel %vm937, %v3297, 0.0
      %3304 = vadd.xlane.f32.xlu0 %v3303
      %v3305 = vpop.xlane.xlu0 %3304
      %v3306 = vmul.f32 %v3302, %v944
      %v3307 = vmul.f32 %v3305, %v944
      %v3308 = vsub.f32 %v3296, %v3306
      %v3309 = vsub.f32 %v3297, %v3307
      %v3310 = vmul.f32 %v3308, %v3308
      %v3311 = vmul.f32 %v3309, %v3309
      %v3312 = vsel %vm937, %v3310, 0.0
      %3313 = vadd.xlane.f32.xlu0 %v3312
      %v3314 = vpop.xlane.xlu0 %3313
      %v3315 = vsel %vm937, %v3311, 0.0
      %3316 = vadd.xlane.f32.xlu0 %v3315
      %v3317 = vpop.xlane.xlu0 %3316
      %v3318 = vmul.f32 %v3314, %v944
      %v3319 = vmul.f32 %v3317, %v944
      %v3320 = vadd.f32 %v3318, 1e-05
      %v3321 = vadd.f32 %v3319, 1e-05
      %v3322 = vrsqrt.pop %v3320
      %v3323 = vrsqrt.pop %v3321
      %v3324 = vmul.f32 %v3308, %v3322
      %v3325 = vmul.f32 %v3309, %v3323
      %v3327 = vlaneseq
      %v3328 = vshrl.u32 %v3327, 7
      %v3329 = vsub.s32 0, %v3328
      %v3330 = vrot.slane %v3298, %v3329
      %v3332 = vmul.f32 %v3324, %v3330
      %v3333 = vmul.f32 %v3325, %v3330
      %v3335 = vlaneseq
      %v3336 = vshrl.u32 %v3335, 7
      %v3337 = vsub.s32 0, %v3336
      %v3338 = vrot.slane %v3299, %v3337
      %v3340 = vadd.f32 %v3332, %v3338
      %v3341 = vadd.f32 %v3333, %v3338
      %v3342 = vpack.c.bf16 %v3341, %v3340
      %v3343 = vld [vmem:[%s860] sm:$0xf]
      %v3344 = vld [vmem:[%s860 + $0x4] sm:$0xf]
      %v3345 = vld [vmem:[%s860 + $0x8] sm:$0xf]
      %v3346 = vld [vmem:[%s860 + $0xc] sm:$0xf]
      %v3347 = vld [vmem:[%s863] sm:$0x1]
      %v3349 = vlaneseq
      %v3350 = vshrl.u32 %v3349, 7
      %v3351 = vsub.s32 0, %v3350
      %v3352 = vrot.slane %v3347, %v3351
      %v3358 = vunpack.c.l.b16 %v3343
      %v3359 = vunpack.c.l.b16 %v3344
      %v3360 = vunpack.c.l.b16 %v3345
      %v3361 = vunpack.c.l.b16 %v3346
      %v3362 = vpack.c.b16 %v3359, %v3358
      %v3363 = vpack.c.b16 %v3361, %v3360
      %v3367 = vsel %vm937, %v3342, 0
      %3369 = vmatprep.subr.bf16.mxu0 0
      %3370 = vmatpush1.bf16.msra.mxu0 0
      %3371 = vmatprep.subr.bf16.mxu0 0
      %3372 = vmatpush1.bf16.msra.mxu0 0
      %3373 = vmatprep.subr.bf16.mxu0 0
      %3374 = vmatpush1.bf16.msra.mxu0 0
      %3375 = vmatprep.subr.bf16.mxu0 0
      %3376 = vmatpush1.bf16.msra.mxu0 0
      %3377 = vmatprep.subr.bf16.mxu0 0
      %3378 = vmatpush1.bf16.msra.mxu0 0
      %3379 = vmatprep.subr.bf16.mxu0 0
      %3380 = vmatpush1.bf16.msra.mxu0 0
      %3381 = vmatprep.subr.bf16.mxu0 0
      %3382 = vmatpush1.bf16.msra.mxu0 %v3363
      %3383 = vmatprep.subr.bf16.mxu0 0
      %3384 = vmatpush1.bf16.msra.mxu0 %v3362
      %3385 = vmatprep.subr.bf16.mxu0 0
      %3386 = vmatpush2.bf16.msra.mxu0 0
      %3387 = vmatprep.subr.bf16.mxu0 0
      %3388 = vmatpush2.bf16.msra.mxu0 0
      %3389 = vmatprep.subr.bf16.mxu0 0
      %3390 = vmatpush2.bf16.msra.mxu0 0
      %3391 = vmatprep.subr.bf16.mxu0 0
      %3392 = vmatpush2.bf16.msra.mxu0 0
      %3393 = vmatprep.subr.bf16.mxu0 0
      %3394 = vmatpush2.bf16.msra.mxu0 0
      %3395 = vmatprep.subr.bf16.mxu0 0
      %3396 = vmatpush2.bf16.msra.mxu0 0
      %3397 = vmatprep.subr.bf16.mxu0 0
      %3398 = vmatpush2.bf16.msra.mxu0 0
      %3399 = vmatprep.subr.bf16.mxu0 0
      %3400 = vmatpush2.bf16.msra.mxu0 0
      %3401 = vmatprep.mubr.bf16.mxu0 0
      %3402 = vmatmul.mubr.bf16.gmra.mxu0 %v3367
      %v3403 = vpop.f32.mrf.mxu0
      %v3404 = vadd.f32 %v3352, %v3403
      %v3405 = vpop.f32.mrf.mxu0
      %v3406 = vpop.f32.mrf.mxu0
      %v3407 = vadd.f32 %v3352, %v3406
      %v3408 = vpop.f32.mrf.mxu0
      %3409 = vdwg.mxu0
      %v3410 = vmul.f32 %v3404, 1.702
      %v3411 = vmul.f32 %v3407, 1.702
      %v3412 = vxor.u32 %v3410, 2147483648
      %v3413 = vxor.u32 %v3411, 2147483648
      %v3414 = vmul.f32 %v3412, 1.442695
      %v3415 = vpow.pop %v3414
      %v3416 = vmul.f32 %v3413, 1.442695
      %v3417 = vpow.pop %v3416
      %v3418 = vadd.f32 %v3415, 1.0
      %v3419 = vadd.f32 %v3417, 1.0
      %v3420 = vrcp.pop %v3418
      %v3421 = vmul.f32 1.0, %v3420
      %v3422 = vrcp.pop %v3419
      %v3423 = vmul.f32 1.0, %v3422
      %v3424 = vmul.f32 %v3404, %v3421
      %v3425 = vmul.f32 %v3407, %v3423
      %v3426 = vpack.c.bf16 %v3425, %v3424
      %v3427 = vld [vmem:[%s868] sm:$0xf]
      %v3428 = vld [vmem:[%s868 + $0x4] sm:$0xf]
      %v3429 = vld [vmem:[%s868 + $0x8] sm:$0xf]
      %v3430 = vld [vmem:[%s868 + $0xc] sm:$0xf]
      %v3431 = vld [vmem:[%s868 + $0x10] sm:$0xf]
      %v3432 = vld [vmem:[%s868 + $0x14] sm:$0xf]
      %v3433 = vld [vmem:[%s868 + $0x18] sm:$0xf]
      %v3434 = vld [vmem:[%s868 + $0x1c] sm:$0xf]
      %v3435 = vld [vmem:[%s871] sm:$0x1]
      %v3437 = vlaneseq
      %v3438 = vshrl.u32 %v3437, 7
      %v3439 = vsub.s32 0, %v3438
      %v3440 = vrot.slane %v3435, %v3439
      %v3450 = vunpack.c.l.b16 %v3427
      %v3451 = vunpack.c.l.b16 %v3428
      %v3452 = vunpack.c.l.b16 %v3429
      %v3453 = vunpack.c.l.b16 %v3430
      %v3454 = vunpack.c.l.b16 %v3431
      %v3455 = vunpack.c.l.b16 %v3432
      %v3456 = vunpack.c.l.b16 %v3433
      %v3457 = vunpack.c.l.b16 %v3434
      %v3458 = vpack.c.b16 %v3451, %v3450
      %v3459 = vpack.c.b16 %v3453, %v3452
      %v3460 = vpack.c.b16 %v3455, %v3454
      %v3461 = vpack.c.b16 %v3457, %v3456
      %vm3466 = vcmask 523264
      %v3468 = vsel %vm3466, %v3426, 0
      %3470 = vmatprep.subr.bf16.mxu0 0
      %3471 = vmatpush1.bf16.msra.mxu0 0
      %3472 = vmatprep.subr.bf16.mxu0 0
      %3473 = vmatpush1.bf16.msra.mxu0 0
      %3474 = vmatprep.subr.bf16.mxu0 0
      %3475 = vmatpush1.bf16.msra.mxu0 0
      %3476 = vmatprep.subr.bf16.mxu0 0
      %3477 = vmatpush1.bf16.msra.mxu0 0
      %3478 = vmatprep.subr.bf16.mxu0 0
      %3479 = vmatpush1.bf16.msra.mxu0 %v3461
      %3480 = vmatprep.subr.bf16.mxu0 0
      %3481 = vmatpush1.bf16.msra.mxu0 %v3460
      %3482 = vmatprep.subr.bf16.mxu0 0
      %3483 = vmatpush1.bf16.msra.mxu0 %v3459
      %3484 = vmatprep.subr.bf16.mxu0 0
      %3485 = vmatpush1.bf16.msra.mxu0 %v3458
      %3486 = vmatprep.subr.bf16.mxu0 0
      %3487 = vmatpush2.bf16.msra.mxu0 0
      %3488 = vmatprep.subr.bf16.mxu0 0
      %3489 = vmatpush2.bf16.msra.mxu0 0
      %3490 = vmatprep.subr.bf16.mxu0 0
      %3491 = vmatpush2.bf16.msra.mxu0 0
      %3492 = vmatprep.subr.bf16.mxu0 0
      %3493 = vmatpush2.bf16.msra.mxu0 0
      %3494 = vmatprep.subr.bf16.mxu0 0
      %3495 = vmatpush2.bf16.msra.mxu0 0
      %3496 = vmatprep.subr.bf16.mxu0 0
      %3497 = vmatpush2.bf16.msra.mxu0 0
      %3498 = vmatprep.subr.bf16.mxu0 0
      %3499 = vmatpush2.bf16.msra.mxu0 0
      %3500 = vmatprep.subr.bf16.mxu0 0
      %3501 = vmatpush2.bf16.msra.mxu0 0
      %3502 = vmatprep.mubr.bf16.mxu0 0
      %3503 = vmatmul.mubr.bf16.gmra.mxu0 %v3468
      %v3504 = vpop.f32.mrf.mxu0
      %v3505 = vadd.f32 %v3440, %v3504
      %v3506 = vpop.f32.mrf.mxu0
      %v3507 = vpop.f32.mrf.mxu0
      %v3508 = vadd.f32 %v3440, %v3507
      %v3509 = vpop.f32.mrf.mxu0
      %3510 = vdwg.mxu0
      %v3511 = vadd.f32 %v3296, %v3505
      %v3512 = vadd.f32 %v3297, %v3508
      %3513 = vst.msk [vmem:[%s876] sm:$0xff] %vm937, %v3511
      %3514 = vst.msk [vmem:[%s876 + $0x8] sm:$0xff] %vm937, %v3512
      %s3515 = smul.u32 2, %s34
      %p3516 = scmp.lt.s32.totalorder %s3515, 1
      %s3517 = scalar_select %p3516, %s3515, 1
      %s3518 = smul.addr %s3517, 8
      %s3519 = scalar_lea.vmem %s19, %s3518
      // Predicated region
      $region101: #{clip_finetune_forward.4} parent=95 // pred_check
        %p3520 = pneg %p544
      $region102: #{clip_finetune_forward.4} parent=95 // pred_check_branch
        %3522 = sbr.rel (%p3520) target = $region104
      $region103: #{clip_finetune_forward.4} parent=95 // pred_region
        %s3523 = smul.u32 2, %s34
      $region104: #{clip_finetune_forward.4} parent=95 // pred_fallthru
        _
      // Predicated region
      $region105: #{clip_finetune_forward.4} parent=95 // pred_check
        %p3524 = pneg %p544
      $region106: #{clip_finetune_forward.4} parent=95 // pred_check_branch
        %3526 = sbr.rel (%p3524) target = $region108
      $region107: #{clip_finetune_forward.4} parent=95 // pred_region
        %s3527 = smul.u32 2, %s34
        %p3528 = scmp.lt.s32.totalorder %s3527, 1
        %s3529 = scalar_select %p3528, %s3527, 1
        %s3530 = smul.addr %s3529, 8
        %s3531 = scalar_lea.vmem %s19, %s3530
      $region108: #{clip_finetune_forward.4} parent=95 // pred_fallthru
        _
    $region96: #{clip_finetune_forward.4} parent=5 // pred_fallthru
      _
    %p3532 = scmp.le.s32.totalorder 2, %s25
    // Predicated region
    $region109: #{clip_finetune_forward.4} parent=5 // pred_check
      %p3533 = pneg %p3532
    $region110: #{clip_finetune_forward.4} parent=5 // pred_check_branch
      %3535 = sbr.rel (%p3533) target = $region112
    $region111: #{clip_finetune_forward.4} parent=5 // pred_region
      %s3536 = ssub.s32 %s25, 2
    $region112: #{clip_finetune_forward.4} parent=5 // pred_fallthru
      _
  $region6: #{clip_finetune_forward.4} parent=0 // loop_footer
    %s29 = sadd.s32 1, %s25
  $region7: #{clip_finetune_forward.4} parent=0 // loop_footer_branch
    %24 = sbr.rel target = $region3
  $region8: #{clip_finetune_forward.4} parent=0 // loop_exit
    _

</llo_original>
